<compile_context>
chip_gen: v6e
topology: v6e:2x2x1
jax: 0.10.0
libtpu: 0.0.40
codegen_flags: <defaults>
</compile_context>

<pallas_src>
from functools import partial

import jax
import jax.numpy as jnp
from jax.experimental import pallas as pl
from jax.experimental.pallas import tpu as pltpu


CHUNK = 16          # WKV sub-chunk length (intra-chunk attention size)
DECAY_CLAMP = 4.0   # per-step exp(w) clamp -> |sum log decay| <= 64 per chunk


# ----------------------------------------------------------------------------
# tile helpers
# ----------------------------------------------------------------------------
def _pick(dim, pref):
    for t in pref:
        if dim % t == 0:
            return t
    cap = max(pref)
    if dim <= cap:
        return dim
    for t in range(cap, 7, -8):
        if dim % t == 0:
            return t
    return dim  # TODO(synk): pad + edge-mask awkward sizes instead


def _pick_tblk(T, cap=256):
    best, m = CHUNK, CHUNK
    while m <= min(T, cap):
        if T % m == 0:
            best = m
        m += CHUNK
    return best


# ----------------------------------------------------------------------------
# Generic accumulating matmul (bf16 operands, fp32 accumulator scratch).
#   a: (M,K)  or  (5,M,K) with a static mix selector `sel`.
# ----------------------------------------------------------------------------
def _acc_matmul_kernel(a_ref, b_ref, o_ref, acc_ref, *, activation):
    @pl.when(pl.program_id(2) == 0)
    def _():
        acc_ref[...] = jnp.zeros_like(acc_ref)

    acc_ref[...] += jnp.dot(a_ref[...], b_ref[...],
                            preferred_element_type=jnp.float32)

    @pl.when(pl.program_id(2) == pl.num_programs(2) - 1)
    def _():
        res = acc_ref[...]
        if activation is not None:
            res = activation(res)
        o_ref[...] = res.astype(o_ref.dtype)


def pallas_matmul(a, b, *, sel=None, out_dtype=jnp.bfloat16, activation=None):
    if a.ndim == 3:
        assert sel is not None
        _, M, K = a.shape
    else:
        M, K = a.shape
    K2, N = b.shape
    assert K == K2
    tm = _pick(M, (256, 128))
    tn = _pick(N, (256, 128))
    tk = _pick(K, (1024, 768, 512, 256, 128))
    if a.ndim == 3:
        a_spec = pl.BlockSpec((None, tm, tk), lambda i, j, k: (sel, i, k))
    else:
        a_spec = pl.BlockSpec((tm, tk), lambda i, j, k: (i, k))
    return pl.pallas_call(
        partial(_acc_matmul_kernel, activation=activation),
        out_shape=jax.ShapeDtypeStruct((M, N), out_dtype),
        grid=(M // tm, N // tn, K // tk),
        in_specs=[a_spec, pl.BlockSpec((tk, tn), lambda i, j, k: (k, j))],
        out_specs=pl.BlockSpec((tm, tn), lambda i, j, k: (i, j)),
        scratch_shapes=[pltpu.VMEM((tm, tn), jnp.float32)],
        compiler_params=pltpu.CompilerParams(
            dimension_semantics=("parallel", "parallel", "arbitrary")),
    )(a, b)


# ----------------------------------------------------------------------------
# Fused time-shift + ddlerp + 5-way LoRA:
#   dxx = x_last - x ; xx = x + dxx*miu_x
#   out_i = x + dxx * (lambda_i + tanh(xx @ A)[:, 32i:32(i+1)] @ B_i)
# One LoRA-A matmul (C x 160) shared by all 5 mixes per row tile.
# ----------------------------------------------------------------------------
def _ddlerp_kernel(x_ref, xl_ref, miu_ref, a_ref, b_ref, lam_ref, o_ref):
    x = x_ref[...].astype(jnp.float32)
    dxx = xl_ref[...].astype(jnp.float32) - x
    xx = x + dxx * miu_ref[...].astype(jnp.float32)
    xa = jnp.tanh(jnp.dot(xx.astype(jnp.bfloat16), a_ref[...],
                          preferred_element_type=jnp.float32))      # (tm, 160)
    for i in range(5):
        lora = jnp.dot(xa[:, 32 * i:32 * (i + 1)].astype(jnp.bfloat16),
                       b_ref[i], preferred_element_type=jnp.float32)
        miu = lam_ref[i].astype(jnp.float32) + lora
        o_ref[i] = (x + dxx * miu).astype(o_ref.dtype)


def ddlerp_mix(x, x_last, miu_x, A, B5, lam):
    M, C = x.shape
    tm = _pick(M, (256, 128))
    row_spec = pl.BlockSpec((tm, C), lambda m: (m, 0))
    return pl.pallas_call(
        _ddlerp_kernel,
        out_shape=jax.ShapeDtypeStruct((5, M, C), jnp.bfloat16),
        grid=(M // tm,),
        in_specs=[row_spec, row_spec,
                  pl.BlockSpec((1, C), lambda m: (0, 0)),
                  pl.BlockSpec(A.shape, lambda m: (0, 0)),
                  pl.BlockSpec(B5.shape, lambda m: (0, 0, 0)),
                  pl.BlockSpec(lam.shape, lambda m: (0, 0, 0))],
        out_specs=pl.BlockSpec((5, tm, C), lambda m: (0, m, 0)),
        compiler_params=pltpu.CompilerParams(
            dimension_semantics=("parallel",)),
    )(x, x_last, miu_x, A, B5, lam)


# ----------------------------------------------------------------------------
# Chunked WKV6 (2 heads packed per step) + fused decay-LoRA stage 2 +
# GroupNorm(ln_x) + SiLU gate.
# ----------------------------------------------------------------------------
def _wkv6_gn_gate_kernel(r_ref, k_ref, v_ref, g_ref, wt_ref, db_ref,
                         miu_ref, u_ref, gamma_ref, beta_ref,
                         tril_ref, strict_ref, bd_ref,
                         o_ref, s_ref, *, eps, n, group, nsub):
    @pl.when(pl.program_id(2) == 0)
    def _():
        s_ref[...] = jnp.zeros_like(s_ref)

    u = u_ref[...].astype(jnp.float32)           # (1, NP)
    miu = miu_ref[...].astype(jnp.float32)       # (1, NP)
    gamma = gamma_ref[...].astype(jnp.float32)
    beta = beta_ref[...].astype(jnp.float32)
    db = db_ref[...]                             # (128, NP) f32
    tril = tril_ref[...]                         # (Tc, Tc) inclusive lower-tri
    strict = strict_ref[...]                     # (Tc, Tc) strict lower-tri
    bd = bd_ref[...]                             # (NP, NP) block-diag ones
    ones_col = jnp.ones((CHUNK, 1), jnp.float32)
    inv_n = 1.0 / float(n)

    @pl.loop(0, nsub)
    def _(c):
        idx = pl.multiple_of(c * CHUNK, CHUNK)
        r = r_ref[pl.ds(idx, CHUNK), :].astype(jnp.float32)      # (Tc, NP)
        k = k_ref[pl.ds(idx, CHUNK), :].astype(jnp.float32)
        v = v_ref[pl.ds(idx, CHUNK), :].astype(jnp.float32)
        gate = g_ref[pl.ds(idx, CHUNK), :].astype(jnp.float32)
        wt = wt_ref[pl.ds(idx, CHUNK), :]                        # (Tc, 128) f32

        # fused decay-LoRA stage 2; per-step log decay clamped so the chunk
        # factorisation below never leaves fp32 range (avoids inf*0 NaNs).
        w = jnp.dot(wt, db, preferred_element_type=jnp.float32) + miu
        log_a = -jnp.minimum(jnp.exp(w), DECAY_CLAMP)            # (Tc, NP) <= 0
        cum_incl = jnp.dot(tril, log_a, preferred_element_type=jnp.float32)
        cum_excl = cum_incl - log_a
        a_last = jnp.exp(cum_incl[CHUNK - 1:CHUNK, :])           # (1, NP)

        r_sc = r * jnp.exp(cum_excl)                             # r_t * A_t
        k_div = k * jnp.exp(-cum_incl)                           # k_s / A_{s+1}
        k_sc = k_div * a_last                                    # k_s * A_Tc/A_{s+1}

        s0 = s_ref[...]                                          # (NP, NP) f32

        # inter-chunk contribution
        y = jnp.dot(r_sc, s0, preferred_element_type=jnp.float32)
        # intra-chunk (strictly causal), per packed head
        parts = []
        for hh in range(group):
            lo = hh * n
            att = jax.lax.dot_general(
                r_sc[:, lo:lo + n], k_div[:, lo:lo + n],
                (((1,), (1,)), ((), ())), preferred_element_type=jnp.float32)
            parts.append(jnp.dot(att * strict, v[:, lo:lo + n],
                                 preferred_element_type=jnp.float32))
        y = y + (parts[0] if group == 1 else jnp.concatenate(parts, axis=-1))
        # diagonal "bonus" term: per-head channel sum via block-diag matmul
        y = y + jnp.dot(r * u * k, bd, preferred_element_type=jnp.float32) * v

        # state update: S <- diag(A_Tc) S + (k_sc^T V) masked to head blocks
        a_col = jnp.exp(jax.lax.dot_general(
            log_a, ones_col, (((0,), (0,)), ((), ())),
            preferred_element_type=jnp.float32))                 # (NP, 1)
        kv = jax.lax.dot_general(k_sc, v, (((0,), (0,)), ((), ())),
                                 preferred_element_type=jnp.float32)
        s_ref[...] = s0 * a_col + kv * bd

        # fused GroupNorm (per head over n channels) + SiLU gate
        mean = jnp.dot(y, bd, preferred_element_type=jnp.float32) * inv_n
        yc = y - mean
        var = jnp.dot(yc * yc, bd, preferred_element_type=jnp.float32) * inv_n
        yn = yc * jax.lax.rsqrt(var + eps) * gamma + beta
        o_ref[pl.ds(idx, CHUNK), :] = (yn * gate * jax.nn.sigmoid(gate)
                                       ).astype(o_ref.dtype)


def wkv6_gn_gate(r, k, v, g, wt, dB_pairs, decay_miu, u, gamma, beta,
                 tril, strict, bd, *, head_size, group, eps, tblk):
    B, T, C = r.shape
    N = head_size
    NP = group * N
    HP = C // NP
    nsub = tblk // CHUNK
    L = wt.shape[-1]

    seq_spec = pl.BlockSpec((None, tblk, NP), lambda b, hp, t: (b, t, hp))
    wt_spec = pl.BlockSpec((None, tblk, L), lambda b, hp, t: (b, t, 0))
    db_spec = pl.BlockSpec((None, L, NP), lambda b, hp, t: (hp, 0, 0))
    pair_spec = pl.BlockSpec((1, NP), lambda b, hp, t: (hp, 0))
    tt_spec = pl.BlockSpec((CHUNK, CHUNK), lambda b, hp, t: (0, 0))
    bd_spec = pl.BlockSpec((NP, NP), lambda b, hp, t: (0, 0))

    return pl.pallas_call(
        partial(_wkv6_gn_gate_kernel, eps=eps, n=N, group=group, nsub=nsub),
        out_shape=jax.ShapeDtypeStruct((B, T, C), jnp.bfloat16),
        grid=(B, HP, T // tblk),
        in_specs=[seq_spec, seq_spec, seq_spec, seq_spec, wt_spec, db_spec,
                  pair_spec, pair_spec, pair_spec, pair_spec,
                  tt_spec, tt_spec, bd_spec],
        out_specs=seq_spec,
        scratch_shapes=[pltpu.VMEM((NP, NP), jnp.float32)],
        compiler_params=pltpu.CompilerParams(
            dimension_semantics=("parallel", "parallel", "arbitrary")),
    )(r, k, v, g, wt, dB_pairs, decay_miu, u, gamma, beta, tril, strict, bd)


# ----------------------------------------------------------------------------
# Parameters (shapes follow TimeMix.__init__), laid out so the forward never
# transposes weights or activations.
# ----------------------------------------------------------------------------
def init_params(key, C, n_blocks, layer_id, head_size):
    N = head_size
    H = C // N
    G = 2 if H % 2 == 0 else 1
    NP = G * N
    HP = H // G
    ratio_0_to_1 = layer_id / (n_blocks - 1)
    ratio_1_to_almost0 = 1.0 - layer_id / n_blocks

    ddd = jnp.arange(C, dtype=jnp.float32) / C
    miu_x = (1.0 - ddd ** ratio_1_to_almost0).reshape(1, C)
    lam = jnp.stack([
        1.0 - ddd ** ratio_1_to_almost0,
        1.0 - ddd ** ratio_1_to_almost0,
        1.0 - ddd ** (0.5 * ratio_1_to_almost0),
        1.0 - ddd ** (0.5 * ratio_1_to_almost0),
        1.0 - (ddd ** ratio_1_to_almost0 + 0.3 * ratio_0_to_1),
    ]).reshape(5, 1, C)

    n = jnp.arange(C, dtype=jnp.float32)
    decay_speed = -6.0 + 5.0 * (n / (C - 1)) ** (0.7 + 1.3 * ratio_0_to_1)
    zigzag = (((jnp.arange(C) + 1) % 3) - 1).astype(jnp.float32) * 0.1
    u = ratio_0_to_1 * (1.0 - n / (C - 1)) + zigzag

    ks = jax.random.split(key, 12)
    unif = lambda kk, s: jax.random.uniform(kk, s, jnp.float32, -0.01, 0.01)
    lin = lambda kk: jax.random.normal(kk, (C, C), jnp.float32) / jnp.sqrt(C)
    bf = lambda a: a.astype(jnp.bfloat16)

    A = unif(ks[0], (C, 5 * 32))                 # column group i -> mix i
    B5 = unif(ks[1], (5, 32, C))
    dA = unif(ks[2], (C, 64))
    dB = unif(ks[3], (64, C))
    # pad the decay LoRA rank to 128 lanes (zeros -> exact same result)
    dA_pad = jnp.concatenate([dA, jnp.zeros((C, 64), jnp.float32)], axis=1)
    dB_pad = jnp.concatenate([dB, jnp.zeros((64, C), jnp.float32)], axis=0)
    dB_pairs = dB_pad.reshape(128, HP, NP).transpose(1, 0, 2)    # (HP,128,NP)

    W_r, W_k, W_v, W_o, W_g = (lin(ks[i]) for i in range(4, 9))  # (in, out)

    gamma = 1.0 + 0.02 * jax.random.normal(ks[9], (C,), jnp.float32)
    beta = 0.02 * jax.random.normal(ks[10], (C,), jnp.float32)

    return dict(
        miu_x=miu_x, lambda_=lam,
        A=bf(A), B5=bf(B5),
        dA=bf(dA_pad), dB_pairs=dB_pairs.astype(jnp.float32),
        decay_miu=decay_speed.reshape(HP, NP),
        u=u.reshape(HP, NP),
        gamma=gamma.reshape(HP, NP), beta=beta.reshape(HP, NP),
        W_r=bf(W_r), W_k=bf(W_k), W_v=bf(W_v), W_g=bf(W_g), W_o=bf(W_o),
    )


# ----------------------------------------------------------------------------
# Full TimeMix forward.
# ----------------------------------------------------------------------------
def time_mix_forward(params, x, *, n_head, head_size):
    B, T, C = x.shape
    H, N = n_head, head_size
    G = 2 if H % 2 == 0 else 1
    NP = G * N
    M = B * T
    assert T % CHUNK == 0  # TODO(synk): pad ragged T to a CHUNK multiple

    # time_shift: ZeroPad2d((0,0,1,-1)) -> shift T by one, zero first row
    x_bf = x.astype(jnp.bfloat16)
    x_last = jnp.concatenate(
        [jnp.zeros((B, 1, C), jnp.bfloat16), x_bf[:, :-1, :]], axis=1)

    # fused time-shift tail + 5-way ddlerp; unbind order: w, k, v, r, g
    xd = ddlerp_mix(x_bf.reshape(M, C), x_last.reshape(M, C),
                    params['miu_x'], params['A'], params['B5'],
                    params['lambda_'])                              # (5, M, C)

    # lane-dense (M,C)@(C,C) projections straight into (B,T,C)
    k = pallas_matmul(xd, params['W_k'], sel=1).reshape(B, T, C)
    v = pallas_matmul(xd, params['W_v'], sel=2).reshape(B, T, C)
    r = pallas_matmul(xd, params['W_r'], sel=3).reshape(B, T, C)
    g = pallas_matmul(xd, params['W_g'], sel=4).reshape(B, T, C)
    # decay LoRA stage 1 (fp32, rank padded to 128); stage 2 is fused into WKV
    wt = pallas_matmul(xd, params['dA'], sel=0, out_dtype=jnp.float32,
                       activation=jnp.tanh).reshape(B, T, 128)

    # constant masks for the WKV kernel
    ti = jnp.arange(CHUNK)
    tril = (ti[:, None] >= ti[None, :]).astype(jnp.float32)
    strict = (ti[:, None] > ti[None, :]).astype(jnp.float32)
    hid = jnp.arange(NP) // N
    bd = (hid[:, None] == hid[None, :]).astype(jnp.float32)

    tblk = _pick_tblk(T)
    y = wkv6_gn_gate(r, k, v, g, wt,
                     params['dB_pairs'], params['decay_miu'], params['u'],
                     params['gamma'], params['beta'],
                     tril, strict, bd,
                     head_size=N, group=G, eps=1e-5 * H, tblk=tblk)  # (B,T,C)

    # output projection, full-depth contraction
    return pallas_matmul(y.reshape(M, C), params['W_o']).reshape(B, T, C)


# ----------------------------------------------------------------------------
if __name__ == "__main__":
    B, T = 2, 32                      # T = 2 T-blocks worth of state carry
    embed_dim = 128
    head_size = 64
    n_blocks, layer_id = 4, 1
    n_head = embed_dim // head_size

    key = jax.random.PRNGKey(0)
    k_x, k_p = jax.random.split(key)
    params = init_params(k_p, embed_dim, n_blocks, layer_id, head_size)
    x = jax.random.normal(k_x, (B, T, embed_dim), dtype=jnp.float32)

    fwd = jax.jit(partial(time_mix_forward, n_head=n_head, head_size=head_size))
    out = fwd(params, x)
    jax.block_until_ready(out)
    assert out.shape == (B, T, embed_dim)
    assert bool(jnp.all(jnp.isfinite(out.astype(jnp.float32))))
    print("KERNEL_OK")
</pallas_src>

<mosaic_0001>
module attributes {stable_mosaic.version = 11 : i64} {
  func.func @_ddlerp_kernel(%arg0: i32, %arg1: memref<64x128xbf16, #tpu.memory_space<vmem>>, %arg2: memref<64x128xbf16, #tpu.memory_space<vmem>>, %arg3: memref<1x128xf32, #tpu.memory_space<vmem>>, %arg4: memref<128x160xbf16, #tpu.memory_space<vmem>>, %arg5: memref<5x32x128xbf16, #tpu.memory_space<vmem>>, %arg6: memref<5x1x128xf32, #tpu.memory_space<vmem>>, %arg7: memref<5x64x128xbf16, #tpu.memory_space<vmem>>) attributes {dimension_semantics = [#tpu.dimension_semantics<parallel>], iteration_bounds = array<i64: 1>, scalar_prefetch = 0 : i64, scratch_operands = 0 : i64, tpu.core_type = #tpu.core_type<tc>, window_params = [{transform_indices = @transform_0, window_bounds = array<i64: 64, 128>}, {transform_indices = @transform_1, window_bounds = array<i64: 64, 128>}, {pipeline_mode = #tpu.pipeline_mode<synchronous>, transform_indices = @transform_2, window_bounds = array<i64: 1, 128>}, {pipeline_mode = #tpu.pipeline_mode<synchronous>, transform_indices = @transform_3, window_bounds = array<i64: 128, 160>}, {pipeline_mode = #tpu.pipeline_mode<synchronous>, transform_indices = @transform_4, window_bounds = array<i64: 5, 32, 128>}, {pipeline_mode = #tpu.pipeline_mode<synchronous>, transform_indices = @transform_5, window_bounds = array<i64: 5, 1, 128>}, {transform_indices = @transform_6, window_bounds = array<i64: 5, 64, 128>}]} {
    %c0 = arith.constant 0 : index
    %c0_0 = arith.constant 0 : index
    %0 = vector.load %arg1[%c0, %c0_0] : memref<64x128xbf16, #tpu.memory_space<vmem>>, vector<64x128xbf16>
    %1 = arith.extf %0 : vector<64x128xbf16> to vector<64x128xf32>
    %c0_1 = arith.constant 0 : index
    %c0_2 = arith.constant 0 : index
    %2 = vector.load %arg2[%c0_1, %c0_2] : memref<64x128xbf16, #tpu.memory_space<vmem>>, vector<64x128xbf16>
    %3 = arith.extf %2 : vector<64x128xbf16> to vector<64x128xf32>
    %4 = arith.subf %3, %1 : vector<64x128xf32>
    %c0_3 = arith.constant 0 : index
    %c0_4 = arith.constant 0 : index
    %5 = vector.load %arg3[%c0_3, %c0_4] : memref<1x128xf32, #tpu.memory_space<vmem>>, vector<1x128xf32>
    %6 = vector.broadcast %5 : vector<1x128xf32> to vector<64x128xf32>
    %7 = arith.mulf %4, %6 : vector<64x128xf32>
    %8 = arith.addf %1, %7 : vector<64x128xf32>
    %9 = arith.truncf %8 : vector<64x128xf32> to vector<64x128xbf16>
    %c0_5 = arith.constant 0 : index
    %c0_6 = arith.constant 0 : index
    %10 = vector.load %arg4[%c0_5, %c0_6] : memref<128x160xbf16, #tpu.memory_space<vmem>>, vector<128x160xbf16>
    %cst = arith.constant dense<0.000000e+00> : vector<64x160xf32>
    %11 = tpu.matmul %9, %10, %cst {dimension_numbers = #tpu.dot_dimension_numbers<[1], [0], [0], [1], [0, 0, 1, 1], [], []>} : vector<64x128xbf16>, vector<128x160xbf16>, vector<64x160xf32> -> vector<64x160xf32>
    %12 = math.tanh %11 : vector<64x160xf32>
    %13 = vector.extract_strided_slice %12 {offsets = [0, 0], sizes = [64, 32], strides = [1, 1]} : vector<64x160xf32> to vector<64x32xf32>
    %14 = arith.truncf %13 : vector<64x32xf32> to vector<64x32xbf16>
    %c0_7 = arith.constant 0 : index
    %c0_8 = arith.constant 0 : index
    %c0_9 = arith.constant 0 : index
    %15 = vector.load %arg5[%c0_7, %c0_8, %c0_9] : memref<5x32x128xbf16, #tpu.memory_space<vmem>>, vector<1x32x128xbf16>
    %16 = vector.shape_cast %15 : vector<1x32x128xbf16> to vector<32x128xbf16>
    %cst_10 = arith.constant dense<0.000000e+00> : vector<64x128xf32>
    %17 = tpu.matmul %14, %16, %cst_10 {dimension_numbers = #tpu.dot_dimension_numbers<[1], [0], [0], [1], [0, 0, 1, 1], [], []>} : vector<64x32xbf16>, vector<32x128xbf16>, vector<64x128xf32> -> vector<64x128xf32>
    %c0_11 = arith.constant 0 : index
    %c0_12 = arith.constant 0 : index
    %c0_13 = arith.constant 0 : index
    %18 = vector.load %arg6[%c0_11, %c0_12, %c0_13] : memref<5x1x128xf32, #tpu.memory_space<vmem>>, vector<1x1x128xf32>
    %19 = vector.shape_cast %18 : vector<1x1x128xf32> to vector<1x128xf32>
    %20 = vector.broadcast %19 : vector<1x128xf32> to vector<64x128xf32>
    %21 = arith.addf %20, %17 : vector<64x128xf32>
    %22 = arith.mulf %4, %21 : vector<64x128xf32>
    %23 = arith.addf %1, %22 : vector<64x128xf32>
    %24 = arith.truncf %23 : vector<64x128xf32> to vector<64x128xbf16>
    %c0_14 = arith.constant 0 : index
    %c0_15 = arith.constant 0 : index
    %c0_16 = arith.constant 0 : index
    %25 = vector.load %arg7[%c0_14, %c0_15, %c0_16] : memref<5x64x128xbf16, #tpu.memory_space<vmem>>, vector<1x64x128xbf16>
    %26 = vector.shape_cast %25 : vector<1x64x128xbf16> to vector<64x128xbf16>
    %27 = vector.shape_cast %24 : vector<64x128xbf16> to vector<1x64x128xbf16>
    tpu.vector_store %arg7[%c0_14, %c0_15, %c0_16], %27 {strides = array<i32>} : memref<5x64x128xbf16, #tpu.memory_space<vmem>>, vector<1x64x128xbf16>,
    %28 = vector.extract_strided_slice %12 {offsets = [0, 32], sizes = [64, 32], strides = [1, 1]} : vector<64x160xf32> to vector<64x32xf32>
    %29 = arith.truncf %28 : vector<64x32xf32> to vector<64x32xbf16>
    %c1 = arith.constant 1 : index
    %c0_17 = arith.constant 0 : index
    %c0_18 = arith.constant 0 : index
    %30 = vector.load %arg5[%c1, %c0_17, %c0_18] : memref<5x32x128xbf16, #tpu.memory_space<vmem>>, vector<1x32x128xbf16>
    %31 = vector.shape_cast %30 : vector<1x32x128xbf16> to vector<32x128xbf16>
    %cst_19 = arith.constant dense<0.000000e+00> : vector<64x128xf32>
    %32 = tpu.matmul %29, %31, %cst_19 {dimension_numbers = #tpu.dot_dimension_numbers<[1], [0], [0], [1], [0, 0, 1, 1], [], []>} : vector<64x32xbf16>, vector<32x128xbf16>, vector<64x128xf32> -> vector<64x128xf32>
    %c1_20 = arith.constant 1 : index
    %c0_21 = arith.constant 0 : index
    %c0_22 = arith.constant 0 : index
    %33 = vector.load %arg6[%c1_20, %c0_21, %c0_22] : memref<5x1x128xf32, #tpu.memory_space<vmem>>, vector<1x1x128xf32>
    %34 = vector.shape_cast %33 : vector<1x1x128xf32> to vector<1x128xf32>
    %35 = vector.broadcast %34 : vector<1x128xf32> to vector<64x128xf32>
    %36 = arith.addf %35, %32 : vector<64x128xf32>
    %37 = arith.mulf %4, %36 : vector<64x128xf32>
    %38 = arith.addf %1, %37 : vector<64x128xf32>
    %39 = arith.truncf %38 : vector<64x128xf32> to vector<64x128xbf16>
    %c1_23 = arith.constant 1 : index
    %c0_24 = arith.constant 0 : index
    %c0_25 = arith.constant 0 : index
    %40 = vector.load %arg7[%c1_23, %c0_24, %c0_25] : memref<5x64x128xbf16, #tpu.memory_space<vmem>>, vector<1x64x128xbf16>
    %41 = vector.shape_cast %40 : vector<1x64x128xbf16> to vector<64x128xbf16>
    %42 = vector.shape_cast %39 : vector<64x128xbf16> to vector<1x64x128xbf16>
    tpu.vector_store %arg7[%c1_23, %c0_24, %c0_25], %42 {strides = array<i32>} : memref<5x64x128xbf16, #tpu.memory_space<vmem>>, vector<1x64x128xbf16>,
    %43 = vector.extract_strided_slice %12 {offsets = [0, 64], sizes = [64, 32], strides = [1, 1]} : vector<64x160xf32> to vector<64x32xf32>
    %44 = arith.truncf %43 : vector<64x32xf32> to vector<64x32xbf16>
    %c2 = arith.constant 2 : index
    %c0_26 = arith.constant 0 : index
    %c0_27 = arith.constant 0 : index
    %45 = vector.load %arg5[%c2, %c0_26, %c0_27] : memref<5x32x128xbf16, #tpu.memory_space<vmem>>, vector<1x32x128xbf16>
    %46 = vector.shape_cast %45 : vector<1x32x128xbf16> to vector<32x128xbf16>
    %cst_28 = arith.constant dense<0.000000e+00> : vector<64x128xf32>
    %47 = tpu.matmul %44, %46, %cst_28 {dimension_numbers = #tpu.dot_dimension_numbers<[1], [0], [0], [1], [0, 0, 1, 1], [], []>} : vector<64x32xbf16>, vector<32x128xbf16>, vector<64x128xf32> -> vector<64x128xf32>
    %c2_29 = arith.constant 2 : index
    %c0_30 = arith.constant 0 : index
    %c0_31 = arith.constant 0 : index
    %48 = vector.load %arg6[%c2_29, %c0_30, %c0_31] : memref<5x1x128xf32, #tpu.memory_space<vmem>>, vector<1x1x128xf32>
    %49 = vector.shape_cast %48 : vector<1x1x128xf32> to vector<1x128xf32>
    %50 = vector.broadcast %49 : vector<1x128xf32> to vector<64x128xf32>
    %51 = arith.addf %50, %47 : vector<64x128xf32>
    %52 = arith.mulf %4, %51 : vector<64x128xf32>
    %53 = arith.addf %1, %52 : vector<64x128xf32>
    %54 = arith.truncf %53 : vector<64x128xf32> to vector<64x128xbf16>
    %c2_32 = arith.constant 2 : index
    %c0_33 = arith.constant 0 : index
    %c0_34 = arith.constant 0 : index
    %55 = vector.load %arg7[%c2_32, %c0_33, %c0_34] : memref<5x64x128xbf16, #tpu.memory_space<vmem>>, vector<1x64x128xbf16>
    %56 = vector.shape_cast %55 : vector<1x64x128xbf16> to vector<64x128xbf16>
    %57 = vector.shape_cast %54 : vector<64x128xbf16> to vector<1x64x128xbf16>
    tpu.vector_store %arg7[%c2_32, %c0_33, %c0_34], %57 {strides = array<i32>} : memref<5x64x128xbf16, #tpu.memory_space<vmem>>, vector<1x64x128xbf16>,
    %58 = vector.extract_strided_slice %12 {offsets = [0, 96], sizes = [64, 32], strides = [1, 1]} : vector<64x160xf32> to vector<64x32xf32>
    %59 = arith.truncf %58 : vector<64x32xf32> to vector<64x32xbf16>
    %c3 = arith.constant 3 : index
    %c0_35 = arith.constant 0 : index
    %c0_36 = arith.constant 0 : index
    %60 = vector.load %arg5[%c3, %c0_35, %c0_36] : memref<5x32x128xbf16, #tpu.memory_space<vmem>>, vector<1x32x128xbf16>
    %61 = vector.shape_cast %60 : vector<1x32x128xbf16> to vector<32x128xbf16>
    %cst_37 = arith.constant dense<0.000000e+00> : vector<64x128xf32>
    %62 = tpu.matmul %59, %61, %cst_37 {dimension_numbers = #tpu.dot_dimension_numbers<[1], [0], [0], [1], [0, 0, 1, 1], [], []>} : vector<64x32xbf16>, vector<32x128xbf16>, vector<64x128xf32> -> vector<64x128xf32>
    %c3_38 = arith.constant 3 : index
    %c0_39 = arith.constant 0 : index
    %c0_40 = arith.constant 0 : index
    %63 = vector.load %arg6[%c3_38, %c0_39, %c0_40] : memref<5x1x128xf32, #tpu.memory_space<vmem>>, vector<1x1x128xf32>
    %64 = vector.shape_cast %63 : vector<1x1x128xf32> to vector<1x128xf32>
    %65 = vector.broadcast %64 : vector<1x128xf32> to vector<64x128xf32>
    %66 = arith.addf %65, %62 : vector<64x128xf32>
    %67 = arith.mulf %4, %66 : vector<64x128xf32>
    %68 = arith.addf %1, %67 : vector<64x128xf32>
    %69 = arith.truncf %68 : vector<64x128xf32> to vector<64x128xbf16>
    %c3_41 = arith.constant 3 : index
    %c0_42 = arith.constant 0 : index
    %c0_43 = arith.constant 0 : index
    %70 = vector.load %arg7[%c3_41, %c0_42, %c0_43] : memref<5x64x128xbf16, #tpu.memory_space<vmem>>, vector<1x64x128xbf16>
    %71 = vector.shape_cast %70 : vector<1x64x128xbf16> to vector<64x128xbf16>
    %72 = vector.shape_cast %69 : vector<64x128xbf16> to vector<1x64x128xbf16>
    tpu.vector_store %arg7[%c3_41, %c0_42, %c0_43], %72 {strides = array<i32>} : memref<5x64x128xbf16, #tpu.memory_space<vmem>>, vector<1x64x128xbf16>,
    %73 = vector.extract_strided_slice %12 {offsets = [0, 128], sizes = [64, 32], strides = [1, 1]} : vector<64x160xf32> to vector<64x32xf32>
    %74 = arith.truncf %73 : vector<64x32xf32> to vector<64x32xbf16>
    %c4 = arith.constant 4 : index
    %c0_44 = arith.constant 0 : index
    %c0_45 = arith.constant 0 : index
    %75 = vector.load %arg5[%c4, %c0_44, %c0_45] : memref<5x32x128xbf16, #tpu.memory_space<vmem>>, vector<1x32x128xbf16>
    %76 = vector.shape_cast %75 : vector<1x32x128xbf16> to vector<32x128xbf16>
    %cst_46 = arith.constant dense<0.000000e+00> : vector<64x128xf32>
    %77 = tpu.matmul %74, %76, %cst_46 {dimension_numbers = #tpu.dot_dimension_numbers<[1], [0], [0], [1], [0, 0, 1, 1], [], []>} : vector<64x32xbf16>, vector<32x128xbf16>, vector<64x128xf32> -> vector<64x128xf32>
    %c4_47 = arith.constant 4 : index
    %c0_48 = arith.constant 0 : index
    %c0_49 = arith.constant 0 : index
    %78 = vector.load %arg6[%c4_47, %c0_48, %c0_49] : memref<5x1x128xf32, #tpu.memory_space<vmem>>, vector<1x1x128xf32>
    %79 = vector.shape_cast %78 : vector<1x1x128xf32> to vector<1x128xf32>
    %80 = vector.broadcast %79 : vector<1x128xf32> to vector<64x128xf32>
    %81 = arith.addf %80, %77 : vector<64x128xf32>
    %82 = arith.mulf %4, %81 : vector<64x128xf32>
    %83 = arith.addf %1, %82 : vector<64x128xf32>
    %84 = arith.truncf %83 : vector<64x128xf32> to vector<64x128xbf16>
    %c4_50 = arith.constant 4 : index
    %c0_51 = arith.constant 0 : index
    %c0_52 = arith.constant 0 : index
    %85 = vector.load %arg7[%c4_50, %c0_51, %c0_52] : memref<5x64x128xbf16, #tpu.memory_space<vmem>>, vector<1x64x128xbf16>
    %86 = vector.shape_cast %85 : vector<1x64x128xbf16> to vector<64x128xbf16>
    %87 = vector.shape_cast %84 : vector<64x128xbf16> to vector<1x64x128xbf16>
    tpu.vector_store %arg7[%c4_50, %c0_51, %c0_52], %87 {strides = array<i32>} : memref<5x64x128xbf16, #tpu.memory_space<vmem>>, vector<1x64x128xbf16>,
    return
  }
  func.func @transform_0(%arg0: i32) -> (i32, i32) {
    %c0_i32 = arith.constant 0 : i32
    %c0_i32_0 = arith.constant 0 : i32
    return %arg0, %c0_i32 : i32, i32
  }
  func.func @transform_1(%arg0: i32) -> (i32, i32) {
    %c0_i32 = arith.constant 0 : i32
    %c0_i32_0 = arith.constant 0 : i32
    return %arg0, %c0_i32 : i32, i32
  }
  func.func @transform_2(%arg0: i32) -> (i32, i32) {
    %c0_i32 = arith.constant 0 : i32
    %c0_i32_0 = arith.constant 0 : i32
    %c0_i32_1 = arith.constant 0 : i32
    return %c0_i32, %c0_i32_0 : i32, i32
  }
  func.func @transform_3(%arg0: i32) -> (i32, i32) {
    %c0_i32 = arith.constant 0 : i32
    %c0_i32_0 = arith.constant 0 : i32
    %c0_i32_1 = arith.constant 0 : i32
    return %c0_i32, %c0_i32_0 : i32, i32
  }
  func.func @transform_4(%arg0: i32) -> (i32, i32, i32) {
    %c0_i32 = arith.constant 0 : i32
    %c0_i32_0 = arith.constant 0 : i32
    %c0_i32_1 = arith.constant 0 : i32
    %c0_i32_2 = arith.constant 0 : i32
    return %c0_i32, %c0_i32_0, %c0_i32_1 : i32, i32, i32
  }
  func.func @transform_5(%arg0: i32) -> (i32, i32, i32) {
    %c0_i32 = arith.constant 0 : i32
    %c0_i32_0 = arith.constant 0 : i32
    %c0_i32_1 = arith.constant 0 : i32
    %c0_i32_2 = arith.constant 0 : i32
    return %c0_i32, %c0_i32_0, %c0_i32_1 : i32, i32, i32
  }
  func.func @transform_6(%arg0: i32) -> (i32, i32, i32) {
    %c0_i32 = arith.constant 0 : i32
    %c0_i32_0 = arith.constant 0 : i32
    %c0_i32_1 = arith.constant 0 : i32
    return %c0_i32, %arg0, %c0_i32_0 : i32, i32, i32
  }
}

module attributes {stable_mosaic.version = 11 : i64} {
  func.func @_acc_matmul_kernel(%arg0: i32, %arg1: i32, %arg2: i32, %arg3: memref<1x64x128xbf16, #tpu.memory_space<vmem>>, %arg4: memref<128x128xbf16, #tpu.memory_space<vmem>>, %arg5: memref<64x128xf32, #tpu.memory_space<vmem>>, %arg6: memref<64x128xf32, #tpu.memory_space<vmem>>) attributes {dimension_semantics = [#tpu.dimension_semantics<parallel>, #tpu.dimension_semantics<parallel>, #tpu.dimension_semantics<arbitrary>], iteration_bounds = array<i64: 1, 1, 1>, scalar_prefetch = 0 : i64, scratch_operands = 1 : i64, tpu.core_type = #tpu.core_type<tc>, window_params = [{transform_indices = @transform_0, window_bounds = array<i64: 1, 64, 128>}, {transform_indices = @transform_1, window_bounds = array<i64: 128, 128>}, {transform_indices = @transform_2, window_bounds = array<i64: 64, 128>}]} {
    %c0_i32 = arith.constant 0 : i32
    %0 = arith.cmpi eq, %arg2, %c0_i32 : i32
    %1 = arith.extui %0 : i1 to i32
    %c0_i32_0 = arith.constant 0 : i32
    %2 = arith.cmpi ne, %1, %c0_i32_0 : i32
    scf.if %2 {
      %cst_11 = arith.constant 0.000000e+00 : f32
      %13 = vector.broadcast %cst_11 : f32 to vector<64x128xf32>
      %c0_12 = arith.constant 0 : index
      %c0_13 = arith.constant 0 : index
      %14 = vector.load %arg6[%c0_12, %c0_13] : memref<64x128xf32, #tpu.memory_space<vmem>>, vector<64x128xf32>
      tpu.vector_store %arg6[%c0_12, %c0_13], %13 {strides = array<i32>} : memref<64x128xf32, #tpu.memory_space<vmem>>, vector<64x128xf32>,
    } else {
    }
    %c0 = arith.constant 0 : index
    %c0_1 = arith.constant 0 : index
    %3 = vector.load %arg6[%c0, %c0_1] : memref<64x128xf32, #tpu.memory_space<vmem>>, vector<64x128xf32>
    %c0_2 = arith.constant 0 : index
    %c0_3 = arith.constant 0 : index
    %c0_4 = arith.constant 0 : index
    %4 = vector.load %arg3[%c0_2, %c0_3, %c0_4] : memref<1x64x128xbf16, #tpu.memory_space<vmem>>, vector<1x64x128xbf16>
    %5 = vector.shape_cast %4 : vector<1x64x128xbf16> to vector<64x128xbf16>
    %c0_5 = arith.constant 0 : index
    %c0_6 = arith.constant 0 : index
    %6 = vector.load %arg4[%c0_5, %c0_6] : memref<128x128xbf16, #tpu.memory_space<vmem>>, vector<128x128xbf16>
    %cst = arith.constant dense<0.000000e+00> : vector<64x128xf32>
    %7 = tpu.matmul %5, %6, %cst {dimension_numbers = #tpu.dot_dimension_numbers<[1], [0], [0], [1], [0, 0, 1, 1], [], []>} : vector<64x128xbf16>, vector<128x128xbf16>, vector<64x128xf32> -> vector<64x128xf32>
    %8 = arith.addf %3, %7 : vector<64x128xf32>
    %c0_7 = arith.constant 0 : index
    %c0_8 = arith.constant 0 : index
    %9 = vector.load %arg6[%c0_7, %c0_8] : memref<64x128xf32, #tpu.memory_space<vmem>>, vector<64x128xf32>
    tpu.vector_store %arg6[%c0_7, %c0_8], %8 {strides = array<i32>} : memref<64x128xf32, #tpu.memory_space<vmem>>, vector<64x128xf32>,
    %c0_i32_9 = arith.constant 0 : i32
    %10 = arith.cmpi eq, %arg2, %c0_i32_9 : i32
    %11 = arith.extui %10 : i1 to i32
    %c0_i32_10 = arith.constant 0 : i32
    %12 = arith.cmpi ne, %11, %c0_i32_10 : i32
    scf.if %12 {
      %c0_11 = arith.constant 0 : index
      %c0_12 = arith.constant 0 : index
      %13 = vector.load %arg6[%c0_11, %c0_12] : memref<64x128xf32, #tpu.memory_space<vmem>>, vector<64x128xf32>
      %14 = math.tanh %13 : vector<64x128xf32>
      %c0_13 = arith.constant 0 : index
      %c0_14 = arith.constant 0 : index
      %15 = vector.load %arg5[%c0_13, %c0_14] : memref<64x128xf32, #tpu.memory_space<vmem>>, vector<64x128xf32>
      tpu.vector_store %arg5[%c0_13, %c0_14], %14 {strides = array<i32>} : memref<64x128xf32, #tpu.memory_space<vmem>>, vector<64x128xf32>,
    } else {
    }
    return
  }
  func.func @transform_0(%arg0: i32, %arg1: i32, %arg2: i32) -> (i32, i32, i32) {
    %c0_i32 = arith.constant 0 : i32
    %c0_i32_0 = arith.constant 0 : i32
    return %c0_i32, %arg0, %arg2 : i32, i32, i32
  }
  func.func @transform_1(%arg0: i32, %arg1: i32, %arg2: i32) -> (i32, i32) {
    %c0_i32 = arith.constant 0 : i32
    return %arg2, %arg1 : i32, i32
  }
  func.func @transform_2(%arg0: i32, %arg1: i32, %arg2: i32) -> (i32, i32) {
    %c0_i32 = arith.constant 0 : i32
    return %arg0, %arg1 : i32, i32
  }
}

module attributes {stable_mosaic.version = 11 : i64} {
  func.func @_acc_matmul_kernel(%arg0: i32, %arg1: i32, %arg2: i32, %arg3: memref<1x64x128xbf16, #tpu.memory_space<vmem>>, %arg4: memref<128x128xbf16, #tpu.memory_space<vmem>>, %arg5: memref<64x128xbf16, #tpu.memory_space<vmem>>, %arg6: memref<64x128xf32, #tpu.memory_space<vmem>>) attributes {dimension_semantics = [#tpu.dimension_semantics<parallel>, #tpu.dimension_semantics<parallel>, #tpu.dimension_semantics<arbitrary>], iteration_bounds = array<i64: 1, 1, 1>, scalar_prefetch = 0 : i64, scratch_operands = 1 : i64, tpu.core_type = #tpu.core_type<tc>, window_params = [{transform_indices = @transform_0, window_bounds = array<i64: 1, 64, 128>}, {transform_indices = @transform_1, window_bounds = array<i64: 128, 128>}, {transform_indices = @transform_2, window_bounds = array<i64: 64, 128>}]} {
    %c0_i32 = arith.constant 0 : i32
    %0 = arith.cmpi eq, %arg2, %c0_i32 : i32
    %1 = arith.extui %0 : i1 to i32
    %c0_i32_0 = arith.constant 0 : i32
    %2 = arith.cmpi ne, %1, %c0_i32_0 : i32
    scf.if %2 {
      %cst_11 = arith.constant 0.000000e+00 : f32
      %13 = vector.broadcast %cst_11 : f32 to vector<64x128xf32>
      %c0_12 = arith.constant 0 : index
      %c0_13 = arith.constant 0 : index
      %14 = vector.load %arg6[%c0_12, %c0_13] : memref<64x128xf32, #tpu.memory_space<vmem>>, vector<64x128xf32>
      tpu.vector_store %arg6[%c0_12, %c0_13], %13 {strides = array<i32>} : memref<64x128xf32, #tpu.memory_space<vmem>>, vector<64x128xf32>,
    } else {
    }
    %c0 = arith.constant 0 : index
    %c0_1 = arith.constant 0 : index
    %3 = vector.load %arg6[%c0, %c0_1] : memref<64x128xf32, #tpu.memory_space<vmem>>, vector<64x128xf32>
    %c0_2 = arith.constant 0 : index
    %c0_3 = arith.constant 0 : index
    %c0_4 = arith.constant 0 : index
    %4 = vector.load %arg3[%c0_2, %c0_3, %c0_4] : memref<1x64x128xbf16, #tpu.memory_space<vmem>>, vector<1x64x128xbf16>
    %5 = vector.shape_cast %4 : vector<1x64x128xbf16> to vector<64x128xbf16>
    %c0_5 = arith.constant 0 : index
    %c0_6 = arith.constant 0 : index
    %6 = vector.load %arg4[%c0_5, %c0_6] : memref<128x128xbf16, #tpu.memory_space<vmem>>, vector<128x128xbf16>
    %cst = arith.constant dense<0.000000e+00> : vector<64x128xf32>
    %7 = tpu.matmul %5, %6, %cst {dimension_numbers = #tpu.dot_dimension_numbers<[1], [0], [0], [1], [0, 0, 1, 1], [], []>} : vector<64x128xbf16>, vector<128x128xbf16>, vector<64x128xf32> -> vector<64x128xf32>
    %8 = arith.addf %3, %7 : vector<64x128xf32>
    %c0_7 = arith.constant 0 : index
    %c0_8 = arith.constant 0 : index
    %9 = vector.load %arg6[%c0_7, %c0_8] : memref<64x128xf32, #tpu.memory_space<vmem>>, vector<64x128xf32>
    tpu.vector_store %arg6[%c0_7, %c0_8], %8 {strides = array<i32>} : memref<64x128xf32, #tpu.memory_space<vmem>>, vector<64x128xf32>,
    %c0_i32_9 = arith.constant 0 : i32
    %10 = arith.cmpi eq, %arg2, %c0_i32_9 : i32
    %11 = arith.extui %10 : i1 to i32
    %c0_i32_10 = arith.constant 0 : i32
    %12 = arith.cmpi ne, %11, %c0_i32_10 : i32
    scf.if %12 {
      %c0_11 = arith.constant 0 : index
      %c0_12 = arith.constant 0 : index
      %13 = vector.load %arg6[%c0_11, %c0_12] : memref<64x128xf32, #tpu.memory_space<vmem>>, vector<64x128xf32>
      %14 = arith.truncf %13 : vector<64x128xf32> to vector<64x128xbf16>
      %c0_13 = arith.constant 0 : index
      %c0_14 = arith.constant 0 : index
      %15 = vector.load %arg5[%c0_13, %c0_14] : memref<64x128xbf16, #tpu.memory_space<vmem>>, vector<64x128xbf16>
      tpu.vector_store %arg5[%c0_13, %c0_14], %14 {strides = array<i32>} : memref<64x128xbf16, #tpu.memory_space<vmem>>, vector<64x128xbf16>,
    } else {
    }
    return
  }
  func.func @transform_0(%arg0: i32, %arg1: i32, %arg2: i32) -> (i32, i32, i32) {
    %c3_i32 = arith.constant 3 : i32
    %c0_i32 = arith.constant 0 : i32
    return %c3_i32, %arg0, %arg2 : i32, i32, i32
  }
  func.func @transform_1(%arg0: i32, %arg1: i32, %arg2: i32) -> (i32, i32) {
    %c0_i32 = arith.constant 0 : i32
    return %arg2, %arg1 : i32, i32
  }
  func.func @transform_2(%arg0: i32, %arg1: i32, %arg2: i32) -> (i32, i32) {
    %c0_i32 = arith.constant 0 : i32
    return %arg0, %arg1 : i32, i32
  }
}

module attributes {stable_mosaic.version = 11 : i64} {
  func.func @_acc_matmul_kernel(%arg0: i32, %arg1: i32, %arg2: i32, %arg3: memref<1x64x128xbf16, #tpu.memory_space<vmem>>, %arg4: memref<128x128xbf16, #tpu.memory_space<vmem>>, %arg5: memref<64x128xbf16, #tpu.memory_space<vmem>>, %arg6: memref<64x128xf32, #tpu.memory_space<vmem>>) attributes {dimension_semantics = [#tpu.dimension_semantics<parallel>, #tpu.dimension_semantics<parallel>, #tpu.dimension_semantics<arbitrary>], iteration_bounds = array<i64: 1, 1, 1>, scalar_prefetch = 0 : i64, scratch_operands = 1 : i64, tpu.core_type = #tpu.core_type<tc>, window_params = [{transform_indices = @transform_0, window_bounds = array<i64: 1, 64, 128>}, {transform_indices = @transform_1, window_bounds = array<i64: 128, 128>}, {transform_indices = @transform_2, window_bounds = array<i64: 64, 128>}]} {
    %c0_i32 = arith.constant 0 : i32
    %0 = arith.cmpi eq, %arg2, %c0_i32 : i32
    %1 = arith.extui %0 : i1 to i32
    %c0_i32_0 = arith.constant 0 : i32
    %2 = arith.cmpi ne, %1, %c0_i32_0 : i32
    scf.if %2 {
      %cst_11 = arith.constant 0.000000e+00 : f32
      %13 = vector.broadcast %cst_11 : f32 to vector<64x128xf32>
      %c0_12 = arith.constant 0 : index
      %c0_13 = arith.constant 0 : index
      %14 = vector.load %arg6[%c0_12, %c0_13] : memref<64x128xf32, #tpu.memory_space<vmem>>, vector<64x128xf32>
      tpu.vector_store %arg6[%c0_12, %c0_13], %13 {strides = array<i32>} : memref<64x128xf32, #tpu.memory_space<vmem>>, vector<64x128xf32>,
    } else {
    }
    %c0 = arith.constant 0 : index
    %c0_1 = arith.constant 0 : index
    %3 = vector.load %arg6[%c0, %c0_1] : memref<64x128xf32, #tpu.memory_space<vmem>>, vector<64x128xf32>
    %c0_2 = arith.constant 0 : index
    %c0_3 = arith.constant 0 : index
    %c0_4 = arith.constant 0 : index
    %4 = vector.load %arg3[%c0_2, %c0_3, %c0_4] : memref<1x64x128xbf16, #tpu.memory_space<vmem>>, vector<1x64x128xbf16>
    %5 = vector.shape_cast %4 : vector<1x64x128xbf16> to vector<64x128xbf16>
    %c0_5 = arith.constant 0 : index
    %c0_6 = arith.constant 0 : index
    %6 = vector.load %arg4[%c0_5, %c0_6] : memref<128x128xbf16, #tpu.memory_space<vmem>>, vector<128x128xbf16>
    %cst = arith.constant dense<0.000000e+00> : vector<64x128xf32>
    %7 = tpu.matmul %5, %6, %cst {dimension_numbers = #tpu.dot_dimension_numbers<[1], [0], [0], [1], [0, 0, 1, 1], [], []>} : vector<64x128xbf16>, vector<128x128xbf16>, vector<64x128xf32> -> vector<64x128xf32>
    %8 = arith.addf %3, %7 : vector<64x128xf32>
    %c0_7 = arith.constant 0 : index
    %c0_8 = arith.constant 0 : index
    %9 = vector.load %arg6[%c0_7, %c0_8] : memref<64x128xf32, #tpu.memory_space<vmem>>, vector<64x128xf32>
    tpu.vector_store %arg6[%c0_7, %c0_8], %8 {strides = array<i32>} : memref<64x128xf32, #tpu.memory_space<vmem>>, vector<64x128xf32>,
    %c0_i32_9 = arith.constant 0 : i32
    %10 = arith.cmpi eq, %arg2, %c0_i32_9 : i32
    %11 = arith.extui %10 : i1 to i32
    %c0_i32_10 = arith.constant 0 : i32
    %12 = arith.cmpi ne, %11, %c0_i32_10 : i32
    scf.if %12 {
      %c0_11 = arith.constant 0 : index
      %c0_12 = arith.constant 0 : index
      %13 = vector.load %arg6[%c0_11, %c0_12] : memref<64x128xf32, #tpu.memory_space<vmem>>, vector<64x128xf32>
      %14 = arith.truncf %13 : vector<64x128xf32> to vector<64x128xbf16>
      %c0_13 = arith.constant 0 : index
      %c0_14 = arith.constant 0 : index
      %15 = vector.load %arg5[%c0_13, %c0_14] : memref<64x128xbf16, #tpu.memory_space<vmem>>, vector<64x128xbf16>
      tpu.vector_store %arg5[%c0_13, %c0_14], %14 {strides = array<i32>} : memref<64x128xbf16, #tpu.memory_space<vmem>>, vector<64x128xbf16>,
    } else {
    }
    return
  }
  func.func @transform_0(%arg0: i32, %arg1: i32, %arg2: i32) -> (i32, i32, i32) {
    %c1_i32 = arith.constant 1 : i32
    %c0_i32 = arith.constant 0 : i32
    return %c1_i32, %arg0, %arg2 : i32, i32, i32
  }
  func.func @transform_1(%arg0: i32, %arg1: i32, %arg2: i32) -> (i32, i32) {
    %c0_i32 = arith.constant 0 : i32
    return %arg2, %arg1 : i32, i32
  }
  func.func @transform_2(%arg0: i32, %arg1: i32, %arg2: i32) -> (i32, i32) {
    %c0_i32 = arith.constant 0 : i32
    return %arg0, %arg1 : i32, i32
  }
}

module attributes {stable_mosaic.version = 11 : i64} {
  func.func @_acc_matmul_kernel(%arg0: i32, %arg1: i32, %arg2: i32, %arg3: memref<1x64x128xbf16, #tpu.memory_space<vmem>>, %arg4: memref<128x128xbf16, #tpu.memory_space<vmem>>, %arg5: memref<64x128xbf16, #tpu.memory_space<vmem>>, %arg6: memref<64x128xf32, #tpu.memory_space<vmem>>) attributes {dimension_semantics = [#tpu.dimension_semantics<parallel>, #tpu.dimension_semantics<parallel>, #tpu.dimension_semantics<arbitrary>], iteration_bounds = array<i64: 1, 1, 1>, scalar_prefetch = 0 : i64, scratch_operands = 1 : i64, tpu.core_type = #tpu.core_type<tc>, window_params = [{transform_indices = @transform_0, window_bounds = array<i64: 1, 64, 128>}, {transform_indices = @transform_1, window_bounds = array<i64: 128, 128>}, {transform_indices = @transform_2, window_bounds = array<i64: 64, 128>}]} {
    %c0_i32 = arith.constant 0 : i32
    %0 = arith.cmpi eq, %arg2, %c0_i32 : i32
    %1 = arith.extui %0 : i1 to i32
    %c0_i32_0 = arith.constant 0 : i32
    %2 = arith.cmpi ne, %1, %c0_i32_0 : i32
    scf.if %2 {
      %cst_11 = arith.constant 0.000000e+00 : f32
      %13 = vector.broadcast %cst_11 : f32 to vector<64x128xf32>
      %c0_12 = arith.constant 0 : index
      %c0_13 = arith.constant 0 : index
      %14 = vector.load %arg6[%c0_12, %c0_13] : memref<64x128xf32, #tpu.memory_space<vmem>>, vector<64x128xf32>
      tpu.vector_store %arg6[%c0_12, %c0_13], %13 {strides = array<i32>} : memref<64x128xf32, #tpu.memory_space<vmem>>, vector<64x128xf32>,
    } else {
    }
    %c0 = arith.constant 0 : index
    %c0_1 = arith.constant 0 : index
    %3 = vector.load %arg6[%c0, %c0_1] : memref<64x128xf32, #tpu.memory_space<vmem>>, vector<64x128xf32>
    %c0_2 = arith.constant 0 : index
    %c0_3 = arith.constant 0 : index
    %c0_4 = arith.constant 0 : index
    %4 = vector.load %arg3[%c0_2, %c0_3, %c0_4] : memref<1x64x128xbf16, #tpu.memory_space<vmem>>, vector<1x64x128xbf16>
    %5 = vector.shape_cast %4 : vector<1x64x128xbf16> to vector<64x128xbf16>
    %c0_5 = arith.constant 0 : index
    %c0_6 = arith.constant 0 : index
    %6 = vector.load %arg4[%c0_5, %c0_6] : memref<128x128xbf16, #tpu.memory_space<vmem>>, vector<128x128xbf16>
    %cst = arith.constant dense<0.000000e+00> : vector<64x128xf32>
    %7 = tpu.matmul %5, %6, %cst {dimension_numbers = #tpu.dot_dimension_numbers<[1], [0], [0], [1], [0, 0, 1, 1], [], []>} : vector<64x128xbf16>, vector<128x128xbf16>, vector<64x128xf32> -> vector<64x128xf32>
    %8 = arith.addf %3, %7 : vector<64x128xf32>
    %c0_7 = arith.constant 0 : index
    %c0_8 = arith.constant 0 : index
    %9 = vector.load %arg6[%c0_7, %c0_8] : memref<64x128xf32, #tpu.memory_space<vmem>>, vector<64x128xf32>
    tpu.vector_store %arg6[%c0_7, %c0_8], %8 {strides = array<i32>} : memref<64x128xf32, #tpu.memory_space<vmem>>, vector<64x128xf32>,
    %c0_i32_9 = arith.constant 0 : i32
    %10 = arith.cmpi eq, %arg2, %c0_i32_9 : i32
    %11 = arith.extui %10 : i1 to i32
    %c0_i32_10 = arith.constant 0 : i32
    %12 = arith.cmpi ne, %11, %c0_i32_10 : i32
    scf.if %12 {
      %c0_11 = arith.constant 0 : index
      %c0_12 = arith.constant 0 : index
      %13 = vector.load %arg6[%c0_11, %c0_12] : memref<64x128xf32, #tpu.memory_space<vmem>>, vector<64x128xf32>
      %14 = arith.truncf %13 : vector<64x128xf32> to vector<64x128xbf16>
      %c0_13 = arith.constant 0 : index
      %c0_14 = arith.constant 0 : index
      %15 = vector.load %arg5[%c0_13, %c0_14] : memref<64x128xbf16, #tpu.memory_space<vmem>>, vector<64x128xbf16>
      tpu.vector_store %arg5[%c0_13, %c0_14], %14 {strides = array<i32>} : memref<64x128xbf16, #tpu.memory_space<vmem>>, vector<64x128xbf16>,
    } else {
    }
    return
  }
  func.func @transform_0(%arg0: i32, %arg1: i32, %arg2: i32) -> (i32, i32, i32) {
    %c4_i32 = arith.constant 4 : i32
    %c0_i32 = arith.constant 0 : i32
    return %c4_i32, %arg0, %arg2 : i32, i32, i32
  }
  func.func @transform_1(%arg0: i32, %arg1: i32, %arg2: i32) -> (i32, i32) {
    %c0_i32 = arith.constant 0 : i32
    return %arg2, %arg1 : i32, i32
  }
  func.func @transform_2(%arg0: i32, %arg1: i32, %arg2: i32) -> (i32, i32) {
    %c0_i32 = arith.constant 0 : i32
    return %arg0, %arg1 : i32, i32
  }
}

module attributes {stable_mosaic.version = 11 : i64} {
  func.func @_acc_matmul_kernel(%arg0: i32, %arg1: i32, %arg2: i32, %arg3: memref<1x64x128xbf16, #tpu.memory_space<vmem>>, %arg4: memref<128x128xbf16, #tpu.memory_space<vmem>>, %arg5: memref<64x128xbf16, #tpu.memory_space<vmem>>, %arg6: memref<64x128xf32, #tpu.memory_space<vmem>>) attributes {dimension_semantics = [#tpu.dimension_semantics<parallel>, #tpu.dimension_semantics<parallel>, #tpu.dimension_semantics<arbitrary>], iteration_bounds = array<i64: 1, 1, 1>, scalar_prefetch = 0 : i64, scratch_operands = 1 : i64, tpu.core_type = #tpu.core_type<tc>, window_params = [{transform_indices = @transform_0, window_bounds = array<i64: 1, 64, 128>}, {transform_indices = @transform_1, window_bounds = array<i64: 128, 128>}, {transform_indices = @transform_2, window_bounds = array<i64: 64, 128>}]} {
    %c0_i32 = arith.constant 0 : i32
    %0 = arith.cmpi eq, %arg2, %c0_i32 : i32
    %1 = arith.extui %0 : i1 to i32
    %c0_i32_0 = arith.constant 0 : i32
    %2 = arith.cmpi ne, %1, %c0_i32_0 : i32
    scf.if %2 {
      %cst_11 = arith.constant 0.000000e+00 : f32
      %13 = vector.broadcast %cst_11 : f32 to vector<64x128xf32>
      %c0_12 = arith.constant 0 : index
      %c0_13 = arith.constant 0 : index
      %14 = vector.load %arg6[%c0_12, %c0_13] : memref<64x128xf32, #tpu.memory_space<vmem>>, vector<64x128xf32>
      tpu.vector_store %arg6[%c0_12, %c0_13], %13 {strides = array<i32>} : memref<64x128xf32, #tpu.memory_space<vmem>>, vector<64x128xf32>,
    } else {
    }
    %c0 = arith.constant 0 : index
    %c0_1 = arith.constant 0 : index
    %3 = vector.load %arg6[%c0, %c0_1] : memref<64x128xf32, #tpu.memory_space<vmem>>, vector<64x128xf32>
    %c0_2 = arith.constant 0 : index
    %c0_3 = arith.constant 0 : index
    %c0_4 = arith.constant 0 : index
    %4 = vector.load %arg3[%c0_2, %c0_3, %c0_4] : memref<1x64x128xbf16, #tpu.memory_space<vmem>>, vector<1x64x128xbf16>
    %5 = vector.shape_cast %4 : vector<1x64x128xbf16> to vector<64x128xbf16>
    %c0_5 = arith.constant 0 : index
    %c0_6 = arith.constant 0 : index
    %6 = vector.load %arg4[%c0_5, %c0_6] : memref<128x128xbf16, #tpu.memory_space<vmem>>, vector<128x128xbf16>
    %cst = arith.constant dense<0.000000e+00> : vector<64x128xf32>
    %7 = tpu.matmul %5, %6, %cst {dimension_numbers = #tpu.dot_dimension_numbers<[1], [0], [0], [1], [0, 0, 1, 1], [], []>} : vector<64x128xbf16>, vector<128x128xbf16>, vector<64x128xf32> -> vector<64x128xf32>
    %8 = arith.addf %3, %7 : vector<64x128xf32>
    %c0_7 = arith.constant 0 : index
    %c0_8 = arith.constant 0 : index
    %9 = vector.load %arg6[%c0_7, %c0_8] : memref<64x128xf32, #tpu.memory_space<vmem>>, vector<64x128xf32>
    tpu.vector_store %arg6[%c0_7, %c0_8], %8 {strides = array<i32>} : memref<64x128xf32, #tpu.memory_space<vmem>>, vector<64x128xf32>,
    %c0_i32_9 = arith.constant 0 : i32
    %10 = arith.cmpi eq, %arg2, %c0_i32_9 : i32
    %11 = arith.extui %10 : i1 to i32
    %c0_i32_10 = arith.constant 0 : i32
    %12 = arith.cmpi ne, %11, %c0_i32_10 : i32
    scf.if %12 {
      %c0_11 = arith.constant 0 : index
      %c0_12 = arith.constant 0 : index
      %13 = vector.load %arg6[%c0_11, %c0_12] : memref<64x128xf32, #tpu.memory_space<vmem>>, vector<64x128xf32>
      %14 = arith.truncf %13 : vector<64x128xf32> to vector<64x128xbf16>
      %c0_13 = arith.constant 0 : index
      %c0_14 = arith.constant 0 : index
      %15 = vector.load %arg5[%c0_13, %c0_14] : memref<64x128xbf16, #tpu.memory_space<vmem>>, vector<64x128xbf16>
      tpu.vector_store %arg5[%c0_13, %c0_14], %14 {strides = array<i32>} : memref<64x128xbf16, #tpu.memory_space<vmem>>, vector<64x128xbf16>,
    } else {
    }
    return
  }
  func.func @transform_0(%arg0: i32, %arg1: i32, %arg2: i32) -> (i32, i32, i32) {
    %c2_i32 = arith.constant 2 : i32
    %c0_i32 = arith.constant 0 : i32
    return %c2_i32, %arg0, %arg2 : i32, i32, i32
  }
  func.func @transform_1(%arg0: i32, %arg1: i32, %arg2: i32) -> (i32, i32) {
    %c0_i32 = arith.constant 0 : i32
    return %arg2, %arg1 : i32, i32
  }
  func.func @transform_2(%arg0: i32, %arg1: i32, %arg2: i32) -> (i32, i32) {
    %c0_i32 = arith.constant 0 : i32
    return %arg0, %arg1 : i32, i32
  }
}

module attributes {stable_mosaic.version = 11 : i64} {
  func.func @_wkv6_gn_gate_kernel(%arg0: i32, %arg1: i32, %arg2: i32, %arg3: memref<1x32x128xbf16, #tpu.memory_space<vmem>>, %arg4: memref<1x32x128xbf16, #tpu.memory_space<vmem>>, %arg5: memref<1x32x128xbf16, #tpu.memory_space<vmem>>, %arg6: memref<1x32x128xbf16, #tpu.memory_space<vmem>>, %arg7: memref<1x32x128xf32, #tpu.memory_space<vmem>>, %arg8: memref<1x128x128xf32, #tpu.memory_space<vmem>>, %arg9: memref<1x128xf32, #tpu.memory_space<vmem>>, %arg10: memref<1x128xf32, #tpu.memory_space<vmem>>, %arg11: memref<1x128xf32, #tpu.memory_space<vmem>>, %arg12: memref<1x128xf32, #tpu.memory_space<vmem>>, %arg13: memref<16x16xf32, #tpu.memory_space<vmem>>, %arg14: memref<16x16xf32, #tpu.memory_space<vmem>>, %arg15: memref<128x128xf32, #tpu.memory_space<vmem>>, %arg16: memref<1x32x128xbf16, #tpu.memory_space<vmem>>, %arg17: memref<128x128xf32, #tpu.memory_space<vmem>>) attributes {dimension_semantics = [#tpu.dimension_semantics<parallel>, #tpu.dimension_semantics<parallel>, #tpu.dimension_semantics<arbitrary>], iteration_bounds = array<i64: 2, 1, 1>, scalar_prefetch = 0 : i64, scratch_operands = 1 : i64, tpu.core_type = #tpu.core_type<tc>, window_params = [{transform_indices = @transform_0, window_bounds = array<i64: 1, 32, 128>}, {transform_indices = @transform_1, window_bounds = array<i64: 1, 32, 128>}, {transform_indices = @transform_2, window_bounds = array<i64: 1, 32, 128>}, {transform_indices = @transform_3, window_bounds = array<i64: 1, 32, 128>}, {transform_indices = @transform_4, window_bounds = array<i64: 1, 32, 128>}, {transform_indices = @transform_5, window_bounds = array<i64: 1, 128, 128>}, {transform_indices = @transform_6, window_bounds = array<i64: 1, 128>}, {transform_indices = @transform_7, window_bounds = array<i64: 1, 128>}, {transform_indices = @transform_8, window_bounds = array<i64: 1, 128>}, {transform_indices = @transform_9, window_bounds = array<i64: 1, 128>}, {pipeline_mode = #tpu.pipeline_mode<synchronous>, transform_indices = @transform_10, window_bounds = array<i64: 16, 16>}, {pipeline_mode = #tpu.pipeline_mode<synchronous>, transform_indices = @transform_11, window_bounds = array<i64: 16, 16>}, {pipeline_mode = #tpu.pipeline_mode<synchronous>, transform_indices = @transform_12, window_bounds = array<i64: 128, 128>}, {transform_indices = @transform_13, window_bounds = array<i64: 1, 32, 128>}]} {
    %c0_i32 = arith.constant 0 : i32
    %0 = arith.cmpi eq, %arg2, %c0_i32 : i32
    %1 = arith.extui %0 : i1 to i32
    %c0_i32_0 = arith.constant 0 : i32
    %2 = arith.cmpi ne, %1, %c0_i32_0 : i32
    scf.if %2 {
      %cst_19 = arith.constant 0.000000e+00 : f32
      %14 = vector.broadcast %cst_19 : f32 to vector<128x128xf32>
      %c0_20 = arith.constant 0 : index
      %c0_21 = arith.constant 0 : index
      %15 = vector.load %arg17[%c0_20, %c0_21] : memref<128x128xf32, #tpu.memory_space<vmem>>, vector<128x128xf32>
      tpu.vector_store %arg17[%c0_20, %c0_21], %14 {strides = array<i32>} : memref<128x128xf32, #tpu.memory_space<vmem>>, vector<128x128xf32>,
    } else {
    }
    %c0 = arith.constant 0 : index
    %c0_1 = arith.constant 0 : index
    %3 = vector.load %arg10[%c0, %c0_1] : memref<1x128xf32, #tpu.memory_space<vmem>>, vector<1x128xf32>
    %c0_2 = arith.constant 0 : index
    %c0_3 = arith.constant 0 : index
    %4 = vector.load %arg9[%c0_2, %c0_3] : memref<1x128xf32, #tpu.memory_space<vmem>>, vector<1x128xf32>
    %c0_4 = arith.constant 0 : index
    %c0_5 = arith.constant 0 : index
    %5 = vector.load %arg11[%c0_4, %c0_5] : memref<1x128xf32, #tpu.memory_space<vmem>>, vector<1x128xf32>
    %c0_6 = arith.constant 0 : index
    %c0_7 = arith.constant 0 : index
    %6 = vector.load %arg12[%c0_6, %c0_7] : memref<1x128xf32, #tpu.memory_space<vmem>>, vector<1x128xf32>
    %c0_8 = arith.constant 0 : index
    %c0_9 = arith.constant 0 : index
    %c0_10 = arith.constant 0 : index
    %7 = vector.load %arg8[%c0_8, %c0_9, %c0_10] : memref<1x128x128xf32, #tpu.memory_space<vmem>>, vector<1x128x128xf32>
    %8 = vector.shape_cast %7 : vector<1x128x128xf32> to vector<128x128xf32>
    %c0_11 = arith.constant 0 : index
    %c0_12 = arith.constant 0 : index
    %9 = vector.load %arg13[%c0_11, %c0_12] : memref<16x16xf32, #tpu.memory_space<vmem>>, vector<16x16xf32>
    %c0_13 = arith.constant 0 : index
    %c0_14 = arith.constant 0 : index
    %10 = vector.load %arg14[%c0_13, %c0_14] : memref<16x16xf32, #tpu.memory_space<vmem>>, vector<16x16xf32>
    %c0_15 = arith.constant 0 : index
    %c0_16 = arith.constant 0 : index
    %11 = vector.load %arg15[%c0_15, %c0_16] : memref<128x128xf32, #tpu.memory_space<vmem>>, vector<128x128xf32>
    %cst = arith.constant 1.000000e+00 : f32
    %12 = vector.broadcast %cst : f32 to vector<16x1xf32>
    %c0_i32_17 = arith.constant 0 : i32
    %c2_i32 = arith.constant 2 : i32
    %13 = arith.addi %c0_i32_17, %c2_i32 : i32
    %c1_i32 = arith.constant 1 : i32
    scf.for %arg18 = %c0_i32_17 to %13 step %c1_i32  : i32 {
      %c1_i32_19 = arith.constant 1 : i32
      %14 = arith.muli %arg18, %c1_i32_19 : i32
      %c0_i32_20 = arith.constant 0 : i32
      %15 = arith.addi %c0_i32_20, %14 : i32
      %c16_i32 = arith.constant 16 : i32
      %16 = arith.muli %15, %c16_i32 : i32
      %17 = tpu.assume_multiple %16, 16 : i32
      %c0_21 = arith.constant 0 : index
      %18 = arith.index_cast %17 : i32 to index
      %c0_22 = arith.constant 0 : index
      %19 = vector.load %arg3[%c0_21, %18, %c0_22] : memref<1x32x128xbf16, #tpu.memory_space<vmem>>, vector<1x16x128xbf16>
      %20 = vector.shape_cast %19 : vector<1x16x128xbf16> to vector<16x128xbf16>
      %21 = arith.extf %20 : vector<16x128xbf16> to vector<16x128xf32>
      %c0_23 = arith.constant 0 : index
      %22 = arith.index_cast %17 : i32 to index
      %c0_24 = arith.constant 0 : index
      %23 = vector.load %arg4[%c0_23, %22, %c0_24] : memref<1x32x128xbf16, #tpu.memory_space<vmem>>, vector<1x16x128xbf16>
      %24 = vector.shape_cast %23 : vector<1x16x128xbf16> to vector<16x128xbf16>
      %25 = arith.extf %24 : vector<16x128xbf16> to vector<16x128xf32>
      %c0_25 = arith.constant 0 : index
      %26 = arith.index_cast %17 : i32 to index
      %c0_26 = arith.constant 0 : index
      %27 = vector.load %arg5[%c0_25, %26, %c0_26] : memref<1x32x128xbf16, #tpu.memory_space<vmem>>, vector<1x16x128xbf16>
      %28 = vector.shape_cast %27 : vector<1x16x128xbf16> to vector<16x128xbf16>
      %29 = arith.extf %28 : vector<16x128xbf16> to vector<16x128xf32>
      %c0_27 = arith.constant 0 : index
      %30 = arith.index_cast %17 : i32 to index
      %c0_28 = arith.constant 0 : index
      %31 = vector.load %arg6[%c0_27, %30, %c0_28] : memref<1x32x128xbf16, #tpu.memory_space<vmem>>, vector<1x16x128xbf16>
      %32 = vector.shape_cast %31 : vector<1x16x128xbf16> to vector<16x128xbf16>
      %33 = arith.extf %32 : vector<16x128xbf16> to vector<16x128xf32>
      %c0_29 = arith.constant 0 : index
      %34 = arith.index_cast %17 : i32 to index
      %c0_30 = arith.constant 0 : index
      %35 = vector.load %arg7[%c0_29, %34, %c0_30] : memref<1x32x128xf32, #tpu.memory_space<vmem>>, vector<1x16x128xf32>
      %36 = vector.shape_cast %35 : vector<1x16x128xf32> to vector<16x128xf32>
      %cst_31 = arith.constant dense<0.000000e+00> : vector<16x128xf32>
      %37 = tpu.matmul %36, %8, %cst_31 {dimension_numbers = #tpu.dot_dimension_numbers<[1], [0], [0], [1], [0, 0, 1, 1], [], []>} : vector<16x128xf32>, vector<128x128xf32>, vector<16x128xf32> -> vector<16x128xf32>
      %38 = vector.broadcast %4 : vector<1x128xf32> to vector<16x128xf32>
      %39 = arith.addf %37, %38 : vector<16x128xf32>
      %40 = math.exp %39 : vector<16x128xf32>
      %cst_32 = arith.constant 4.000000e+00 : f32
      %41 = vector.broadcast %cst_32 : f32 to vector<16x128xf32>
      %42 = arith.minimumf %40, %41 : vector<16x128xf32>
      %cst_33 = arith.constant 0.000000e+00 : f32
      %43 = vector.broadcast %cst_33 : f32 to vector<16x128xf32>
      %44 = arith.subf %43, %42 : vector<16x128xf32>
      %cst_34 = arith.constant dense<0.000000e+00> : vector<16x128xf32>
      %45 = tpu.matmul %9, %44, %cst_34 {dimension_numbers = #tpu.dot_dimension_numbers<[1], [0], [0], [1], [0, 0, 1, 1], [], []>} : vector<16x16xf32>, vector<16x128xf32>, vector<16x128xf32> -> vector<16x128xf32>
      %46 = arith.subf %45, %44 : vector<16x128xf32>
      %47 = vector.extract_strided_slice %45 {offsets = [15, 0], sizes = [1, 128], strides = [1, 1]} : vector<16x128xf32> to vector<1x128xf32>
      %48 = math.exp %47 : vector<1x128xf32>
      %49 = math.exp %46 : vector<16x128xf32>
      %50 = arith.mulf %21, %49 : vector<16x128xf32>
      %cst_35 = arith.constant 0.000000e+00 : f32
      %51 = vector.broadcast %cst_35 : f32 to vector<16x128xf32>
      %52 = arith.subf %51, %45 : vector<16x128xf32>
      %53 = math.exp %52 : vector<16x128xf32>
      %54 = arith.mulf %25, %53 : vector<16x128xf32>
      %55 = vector.broadcast %48 : vector<1x128xf32> to vector<16x128xf32>
      %56 = arith.mulf %54, %55 : vector<16x128xf32>
      %c0_36 = arith.constant 0 : index
      %c0_37 = arith.constant 0 : index
      %57 = vector.load %arg17[%c0_36, %c0_37] : memref<128x128xf32, #tpu.memory_space<vmem>>, vector<128x128xf32>
      %cst_38 = arith.constant dense<0.000000e+00> : vector<16x128xf32>
      %58 = tpu.matmul %50, %57, %cst_38 {dimension_numbers = #tpu.dot_dimension_numbers<[1], [0], [0], [1], [0, 0, 1, 1], [], []>} : vector<16x128xf32>, vector<128x128xf32>, vector<16x128xf32> -> vector<16x128xf32>
      %59 = vector.extract_strided_slice %50 {offsets = [0, 0], sizes = [16, 64], strides = [1, 1]} : vector<16x128xf32> to vector<16x64xf32>
      %60 = vector.extract_strided_slice %54 {offsets = [0, 0], sizes = [16, 64], strides = [1, 1]} : vector<16x128xf32> to vector<16x64xf32>
      %cst_39 = arith.constant dense<0.000000e+00> : vector<16x16xf32>
      %61 = tpu.matmul %59, %60, %cst_39 {dimension_numbers = #tpu.dot_dimension_numbers<[1], [1], [0], [0], [0, 0, 1, 0], [], []>} : vector<16x64xf32>, vector<16x64xf32>, vector<16x16xf32> -> vector<16x16xf32>
      %62 = arith.mulf %61, %10 : vector<16x16xf32>
      %63 = vector.extract_strided_slice %29 {offsets = [0, 0], sizes = [16, 64], strides = [1, 1]} : vector<16x128xf32> to vector<16x64xf32>
      %cst_40 = arith.constant dense<0.000000e+00> : vector<16x64xf32>
      %64 = tpu.matmul %62, %63, %cst_40 {dimension_numbers = #tpu.dot_dimension_numbers<[1], [0], [0], [1], [0, 0, 1, 1], [], []>} : vector<16x16xf32>, vector<16x64xf32>, vector<16x64xf32> -> vector<16x64xf32>
      %65 = vector.extract_strided_slice %50 {offsets = [0, 64], sizes = [16, 64], strides = [1, 1]} : vector<16x128xf32> to vector<16x64xf32>
      %66 = vector.extract_strided_slice %54 {offsets = [0, 64], sizes = [16, 64], strides = [1, 1]} : vector<16x128xf32> to vector<16x64xf32>
      %cst_41 = arith.constant dense<0.000000e+00> : vector<16x16xf32>
      %67 = tpu.matmul %65, %66, %cst_41 {dimension_numbers = #tpu.dot_dimension_numbers<[1], [1], [0], [0], [0, 0, 1, 0], [], []>} : vector<16x64xf32>, vector<16x64xf32>, vector<16x16xf32> -> vector<16x16xf32>
      %68 = arith.mulf %67, %10 : vector<16x16xf32>
      %69 = vector.extract_strided_slice %29 {offsets = [0, 64], sizes = [16, 64], strides = [1, 1]} : vector<16x128xf32> to vector<16x64xf32>
      %cst_42 = arith.constant dense<0.000000e+00> : vector<16x64xf32>
      %70 = tpu.matmul %68, %69, %cst_42 {dimension_numbers = #tpu.dot_dimension_numbers<[1], [0], [0], [1], [0, 0, 1, 1], [], []>} : vector<16x16xf32>, vector<16x64xf32>, vector<16x64xf32> -> vector<16x64xf32>
      %71 = tpu.concatenate %64, %70 in 1 : vector<16x64xf32>, vector<16x64xf32> -> vector<16x128xf32>
      %72 = arith.addf %58, %71 : vector<16x128xf32>
      %73 = vector.broadcast %3 : vector<1x128xf32> to vector<16x128xf32>
      %74 = arith.mulf %21, %73 : vector<16x128xf32>
      %75 = arith.mulf %74, %25 : vector<16x128xf32>
      %cst_43 = arith.constant dense<0.000000e+00> : vector<16x128xf32>
      %76 = tpu.matmul %75, %11, %cst_43 {dimension_numbers = #tpu.dot_dimension_numbers<[1], [0], [0], [1], [0, 0, 1, 1], [], []>} : vector<16x128xf32>, vector<128x128xf32>, vector<16x128xf32> -> vector<16x128xf32>
      %77 = arith.mulf %76, %29 : vector<16x128xf32>
      %78 = arith.addf %72, %77 : vector<16x128xf32>
      %cst_44 = arith.constant dense<0.000000e+00> : vector<128x1xf32>
      %79 = tpu.matmul %44, %12, %cst_44 {dimension_numbers = #tpu.dot_dimension_numbers<[0], [0], [1], [1], [0, 1, 1, 1], [], []>} : vector<16x128xf32>, vector<16x1xf32>, vector<128x1xf32> -> vector<128x1xf32>
      %80 = math.exp %79 : vector<128x1xf32>
      %cst_45 = arith.constant dense<0.000000e+00> : vector<128x128xf32>
      %81 = tpu.matmul %56, %29, %cst_45 {dimension_numbers = #tpu.dot_dimension_numbers<[0], [0], [1], [1], [0, 1, 1, 1], [], []>} : vector<16x128xf32>, vector<16x128xf32>, vector<128x128xf32> -> vector<128x128xf32>
      %82 = vector.broadcast %80 : vector<128x1xf32> to vector<128x128xf32>
      %83 = arith.mulf %57, %82 : vector<128x128xf32>
      %84 = arith.mulf %81, %11 : vector<128x128xf32>
      %85 = arith.addf %83, %84 : vector<128x128xf32>
      %c0_46 = arith.constant 0 : index
      %c0_47 = arith.constant 0 : index
      %86 = vector.load %arg17[%c0_46, %c0_47] : memref<128x128xf32, #tpu.memory_space<vmem>>, vector<128x128xf32>
      tpu.vector_store %arg17[%c0_46, %c0_47], %85 {strides = array<i32>} : memref<128x128xf32, #tpu.memory_space<vmem>>, vector<128x128xf32>,
      %cst_48 = arith.constant dense<0.000000e+00> : vector<16x128xf32>
      %87 = tpu.matmul %78, %11, %cst_48 {dimension_numbers = #tpu.dot_dimension_numbers<[1], [0], [0], [1], [0, 0, 1, 1], [], []>} : vector<16x128xf32>, vector<128x128xf32>, vector<16x128xf32> -> vector<16x128xf32>
      %cst_49 = arith.constant 1.562500e-02 : f32
      %88 = vector.broadcast %cst_49 : f32 to vector<16x128xf32>
      %89 = arith.mulf %87, %88 : vector<16x128xf32>
      %90 = arith.subf %78, %89 : vector<16x128xf32>
      %91 = arith.mulf %90, %90 : vector<16x128xf32>
      %cst_50 = arith.constant dense<0.000000e+00> : vector<16x128xf32>
      %92 = tpu.matmul %91, %11, %cst_50 {dimension_numbers = #tpu.dot_dimension_numbers<[1], [0], [0], [1], [0, 0, 1, 1], [], []>} : vector<16x128xf32>, vector<128x128xf32>, vector<16x128xf32> -> vector<16x128xf32>
      %cst_51 = arith.constant 1.562500e-02 : f32
      %93 = vector.broadcast %cst_51 : f32 to vector<16x128xf32>
      %94 = arith.mulf %92, %93 : vector<16x128xf32>
      %cst_52 = arith.constant 2.000000e-05 : f32
      %95 = vector.broadcast %cst_52 : f32 to vector<16x128xf32>
      %96 = arith.addf %94, %95 : vector<16x128xf32>
      %97 = math.rsqrt %96 : vector<16x128xf32>
      %98 = arith.mulf %90, %97 : vector<16x128xf32>
      %99 = vector.broadcast %5 : vector<1x128xf32> to vector<16x128xf32>
      %100 = arith.mulf %98, %99 : vector<16x128xf32>
      %101 = vector.broadcast %6 : vector<1x128xf32> to vector<16x128xf32>
      %102 = arith.addf %100, %101 : vector<16x128xf32>
      %103 = arith.mulf %102, %33 : vector<16x128xf32>
      %104 = arith.negf %33 : vector<16x128xf32>
      %105 = math.exp %104 : vector<16x128xf32>
      %cst_53 = arith.constant 1.000000e+00 : f32
      %106 = vector.broadcast %cst_53 : f32 to vector<16x128xf32>
      %107 = arith.addf %106, %105 : vector<16x128xf32>
      %108 = arith.divf %106, %107 : vector<16x128xf32>
      %109 = arith.mulf %103, %108 : vector<16x128xf32>
      %110 = arith.truncf %109 : vector<16x128xf32> to vector<16x128xbf16>
      %c0_54 = arith.constant 0 : index
      %111 = arith.index_cast %17 : i32 to index
      %c0_55 = arith.constant 0 : index
      %112 = vector.load %arg16[%c0_54, %111, %c0_55] : memref<1x32x128xbf16, #tpu.memory_space<vmem>>, vector<1x16x128xbf16>
      %113 = vector.shape_cast %112 : vector<1x16x128xbf16> to vector<16x128xbf16>
      %114 = vector.shape_cast %110 : vector<16x128xbf16> to vector<1x16x128xbf16>
      tpu.vector_store %arg16[%c0_54, %111, %c0_55], %114 {strides = array<i32>} : memref<1x32x128xbf16, #tpu.memory_space<vmem>>, vector<1x16x128xbf16>,
    }
    %c2_i32_18 = arith.constant 2 : i32
    return
  }
  func.func @transform_0(%arg0: i32, %arg1: i32, %arg2: i32) -> (i32, i32, i32) {
    %c0_i32 = arith.constant 0 : i32
    return %arg0, %arg2, %arg1 : i32, i32, i32
  }
  func.func @transform_1(%arg0: i32, %arg1: i32, %arg2: i32) -> (i32, i32, i32) {
    %c0_i32 = arith.constant 0 : i32
    return %arg0, %arg2, %arg1 : i32, i32, i32
  }
  func.func @transform_2(%arg0: i32, %arg1: i32, %arg2: i32) -> (i32, i32, i32) {
    %c0_i32 = arith.constant 0 : i32
    return %arg0, %arg2, %arg1 : i32, i32, i32
  }
  func.func @transform_3(%arg0: i32, %arg1: i32, %arg2: i32) -> (i32, i32, i32) {
    %c0_i32 = arith.constant 0 : i32
    return %arg0, %arg2, %arg1 : i32, i32, i32
  }
  func.func @transform_4(%arg0: i32, %arg1: i32, %arg2: i32) -> (i32, i32, i32) {
    %c0_i32 = arith.constant 0 : i32
    %c0_i32_0 = arith.constant 0 : i32
    return %arg0, %arg2, %c0_i32 : i32, i32, i32
  }
  func.func @transform_5(%arg0: i32, %arg1: i32, %arg2: i32) -> (i32, i32, i32) {
    %c0_i32 = arith.constant 0 : i32
    %c0_i32_0 = arith.constant 0 : i32
    %c0_i32_1 = arith.constant 0 : i32
    return %arg1, %c0_i32, %c0_i32_0 : i32, i32, i32
  }
  func.func @transform_6(%arg0: i32, %arg1: i32, %arg2: i32) -> (i32, i32) {
    %c0_i32 = arith.constant 0 : i32
    %c0_i32_0 = arith.constant 0 : i32
    return %arg1, %c0_i32 : i32, i32
  }
  func.func @transform_7(%arg0: i32, %arg1: i32, %arg2: i32) -> (i32, i32) {
    %c0_i32 = arith.constant 0 : i32
    %c0_i32_0 = arith.constant 0 : i32
    return %arg1, %c0_i32 : i32, i32
  }
  func.func @transform_8(%arg0: i32, %arg1: i32, %arg2: i32) -> (i32, i32) {
    %c0_i32 = arith.constant 0 : i32
    %c0_i32_0 = arith.constant 0 : i32
    return %arg1, %c0_i32 : i32, i32
  }
  func.func @transform_9(%arg0: i32, %arg1: i32, %arg2: i32) -> (i32, i32) {
    %c0_i32 = arith.constant 0 : i32
    %c0_i32_0 = arith.constant 0 : i32
    return %arg1, %c0_i32 : i32, i32
  }
  func.func @transform_10(%arg0: i32, %arg1: i32, %arg2: i32) -> (i32, i32) {
    %c0_i32 = arith.constant 0 : i32
    %c0_i32_0 = arith.constant 0 : i32
    %c0_i32_1 = arith.constant 0 : i32
    return %c0_i32, %c0_i32_0 : i32, i32
  }
  func.func @transform_11(%arg0: i32, %arg1: i32, %arg2: i32) -> (i32, i32) {
    %c0_i32 = arith.constant 0 : i32
    %c0_i32_0 = arith.constant 0 : i32
    %c0_i32_1 = arith.constant 0 : i32
    return %c0_i32, %c0_i32_0 : i32, i32
  }
  func.func @transform_12(%arg0: i32, %arg1: i32, %arg2: i32) -> (i32, i32) {
    %c0_i32 = arith.constant 0 : i32
    %c0_i32_0 = arith.constant 0 : i32
    %c0_i32_1 = arith.constant 0 : i32
    return %c0_i32, %c0_i32_0 : i32, i32
  }
  func.func @transform_13(%arg0: i32, %arg1: i32, %arg2: i32) -> (i32, i32, i32) {
    %c0_i32 = arith.constant 0 : i32
    return %arg0, %arg2, %arg1 : i32, i32, i32
  }
}

module attributes {stable_mosaic.version = 11 : i64} {
  func.func @_acc_matmul_kernel(%arg0: i32, %arg1: i32, %arg2: i32, %arg3: memref<64x128xbf16, #tpu.memory_space<vmem>>, %arg4: memref<128x128xbf16, #tpu.memory_space<vmem>>, %arg5: memref<64x128xbf16, #tpu.memory_space<vmem>>, %arg6: memref<64x128xf32, #tpu.memory_space<vmem>>) attributes {dimension_semantics = [#tpu.dimension_semantics<parallel>, #tpu.dimension_semantics<parallel>, #tpu.dimension_semantics<arbitrary>], iteration_bounds = array<i64: 1, 1, 1>, scalar_prefetch = 0 : i64, scratch_operands = 1 : i64, tpu.core_type = #tpu.core_type<tc>, window_params = [{transform_indices = @transform_0, window_bounds = array<i64: 64, 128>}, {transform_indices = @transform_1, window_bounds = array<i64: 128, 128>}, {transform_indices = @transform_2, window_bounds = array<i64: 64, 128>}]} {
    %c0_i32 = arith.constant 0 : i32
    %0 = arith.cmpi eq, %arg2, %c0_i32 : i32
    %1 = arith.extui %0 : i1 to i32
    %c0_i32_0 = arith.constant 0 : i32
    %2 = arith.cmpi ne, %1, %c0_i32_0 : i32
    scf.if %2 {
      %cst_10 = arith.constant 0.000000e+00 : f32
      %12 = vector.broadcast %cst_10 : f32 to vector<64x128xf32>
      %c0_11 = arith.constant 0 : index
      %c0_12 = arith.constant 0 : index
      %13 = vector.load %arg6[%c0_11, %c0_12] : memref<64x128xf32, #tpu.memory_space<vmem>>, vector<64x128xf32>
      tpu.vector_store %arg6[%c0_11, %c0_12], %12 {strides = array<i32>} : memref<64x128xf32, #tpu.memory_space<vmem>>, vector<64x128xf32>,
    } else {
    }
    %c0 = arith.constant 0 : index
    %c0_1 = arith.constant 0 : index
    %3 = vector.load %arg6[%c0, %c0_1] : memref<64x128xf32, #tpu.memory_space<vmem>>, vector<64x128xf32>
    %c0_2 = arith.constant 0 : index
    %c0_3 = arith.constant 0 : index
    %4 = vector.load %arg3[%c0_2, %c0_3] : memref<64x128xbf16, #tpu.memory_space<vmem>>, vector<64x128xbf16>
    %c0_4 = arith.constant 0 : index
    %c0_5 = arith.constant 0 : index
    %5 = vector.load %arg4[%c0_4, %c0_5] : memref<128x128xbf16, #tpu.memory_space<vmem>>, vector<128x128xbf16>
    %cst = arith.constant dense<0.000000e+00> : vector<64x128xf32>
    %6 = tpu.matmul %4, %5, %cst {dimension_numbers = #tpu.dot_dimension_numbers<[1], [0], [0], [1], [0, 0, 1, 1], [], []>} : vector<64x128xbf16>, vector<128x128xbf16>, vector<64x128xf32> -> vector<64x128xf32>
    %7 = arith.addf %3, %6 : vector<64x128xf32>
    %c0_6 = arith.constant 0 : index
    %c0_7 = arith.constant 0 : index
    %8 = vector.load %arg6[%c0_6, %c0_7] : memref<64x128xf32, #tpu.memory_space<vmem>>, vector<64x128xf32>
    tpu.vector_store %arg6[%c0_6, %c0_7], %7 {strides = array<i32>} : memref<64x128xf32, #tpu.memory_space<vmem>>, vector<64x128xf32>,
    %c0_i32_8 = arith.constant 0 : i32
    %9 = arith.cmpi eq, %arg2, %c0_i32_8 : i32
    %10 = arith.extui %9 : i1 to i32
    %c0_i32_9 = arith.constant 0 : i32
    %11 = arith.cmpi ne, %10, %c0_i32_9 : i32
    scf.if %11 {
      %c0_10 = arith.constant 0 : index
      %c0_11 = arith.constant 0 : index
      %12 = vector.load %arg6[%c0_10, %c0_11] : memref<64x128xf32, #tpu.memory_space<vmem>>, vector<64x128xf32>
      %13 = arith.truncf %12 : vector<64x128xf32> to vector<64x128xbf16>
      %c0_12 = arith.constant 0 : index
      %c0_13 = arith.constant 0 : index
      %14 = vector.load %arg5[%c0_12, %c0_13] : memref<64x128xbf16, #tpu.memory_space<vmem>>, vector<64x128xbf16>
      tpu.vector_store %arg5[%c0_12, %c0_13], %13 {strides = array<i32>} : memref<64x128xbf16, #tpu.memory_space<vmem>>, vector<64x128xbf16>,
    } else {
    }
    return
  }
  func.func @transform_0(%arg0: i32, %arg1: i32, %arg2: i32) -> (i32, i32) {
    %c0_i32 = arith.constant 0 : i32
    return %arg0, %arg2 : i32, i32
  }
  func.func @transform_1(%arg0: i32, %arg1: i32, %arg2: i32) -> (i32, i32) {
    %c0_i32 = arith.constant 0 : i32
    return %arg2, %arg1 : i32, i32
  }
  func.func @transform_2(%arg0: i32, %arg1: i32, %arg2: i32) -> (i32, i32) {
    %c0_i32 = arith.constant 0 : i32
    return %arg0, %arg1 : i32, i32
  }
}

</mosaic_0001>

<llo_original>
// kernel: time_mix_forward.13
$region0: #{time_mix_forward.13}
  #allocation0 [shape = 'u32[]', space=smem, size = 0x4, offset = 0x4, fixed_abs, tag = 'smem constant byte address 0x4 - core index']
  #allocation1 [shape = 'u32[144,128]{1,0:T(1,128)}', space=vmem, size = 0x12000, scoped, tag = 'internal scratch']
  #allocation2 [shape = 'f32[64,128]{1,0:T(8,128)}', space=vmem, size = 0x8000, scoped, tag = 'scratch operand']
  %s0 = inlined_call_operand.vmem [shape: bf16[5,64,128], index: 0, kind: input, shape index: {}]
  %s1 = inlined_call_operand.vmem [shape: bf16[128,128], index: 1, kind: input, shape index: {}]
  %s2 = inlined_call_operand.vmem [shape: f32[64,128], index: 2, kind: output, shape index: {}]
  %s3 = sld [smem:[#allocation0]]
  $region26: #{time_mix_forward.13} parent=0
    _
  %s5 = ssub.s32 1, %s3
  %s6 = scalar_select 0, %s5, %s3
  // Predicated region
  $region2: #{time_mix_forward.13} parent=0 // pred_check
    _
  $region3: #{time_mix_forward.13} parent=0 // pred_check_branch
    %8 = sbr.rel (0) target = $region5
  $region4: #{time_mix_forward.13} parent=0 // pred_region
    _
  $region5: #{time_mix_forward.13} parent=0 // pred_fallthru
    _
  // Predicated region
  $region6: #{time_mix_forward.13} parent=0 // pred_check
    _
  $region7: #{time_mix_forward.13} parent=0 // pred_check_branch
    %10 = sbr.rel (0) target = $region9
  $region8: #{time_mix_forward.13} parent=0 // pred_region
    _
  $region9: #{time_mix_forward.13} parent=0 // pred_fallthru
    _
  %p12 = scmp.eq.s32.totalorder 0, 0
  // Predicated region
  $region10: #{time_mix_forward.13} parent=0 // pred_check
    %p13 = pneg %p12
  $region11: #{time_mix_forward.13} parent=0 // pred_check_branch
    %15 = sbr.rel (%p13) target = $region13
  $region12: #{time_mix_forward.13} parent=0 // pred_region
    %16 = vst [vmem:[#allocation2] sm:$0xff] 0.0
    %17 = vst [vmem:[#allocation2 + $0x8] sm:$0xff] 0.0
    %18 = vst [vmem:[#allocation2 + $0x10] sm:$0xff] 0.0
    %19 = vst [vmem:[#allocation2 + $0x18] sm:$0xff] 0.0
    %20 = vst [vmem:[#allocation2 + $0x20] sm:$0xff] 0.0
    %21 = vst [vmem:[#allocation2 + $0x28] sm:$0xff] 0.0
    %22 = vst [vmem:[#allocation2 + $0x30] sm:$0xff] 0.0
    %23 = vst [vmem:[#allocation2 + $0x38] sm:$0xff] 0.0
  $region13: #{time_mix_forward.13} parent=0 // pred_fallthru
    _
  %v24 = vld [vmem:[#allocation2] sm:$0xff]
  %v25 = vld [vmem:[#allocation2 + $0x8] sm:$0xff]
  %v26 = vld [vmem:[#allocation2 + $0x10] sm:$0xff]
  %v27 = vld [vmem:[#allocation2 + $0x18] sm:$0xff]
  %v28 = vld [vmem:[#allocation2 + $0x20] sm:$0xff]
  %v29 = vld [vmem:[#allocation2 + $0x28] sm:$0xff]
  %v30 = vld [vmem:[#allocation2 + $0x30] sm:$0xff]
  %v31 = vld [vmem:[#allocation2 + $0x38] sm:$0xff]
  %v32 = vld [vmem:[%s0] sm:$0xf]
  %v33 = vld [vmem:[%s0 + $0x4] sm:$0xf]
  %v34 = vld [vmem:[%s0 + $0x8] sm:$0xf]
  %v35 = vld [vmem:[%s0 + $0xc] sm:$0xf]
  %v36 = vld [vmem:[%s0 + $0x10] sm:$0xf]
  %v37 = vld [vmem:[%s0 + $0x14] sm:$0xf]
  %v38 = vld [vmem:[%s0 + $0x18] sm:$0xf]
  %v39 = vld [vmem:[%s0 + $0x1c] sm:$0xf]
  %v40 = vld [vmem:[%s1] sm:$0xf]
  %v41 = vld [vmem:[%s1 + $0x4] sm:$0xf]
  %v42 = vld [vmem:[%s1 + $0x8] sm:$0xf]
  %v43 = vld [vmem:[%s1 + $0xc] sm:$0xf]
  %v44 = vld [vmem:[%s1 + $0x10] sm:$0xf]
  %v45 = vld [vmem:[%s1 + $0x14] sm:$0xf]
  %v46 = vld [vmem:[%s1 + $0x18] sm:$0xf]
  %v47 = vld [vmem:[%s1 + $0x1c] sm:$0xf]
  %v48 = vld [vmem:[%s1 + $0x20] sm:$0xf]
  %v49 = vld [vmem:[%s1 + $0x24] sm:$0xf]
  %v50 = vld [vmem:[%s1 + $0x28] sm:$0xf]
  %v51 = vld [vmem:[%s1 + $0x2c] sm:$0xf]
  %v52 = vld [vmem:[%s1 + $0x30] sm:$0xf]
  %v53 = vld [vmem:[%s1 + $0x34] sm:$0xf]
  %v54 = vld [vmem:[%s1 + $0x38] sm:$0xf]
  %v55 = vld [vmem:[%s1 + $0x3c] sm:$0xf]
  %v64 = vunpack.c.l.b16 %v32
  %v65 = vunpack.c.l.b16 %v33
  %v66 = vunpack.c.l.b16 %v34
  %v67 = vunpack.c.l.b16 %v35
  %v68 = vunpack.c.l.b16 %v36
  %v69 = vunpack.c.l.b16 %v37
  %v70 = vunpack.c.l.b16 %v38
  %v71 = vunpack.c.l.b16 %v39
  %v72 = vpack.c.b16 %v65, %v64
  %v73 = vpack.c.b16 %v67, %v66
  %v74 = vpack.c.b16 %v69, %v68
  %v75 = vpack.c.b16 %v71, %v70
  %v96 = vunpack.c.l.b16 %v40
  %v97 = vunpack.c.l.b16 %v41
  %v98 = vunpack.c.l.b16 %v42
  %v99 = vunpack.c.l.b16 %v43
  %v100 = vunpack.c.l.b16 %v44
  %v101 = vunpack.c.l.b16 %v45
  %v102 = vunpack.c.l.b16 %v46
  %v103 = vunpack.c.l.b16 %v47
  %v104 = vunpack.c.l.b16 %v48
  %v105 = vunpack.c.l.b16 %v49
  %v106 = vunpack.c.l.b16 %v50
  %v107 = vunpack.c.l.b16 %v51
  %v108 = vunpack.c.l.b16 %v52
  %v109 = vunpack.c.l.b16 %v53
  %v110 = vunpack.c.l.b16 %v54
  %v111 = vunpack.c.l.b16 %v55
  %v112 = vpack.c.b16 %v97, %v96
  %v113 = vpack.c.b16 %v99, %v98
  %v114 = vpack.c.b16 %v101, %v100
  %v115 = vpack.c.b16 %v103, %v102
  %v116 = vpack.c.b16 %v105, %v104
  %v117 = vpack.c.b16 %v107, %v106
  %v118 = vpack.c.b16 %v109, %v108
  %v119 = vpack.c.b16 %v111, %v110
  %128 = vmatprep.subr.bf16.mxu0 0
  %129 = vmatpush1.bf16.msra.mxu0 %v119
  %130 = vmatprep.subr.bf16.mxu0 0
  %131 = vmatpush1.bf16.msra.mxu0 %v118
  %132 = vmatprep.subr.bf16.mxu0 0
  %133 = vmatpush1.bf16.msra.mxu0 %v117
  %134 = vmatprep.subr.bf16.mxu0 0
  %135 = vmatpush1.bf16.msra.mxu0 %v116
  %136 = vmatprep.subr.bf16.mxu0 0
  %137 = vmatpush1.bf16.msra.mxu0 %v115
  %138 = vmatprep.subr.bf16.mxu0 0
  %139 = vmatpush1.bf16.msra.mxu0 %v114
  %140 = vmatprep.subr.bf16.mxu0 0
  %141 = vmatpush1.bf16.msra.mxu0 %v113
  %142 = vmatprep.subr.bf16.mxu0 0
  %143 = vmatpush1.bf16.msra.mxu0 %v112
  %144 = vmatprep.subr.bf16.mxu0 0
  %145 = vmatpush2.bf16.msra.mxu0 0
  %146 = vmatprep.subr.bf16.mxu0 0
  %147 = vmatpush2.bf16.msra.mxu0 0
  %148 = vmatprep.subr.bf16.mxu0 0
  %149 = vmatpush2.bf16.msra.mxu0 0
  %150 = vmatprep.subr.bf16.mxu0 0
  %151 = vmatpush2.bf16.msra.mxu0 0
  %152 = vmatprep.subr.bf16.mxu0 0
  %153 = vmatpush2.bf16.msra.mxu0 0
  %154 = vmatprep.subr.bf16.mxu0 0
  %155 = vmatpush2.bf16.msra.mxu0 0
  %156 = vmatprep.subr.bf16.mxu0 0
  %157 = vmatpush2.bf16.msra.mxu0 0
  %158 = vmatprep.subr.bf16.mxu0 0
  %159 = vmatpush2.bf16.msra.mxu0 0
  %160 = vmatprep.mubr.bf16.mxu0 0
  %161 = vmatmul.mubr.bf16.gmra.mxu0 %v72
  %v162 = vpop.f32.mrf.mxu0
  %v163 = vadd.f32 0.0, %v162
  %v164 = vpop.f32.mrf.mxu0
  %v165 = vpop.f32.mrf.mxu0
  %v166 = vadd.f32 0.0, %v165
  %v167 = vpop.f32.mrf.mxu0
  %168 = vmatprep.mubr.bf16.mxu0 0
  %169 = vmatmul.mubr.bf16.gmra.mxu0 %v73
  %v170 = vpop.f32.mrf.mxu0
  %v171 = vadd.f32 0.0, %v170
  %v172 = vpop.f32.mrf.mxu0
  %v173 = vpop.f32.mrf.mxu0
  %v174 = vadd.f32 0.0, %v173
  %v175 = vpop.f32.mrf.mxu0
  %176 = vmatprep.mubr.bf16.mxu0 0
  %177 = vmatmul.mubr.bf16.gmra.mxu0 %v74
  %v178 = vpop.f32.mrf.mxu0
  %v179 = vadd.f32 0.0, %v178
  %v180 = vpop.f32.mrf.mxu0
  %v181 = vpop.f32.mrf.mxu0
  %v182 = vadd.f32 0.0, %v181
  %v183 = vpop.f32.mrf.mxu0
  %184 = vmatprep.mubr.bf16.mxu0 0
  %185 = vmatmul.mubr.bf16.gmra.mxu0 %v75
  %v186 = vpop.f32.mrf.mxu0
  %v187 = vadd.f32 0.0, %v186
  %v188 = vpop.f32.mrf.mxu0
  %v189 = vpop.f32.mrf.mxu0
  %v190 = vadd.f32 0.0, %v189
  %v191 = vpop.f32.mrf.mxu0
  %192 = vdwg.mxu0
  %v193 = vadd.f32 %v24, %v163
  %v194 = vadd.f32 %v25, %v166
  %v195 = vadd.f32 %v26, %v171
  %v196 = vadd.f32 %v27, %v174
  %v197 = vadd.f32 %v28, %v179
  %v198 = vadd.f32 %v29, %v182
  %v199 = vadd.f32 %v30, %v187
  %v200 = vadd.f32 %v31, %v190
  %201 = vst [vmem:[#allocation2] sm:$0xff] %v193
  %202 = vst [vmem:[#allocation2 + $0x8] sm:$0xff] %v194
  %203 = vst [vmem:[#allocation2 + $0x10] sm:$0xff] %v195
  %204 = vst [vmem:[#allocation2 + $0x18] sm:$0xff] %v196
  %205 = vst [vmem:[#allocation2 + $0x20] sm:$0xff] %v197
  %206 = vst [vmem:[#allocation2 + $0x28] sm:$0xff] %v198
  %207 = vst [vmem:[#allocation2 + $0x30] sm:$0xff] %v199
  %208 = vst [vmem:[#allocation2 + $0x38] sm:$0xff] %v200
  // Predicated region
  $region14: #{time_mix_forward.13} parent=0 // pred_check
    %p209 = pneg %p12
  $region15: #{time_mix_forward.13} parent=0 // pred_check_branch
    %211 = sbr.rel (%p209) target = $region17
  $region16: #{time_mix_forward.13} parent=0 // pred_region
    %v212 = vld [vmem:[#allocation2] sm:$0xff]
    %v213 = vld [vmem:[#allocation2 + $0x8] sm:$0xff]
    %v214 = vld [vmem:[#allocation2 + $0x10] sm:$0xff]
    %v215 = vld [vmem:[#allocation2 + $0x18] sm:$0xff]
    %v216 = vld [vmem:[#allocation2 + $0x20] sm:$0xff]
    %v217 = vld [vmem:[#allocation2 + $0x28] sm:$0xff]
    %v218 = vld [vmem:[#allocation2 + $0x30] sm:$0xff]
    %v219 = vld [vmem:[#allocation2 + $0x38] sm:$0xff]
    %v220 = vtanh.pop %v212
    %v221 = vtanh.pop %v213
    %v222 = vtanh.pop %v214
    %v223 = vtanh.pop %v215
    %v224 = vtanh.pop %v216
    %v225 = vtanh.pop %v217
    %v226 = vtanh.pop %v218
    %v227 = vtanh.pop %v219
    %228 = vst [vmem:[%s2] sm:$0xff] %v220
    %229 = vst [vmem:[%s2 + $0x8] sm:$0xff] %v221
    %230 = vst [vmem:[%s2 + $0x10] sm:$0xff] %v222
    %231 = vst [vmem:[%s2 + $0x18] sm:$0xff] %v223
    %232 = vst [vmem:[%s2 + $0x20] sm:$0xff] %v224
    %233 = vst [vmem:[%s2 + $0x28] sm:$0xff] %v225
    %234 = vst [vmem:[%s2 + $0x30] sm:$0xff] %v226
    %235 = vst [vmem:[%s2 + $0x38] sm:$0xff] %v227
  $region17: #{time_mix_forward.13} parent=0 // pred_fallthru
    _
  // Predicated region
  $region18: #{time_mix_forward.13} parent=0 // pred_check
    _
  $region19: #{time_mix_forward.13} parent=0 // pred_check_branch
    %237 = sbr.rel (0) target = $region21
  $region20: #{time_mix_forward.13} parent=0 // pred_region
    _
  $region21: #{time_mix_forward.13} parent=0 // pred_fallthru
    _
  // Predicated region
  $region22: #{time_mix_forward.13} parent=0 // pred_check
    _
  $region23: #{time_mix_forward.13} parent=0 // pred_check_branch
    %239 = sbr.rel (0) target = $region25
  $region24: #{time_mix_forward.13} parent=0 // pred_region
    _
  $region25: #{time_mix_forward.13} parent=0 // pred_fallthru
    _

// kernel: time_mix_forward.11
$region0: #{time_mix_forward.11}
  #allocation0 [shape = 'u32[]', space=smem, size = 0x4, offset = 0x4, fixed_abs, tag = 'smem constant byte address 0x4 - core index']
  #allocation1 [shape = 'u32[144,128]{1,0:T(1,128)}', space=vmem, size = 0x12000, scoped, tag = 'internal scratch']
  #allocation2 [shape = 'f32[64,128]{1,0:T(8,128)}', space=vmem, size = 0x8000, scoped, tag = 'scratch operand']
  %s0 = inlined_call_operand.vmem [shape: bf16[5,64,128], index: 0, kind: input, shape index: {}]
  %s1 = inlined_call_operand.vmem [shape: bf16[128,128], index: 1, kind: input, shape index: {}]
  %s2 = inlined_call_operand.vmem [shape: bf16[64,128], index: 2, kind: output, shape index: {}]
  %s3 = sld [smem:[#allocation0]]
  $region26: #{time_mix_forward.11} parent=0
    _
  %s5 = ssub.s32 1, %s3
  %s6 = scalar_select 0, %s5, %s3
  // Predicated region
  $region2: #{time_mix_forward.11} parent=0 // pred_check
    _
  $region3: #{time_mix_forward.11} parent=0 // pred_check_branch
    %8 = sbr.rel (0) target = $region5
  $region4: #{time_mix_forward.11} parent=0 // pred_region
    %s9 = scalar_lea.vmem %s0, 96
  $region5: #{time_mix_forward.11} parent=0 // pred_fallthru
    _
  // Predicated region
  $region6: #{time_mix_forward.11} parent=0 // pred_check
    _
  $region7: #{time_mix_forward.11} parent=0 // pred_check_branch
    %11 = sbr.rel (0) target = $region9
  $region8: #{time_mix_forward.11} parent=0 // pred_region
    _
  $region9: #{time_mix_forward.11} parent=0 // pred_fallthru
    _
  %s12 = scalar_lea.vmem %s0, 96
  %s13 = scalar_lea.vmem %s0, 96
  %p15 = scmp.eq.s32.totalorder 0, 0
  // Predicated region
  $region10: #{time_mix_forward.11} parent=0 // pred_check
    %p16 = pneg %p15
  $region11: #{time_mix_forward.11} parent=0 // pred_check_branch
    %18 = sbr.rel (%p16) target = $region13
  $region12: #{time_mix_forward.11} parent=0 // pred_region
    %19 = vst [vmem:[#allocation2] sm:$0xff] 0.0
    %20 = vst [vmem:[#allocation2 + $0x8] sm:$0xff] 0.0
    %21 = vst [vmem:[#allocation2 + $0x10] sm:$0xff] 0.0
    %22 = vst [vmem:[#allocation2 + $0x18] sm:$0xff] 0.0
    %23 = vst [vmem:[#allocation2 + $0x20] sm:$0xff] 0.0
    %24 = vst [vmem:[#allocation2 + $0x28] sm:$0xff] 0.0
    %25 = vst [vmem:[#allocation2 + $0x30] sm:$0xff] 0.0
    %26 = vst [vmem:[#allocation2 + $0x38] sm:$0xff] 0.0
  $region13: #{time_mix_forward.11} parent=0 // pred_fallthru
    _
  %v27 = vld [vmem:[#allocation2] sm:$0xff]
  %v28 = vld [vmem:[#allocation2 + $0x8] sm:$0xff]
  %v29 = vld [vmem:[#allocation2 + $0x10] sm:$0xff]
  %v30 = vld [vmem:[#allocation2 + $0x18] sm:$0xff]
  %v31 = vld [vmem:[#allocation2 + $0x20] sm:$0xff]
  %v32 = vld [vmem:[#allocation2 + $0x28] sm:$0xff]
  %v33 = vld [vmem:[#allocation2 + $0x30] sm:$0xff]
  %v34 = vld [vmem:[#allocation2 + $0x38] sm:$0xff]
  %v35 = vld [vmem:[%s13] sm:$0xf]
  %v36 = vld [vmem:[%s13 + $0x4] sm:$0xf]
  %v37 = vld [vmem:[%s13 + $0x8] sm:$0xf]
  %v38 = vld [vmem:[%s13 + $0xc] sm:$0xf]
  %v39 = vld [vmem:[%s13 + $0x10] sm:$0xf]
  %v40 = vld [vmem:[%s13 + $0x14] sm:$0xf]
  %v41 = vld [vmem:[%s13 + $0x18] sm:$0xf]
  %v42 = vld [vmem:[%s13 + $0x1c] sm:$0xf]
  %v43 = vld [vmem:[%s1] sm:$0xf]
  %v44 = vld [vmem:[%s1 + $0x4] sm:$0xf]
  %v45 = vld [vmem:[%s1 + $0x8] sm:$0xf]
  %v46 = vld [vmem:[%s1 + $0xc] sm:$0xf]
  %v47 = vld [vmem:[%s1 + $0x10] sm:$0xf]
  %v48 = vld [vmem:[%s1 + $0x14] sm:$0xf]
  %v49 = vld [vmem:[%s1 + $0x18] sm:$0xf]
  %v50 = vld [vmem:[%s1 + $0x1c] sm:$0xf]
  %v51 = vld [vmem:[%s1 + $0x20] sm:$0xf]
  %v52 = vld [vmem:[%s1 + $0x24] sm:$0xf]
  %v53 = vld [vmem:[%s1 + $0x28] sm:$0xf]
  %v54 = vld [vmem:[%s1 + $0x2c] sm:$0xf]
  %v55 = vld [vmem:[%s1 + $0x30] sm:$0xf]
  %v56 = vld [vmem:[%s1 + $0x34] sm:$0xf]
  %v57 = vld [vmem:[%s1 + $0x38] sm:$0xf]
  %v58 = vld [vmem:[%s1 + $0x3c] sm:$0xf]
  %v67 = vunpack.c.l.b16 %v35
  %v68 = vunpack.c.l.b16 %v36
  %v69 = vunpack.c.l.b16 %v37
  %v70 = vunpack.c.l.b16 %v38
  %v71 = vunpack.c.l.b16 %v39
  %v72 = vunpack.c.l.b16 %v40
  %v73 = vunpack.c.l.b16 %v41
  %v74 = vunpack.c.l.b16 %v42
  %v75 = vpack.c.b16 %v68, %v67
  %v76 = vpack.c.b16 %v70, %v69
  %v77 = vpack.c.b16 %v72, %v71
  %v78 = vpack.c.b16 %v74, %v73
  %v99 = vunpack.c.l.b16 %v43
  %v100 = vunpack.c.l.b16 %v44
  %v101 = vunpack.c.l.b16 %v45
  %v102 = vunpack.c.l.b16 %v46
  %v103 = vunpack.c.l.b16 %v47
  %v104 = vunpack.c.l.b16 %v48
  %v105 = vunpack.c.l.b16 %v49
  %v106 = vunpack.c.l.b16 %v50
  %v107 = vunpack.c.l.b16 %v51
  %v108 = vunpack.c.l.b16 %v52
  %v109 = vunpack.c.l.b16 %v53
  %v110 = vunpack.c.l.b16 %v54
  %v111 = vunpack.c.l.b16 %v55
  %v112 = vunpack.c.l.b16 %v56
  %v113 = vunpack.c.l.b16 %v57
  %v114 = vunpack.c.l.b16 %v58
  %v115 = vpack.c.b16 %v100, %v99
  %v116 = vpack.c.b16 %v102, %v101
  %v117 = vpack.c.b16 %v104, %v103
  %v118 = vpack.c.b16 %v106, %v105
  %v119 = vpack.c.b16 %v108, %v107
  %v120 = vpack.c.b16 %v110, %v109
  %v121 = vpack.c.b16 %v112, %v111
  %v122 = vpack.c.b16 %v114, %v113
  %131 = vmatprep.subr.bf16.mxu0 0
  %132 = vmatpush1.bf16.msra.mxu0 %v122
  %133 = vmatprep.subr.bf16.mxu0 0
  %134 = vmatpush1.bf16.msra.mxu0 %v121
  %135 = vmatprep.subr.bf16.mxu0 0
  %136 = vmatpush1.bf16.msra.mxu0 %v120
  %137 = vmatprep.subr.bf16.mxu0 0
  %138 = vmatpush1.bf16.msra.mxu0 %v119
  %139 = vmatprep.subr.bf16.mxu0 0
  %140 = vmatpush1.bf16.msra.mxu0 %v118
  %141 = vmatprep.subr.bf16.mxu0 0
  %142 = vmatpush1.bf16.msra.mxu0 %v117
  %143 = vmatprep.subr.bf16.mxu0 0
  %144 = vmatpush1.bf16.msra.mxu0 %v116
  %145 = vmatprep.subr.bf16.mxu0 0
  %146 = vmatpush1.bf16.msra.mxu0 %v115
  %147 = vmatprep.subr.bf16.mxu0 0
  %148 = vmatpush2.bf16.msra.mxu0 0
  %149 = vmatprep.subr.bf16.mxu0 0
  %150 = vmatpush2.bf16.msra.mxu0 0
  %151 = vmatprep.subr.bf16.mxu0 0
  %152 = vmatpush2.bf16.msra.mxu0 0
  %153 = vmatprep.subr.bf16.mxu0 0
  %154 = vmatpush2.bf16.msra.mxu0 0
  %155 = vmatprep.subr.bf16.mxu0 0
  %156 = vmatpush2.bf16.msra.mxu0 0
  %157 = vmatprep.subr.bf16.mxu0 0
  %158 = vmatpush2.bf16.msra.mxu0 0
  %159 = vmatprep.subr.bf16.mxu0 0
  %160 = vmatpush2.bf16.msra.mxu0 0
  %161 = vmatprep.subr.bf16.mxu0 0
  %162 = vmatpush2.bf16.msra.mxu0 0
  %163 = vmatprep.mubr.bf16.mxu0 0
  %164 = vmatmul.mubr.bf16.gmra.mxu0 %v75
  %v165 = vpop.f32.mrf.mxu0
  %v166 = vadd.f32 0.0, %v165
  %v167 = vpop.f32.mrf.mxu0
  %v168 = vpop.f32.mrf.mxu0
  %v169 = vadd.f32 0.0, %v168
  %v170 = vpop.f32.mrf.mxu0
  %171 = vmatprep.mubr.bf16.mxu0 0
  %172 = vmatmul.mubr.bf16.gmra.mxu0 %v76
  %v173 = vpop.f32.mrf.mxu0
  %v174 = vadd.f32 0.0, %v173
  %v175 = vpop.f32.mrf.mxu0
  %v176 = vpop.f32.mrf.mxu0
  %v177 = vadd.f32 0.0, %v176
  %v178 = vpop.f32.mrf.mxu0
  %179 = vmatprep.mubr.bf16.mxu0 0
  %180 = vmatmul.mubr.bf16.gmra.mxu0 %v77
  %v181 = vpop.f32.mrf.mxu0
  %v182 = vadd.f32 0.0, %v181
  %v183 = vpop.f32.mrf.mxu0
  %v184 = vpop.f32.mrf.mxu0
  %v185 = vadd.f32 0.0, %v184
  %v186 = vpop.f32.mrf.mxu0
  %187 = vmatprep.mubr.bf16.mxu0 0
  %188 = vmatmul.mubr.bf16.gmra.mxu0 %v78
  %v189 = vpop.f32.mrf.mxu0
  %v190 = vadd.f32 0.0, %v189
  %v191 = vpop.f32.mrf.mxu0
  %v192 = vpop.f32.mrf.mxu0
  %v193 = vadd.f32 0.0, %v192
  %v194 = vpop.f32.mrf.mxu0
  %195 = vdwg.mxu0
  %v196 = vadd.f32 %v27, %v166
  %v197 = vadd.f32 %v28, %v169
  %v198 = vadd.f32 %v29, %v174
  %v199 = vadd.f32 %v30, %v177
  %v200 = vadd.f32 %v31, %v182
  %v201 = vadd.f32 %v32, %v185
  %v202 = vadd.f32 %v33, %v190
  %v203 = vadd.f32 %v34, %v193
  %204 = vst [vmem:[#allocation2] sm:$0xff] %v196
  %205 = vst [vmem:[#allocation2 + $0x8] sm:$0xff] %v197
  %206 = vst [vmem:[#allocation2 + $0x10] sm:$0xff] %v198
  %207 = vst [vmem:[#allocation2 + $0x18] sm:$0xff] %v199
  %208 = vst [vmem:[#allocation2 + $0x20] sm:$0xff] %v200
  %209 = vst [vmem:[#allocation2 + $0x28] sm:$0xff] %v201
  %210 = vst [vmem:[#allocation2 + $0x30] sm:$0xff] %v202
  %211 = vst [vmem:[#allocation2 + $0x38] sm:$0xff] %v203
  // Predicated region
  $region14: #{time_mix_forward.11} parent=0 // pred_check
    %p212 = pneg %p15
  $region15: #{time_mix_forward.11} parent=0 // pred_check_branch
    %214 = sbr.rel (%p212) target = $region17
  $region16: #{time_mix_forward.11} parent=0 // pred_region
    %v215 = vld [vmem:[#allocation2] sm:$0xff]
    %v216 = vld [vmem:[#allocation2 + $0x8] sm:$0xff]
    %v217 = vld [vmem:[#allocation2 + $0x10] sm:$0xff]
    %v218 = vld [vmem:[#allocation2 + $0x18] sm:$0xff]
    %v219 = vld [vmem:[#allocation2 + $0x20] sm:$0xff]
    %v220 = vld [vmem:[#allocation2 + $0x28] sm:$0xff]
    %v221 = vld [vmem:[#allocation2 + $0x30] sm:$0xff]
    %v222 = vld [vmem:[#allocation2 + $0x38] sm:$0xff]
    %v223 = vpack.c.bf16 %v216, %v215
    %v224 = vpack.c.bf16 %v218, %v217
    %v225 = vpack.c.bf16 %v220, %v219
    %v226 = vpack.c.bf16 %v222, %v221
    %v231 = vunpack.c.l.b16 %v223
    %v232 = vunpack.c.h.b16 %v223
    %v233 = vunpack.c.l.b16 %v224
    %v234 = vunpack.c.h.b16 %v224
    %v235 = vunpack.c.l.b16 %v225
    %v236 = vunpack.c.h.b16 %v225
    %v237 = vunpack.c.l.b16 %v226
    %v238 = vunpack.c.h.b16 %v226
    %v239 = vpack.c.b16 %v231, %v231
    %v240 = vpack.c.b16 %v232, %v232
    %v241 = vpack.c.b16 %v233, %v233
    %v242 = vpack.c.b16 %v234, %v234
    %v243 = vpack.c.b16 %v235, %v235
    %v244 = vpack.c.b16 %v236, %v236
    %v245 = vpack.c.b16 %v237, %v237
    %v246 = vpack.c.b16 %v238, %v238
    %255 = vst [vmem:[%s2] sm:$0xf] %v239
    %256 = vst [vmem:[%s2 + $0x4] sm:$0xf] %v240
    %257 = vst [vmem:[%s2 + $0x8] sm:$0xf] %v241
    %258 = vst [vmem:[%s2 + $0xc] sm:$0xf] %v242
    %259 = vst [vmem:[%s2 + $0x10] sm:$0xf] %v243
    %260 = vst [vmem:[%s2 + $0x14] sm:$0xf] %v244
    %261 = vst [vmem:[%s2 + $0x18] sm:$0xf] %v245
    %262 = vst [vmem:[%s2 + $0x1c] sm:$0xf] %v246
  $region17: #{time_mix_forward.11} parent=0 // pred_fallthru
    _
  // Predicated region
  $region18: #{time_mix_forward.11} parent=0 // pred_check
    _
  $region19: #{time_mix_forward.11} parent=0 // pred_check_branch
    %264 = sbr.rel (0) target = $region21
  $region20: #{time_mix_forward.11} parent=0 // pred_region
    _
  $region21: #{time_mix_forward.11} parent=0 // pred_fallthru
    _
  // Predicated region
  $region22: #{time_mix_forward.11} parent=0 // pred_check
    _
  $region23: #{time_mix_forward.11} parent=0 // pred_check_branch
    %266 = sbr.rel (0) target = $region25
  $region24: #{time_mix_forward.11} parent=0 // pred_region
    _
  $region25: #{time_mix_forward.11} parent=0 // pred_fallthru
    _

// kernel: time_mix_forward.9
$region0: #{time_mix_forward.9}
  #allocation0 [shape = 'u32[]', space=smem, size = 0x4, offset = 0x4, fixed_abs, tag = 'smem constant byte address 0x4 - core index']
  #allocation1 [shape = 'u32[144,128]{1,0:T(1,128)}', space=vmem, size = 0x12000, scoped, tag = 'internal scratch']
  #allocation2 [shape = 'f32[64,128]{1,0:T(8,128)}', space=vmem, size = 0x8000, scoped, tag = 'scratch operand']
  %s0 = inlined_call_operand.vmem [shape: bf16[5,64,128], index: 0, kind: input, shape index: {}]
  %s1 = inlined_call_operand.vmem [shape: bf16[128,128], index: 1, kind: input, shape index: {}]
  %s2 = inlined_call_operand.vmem [shape: bf16[64,128], index: 2, kind: output, shape index: {}]
  %s3 = sld [smem:[#allocation0]]
  $region26: #{time_mix_forward.9} parent=0
    _
  %s5 = ssub.s32 1, %s3
  %s6 = scalar_select 0, %s5, %s3
  // Predicated region
  $region2: #{time_mix_forward.9} parent=0 // pred_check
    _
  $region3: #{time_mix_forward.9} parent=0 // pred_check_branch
    %8 = sbr.rel (0) target = $region5
  $region4: #{time_mix_forward.9} parent=0 // pred_region
    %s9 = scalar_lea.vmem %s0, 32
  $region5: #{time_mix_forward.9} parent=0 // pred_fallthru
    _
  // Predicated region
  $region6: #{time_mix_forward.9} parent=0 // pred_check
    _
  $region7: #{time_mix_forward.9} parent=0 // pred_check_branch
    %11 = sbr.rel (0) target = $region9
  $region8: #{time_mix_forward.9} parent=0 // pred_region
    _
  $region9: #{time_mix_forward.9} parent=0 // pred_fallthru
    _
  %s12 = scalar_lea.vmem %s0, 32
  %s13 = scalar_lea.vmem %s0, 32
  %p15 = scmp.eq.s32.totalorder 0, 0
  // Predicated region
  $region10: #{time_mix_forward.9} parent=0 // pred_check
    %p16 = pneg %p15
  $region11: #{time_mix_forward.9} parent=0 // pred_check_branch
    %18 = sbr.rel (%p16) target = $region13
  $region12: #{time_mix_forward.9} parent=0 // pred_region
    %19 = vst [vmem:[#allocation2] sm:$0xff] 0.0
    %20 = vst [vmem:[#allocation2 + $0x8] sm:$0xff] 0.0
    %21 = vst [vmem:[#allocation2 + $0x10] sm:$0xff] 0.0
    %22 = vst [vmem:[#allocation2 + $0x18] sm:$0xff] 0.0
    %23 = vst [vmem:[#allocation2 + $0x20] sm:$0xff] 0.0
    %24 = vst [vmem:[#allocation2 + $0x28] sm:$0xff] 0.0
    %25 = vst [vmem:[#allocation2 + $0x30] sm:$0xff] 0.0
    %26 = vst [vmem:[#allocation2 + $0x38] sm:$0xff] 0.0
  $region13: #{time_mix_forward.9} parent=0 // pred_fallthru
    _
  %v27 = vld [vmem:[#allocation2] sm:$0xff]
  %v28 = vld [vmem:[#allocation2 + $0x8] sm:$0xff]
  %v29 = vld [vmem:[#allocation2 + $0x10] sm:$0xff]
  %v30 = vld [vmem:[#allocation2 + $0x18] sm:$0xff]
  %v31 = vld [vmem:[#allocation2 + $0x20] sm:$0xff]
  %v32 = vld [vmem:[#allocation2 + $0x28] sm:$0xff]
  %v33 = vld [vmem:[#allocation2 + $0x30] sm:$0xff]
  %v34 = vld [vmem:[#allocation2 + $0x38] sm:$0xff]
  %v35 = vld [vmem:[%s13] sm:$0xf]
  %v36 = vld [vmem:[%s13 + $0x4] sm:$0xf]
  %v37 = vld [vmem:[%s13 + $0x8] sm:$0xf]
  %v38 = vld [vmem:[%s13 + $0xc] sm:$0xf]
  %v39 = vld [vmem:[%s13 + $0x10] sm:$0xf]
  %v40 = vld [vmem:[%s13 + $0x14] sm:$0xf]
  %v41 = vld [vmem:[%s13 + $0x18] sm:$0xf]
  %v42 = vld [vmem:[%s13 + $0x1c] sm:$0xf]
  %v43 = vld [vmem:[%s1] sm:$0xf]
  %v44 = vld [vmem:[%s1 + $0x4] sm:$0xf]
  %v45 = vld [vmem:[%s1 + $0x8] sm:$0xf]
  %v46 = vld [vmem:[%s1 + $0xc] sm:$0xf]
  %v47 = vld [vmem:[%s1 + $0x10] sm:$0xf]
  %v48 = vld [vmem:[%s1 + $0x14] sm:$0xf]
  %v49 = vld [vmem:[%s1 + $0x18] sm:$0xf]
  %v50 = vld [vmem:[%s1 + $0x1c] sm:$0xf]
  %v51 = vld [vmem:[%s1 + $0x20] sm:$0xf]
  %v52 = vld [vmem:[%s1 + $0x24] sm:$0xf]
  %v53 = vld [vmem:[%s1 + $0x28] sm:$0xf]
  %v54 = vld [vmem:[%s1 + $0x2c] sm:$0xf]
  %v55 = vld [vmem:[%s1 + $0x30] sm:$0xf]
  %v56 = vld [vmem:[%s1 + $0x34] sm:$0xf]
  %v57 = vld [vmem:[%s1 + $0x38] sm:$0xf]
  %v58 = vld [vmem:[%s1 + $0x3c] sm:$0xf]
  %v67 = vunpack.c.l.b16 %v35
  %v68 = vunpack.c.l.b16 %v36
  %v69 = vunpack.c.l.b16 %v37
  %v70 = vunpack.c.l.b16 %v38
  %v71 = vunpack.c.l.b16 %v39
  %v72 = vunpack.c.l.b16 %v40
  %v73 = vunpack.c.l.b16 %v41
  %v74 = vunpack.c.l.b16 %v42
  %v75 = vpack.c.b16 %v68, %v67
  %v76 = vpack.c.b16 %v70, %v69
  %v77 = vpack.c.b16 %v72, %v71
  %v78 = vpack.c.b16 %v74, %v73
  %v99 = vunpack.c.l.b16 %v43
  %v100 = vunpack.c.l.b16 %v44
  %v101 = vunpack.c.l.b16 %v45
  %v102 = vunpack.c.l.b16 %v46
  %v103 = vunpack.c.l.b16 %v47
  %v104 = vunpack.c.l.b16 %v48
  %v105 = vunpack.c.l.b16 %v49
  %v106 = vunpack.c.l.b16 %v50
  %v107 = vunpack.c.l.b16 %v51
  %v108 = vunpack.c.l.b16 %v52
  %v109 = vunpack.c.l.b16 %v53
  %v110 = vunpack.c.l.b16 %v54
  %v111 = vunpack.c.l.b16 %v55
  %v112 = vunpack.c.l.b16 %v56
  %v113 = vunpack.c.l.b16 %v57
  %v114 = vunpack.c.l.b16 %v58
  %v115 = vpack.c.b16 %v100, %v99
  %v116 = vpack.c.b16 %v102, %v101
  %v117 = vpack.c.b16 %v104, %v103
  %v118 = vpack.c.b16 %v106, %v105
  %v119 = vpack.c.b16 %v108, %v107
  %v120 = vpack.c.b16 %v110, %v109
  %v121 = vpack.c.b16 %v112, %v111
  %v122 = vpack.c.b16 %v114, %v113
  %131 = vmatprep.subr.bf16.mxu0 0
  %132 = vmatpush1.bf16.msra.mxu0 %v122
  %133 = vmatprep.subr.bf16.mxu0 0
  %134 = vmatpush1.bf16.msra.mxu0 %v121
  %135 = vmatprep.subr.bf16.mxu0 0
  %136 = vmatpush1.bf16.msra.mxu0 %v120
  %137 = vmatprep.subr.bf16.mxu0 0
  %138 = vmatpush1.bf16.msra.mxu0 %v119
  %139 = vmatprep.subr.bf16.mxu0 0
  %140 = vmatpush1.bf16.msra.mxu0 %v118
  %141 = vmatprep.subr.bf16.mxu0 0
  %142 = vmatpush1.bf16.msra.mxu0 %v117
  %143 = vmatprep.subr.bf16.mxu0 0
  %144 = vmatpush1.bf16.msra.mxu0 %v116
  %145 = vmatprep.subr.bf16.mxu0 0
  %146 = vmatpush1.bf16.msra.mxu0 %v115
  %147 = vmatprep.subr.bf16.mxu0 0
  %148 = vmatpush2.bf16.msra.mxu0 0
  %149 = vmatprep.subr.bf16.mxu0 0
  %150 = vmatpush2.bf16.msra.mxu0 0
  %151 = vmatprep.subr.bf16.mxu0 0
  %152 = vmatpush2.bf16.msra.mxu0 0
  %153 = vmatprep.subr.bf16.mxu0 0
  %154 = vmatpush2.bf16.msra.mxu0 0
  %155 = vmatprep.subr.bf16.mxu0 0
  %156 = vmatpush2.bf16.msra.mxu0 0
  %157 = vmatprep.subr.bf16.mxu0 0
  %158 = vmatpush2.bf16.msra.mxu0 0
  %159 = vmatprep.subr.bf16.mxu0 0
  %160 = vmatpush2.bf16.msra.mxu0 0
  %161 = vmatprep.subr.bf16.mxu0 0
  %162 = vmatpush2.bf16.msra.mxu0 0
  %163 = vmatprep.mubr.bf16.mxu0 0
  %164 = vmatmul.mubr.bf16.gmra.mxu0 %v75
  %v165 = vpop.f32.mrf.mxu0
  %v166 = vadd.f32 0.0, %v165
  %v167 = vpop.f32.mrf.mxu0
  %v168 = vpop.f32.mrf.mxu0
  %v169 = vadd.f32 0.0, %v168
  %v170 = vpop.f32.mrf.mxu0
  %171 = vmatprep.mubr.bf16.mxu0 0
  %172 = vmatmul.mubr.bf16.gmra.mxu0 %v76
  %v173 = vpop.f32.mrf.mxu0
  %v174 = vadd.f32 0.0, %v173
  %v175 = vpop.f32.mrf.mxu0
  %v176 = vpop.f32.mrf.mxu0
  %v177 = vadd.f32 0.0, %v176
  %v178 = vpop.f32.mrf.mxu0
  %179 = vmatprep.mubr.bf16.mxu0 0
  %180 = vmatmul.mubr.bf16.gmra.mxu0 %v77
  %v181 = vpop.f32.mrf.mxu0
  %v182 = vadd.f32 0.0, %v181
  %v183 = vpop.f32.mrf.mxu0
  %v184 = vpop.f32.mrf.mxu0
  %v185 = vadd.f32 0.0, %v184
  %v186 = vpop.f32.mrf.mxu0
  %187 = vmatprep.mubr.bf16.mxu0 0
  %188 = vmatmul.mubr.bf16.gmra.mxu0 %v78
  %v189 = vpop.f32.mrf.mxu0
  %v190 = vadd.f32 0.0, %v189
  %v191 = vpop.f32.mrf.mxu0
  %v192 = vpop.f32.mrf.mxu0
  %v193 = vadd.f32 0.0, %v192
  %v194 = vpop.f32.mrf.mxu0
  %195 = vdwg.mxu0
  %v196 = vadd.f32 %v27, %v166
  %v197 = vadd.f32 %v28, %v169
  %v198 = vadd.f32 %v29, %v174
  %v199 = vadd.f32 %v30, %v177
  %v200 = vadd.f32 %v31, %v182
  %v201 = vadd.f32 %v32, %v185
  %v202 = vadd.f32 %v33, %v190
  %v203 = vadd.f32 %v34, %v193
  %204 = vst [vmem:[#allocation2] sm:$0xff] %v196
  %205 = vst [vmem:[#allocation2 + $0x8] sm:$0xff] %v197
  %206 = vst [vmem:[#allocation2 + $0x10] sm:$0xff] %v198
  %207 = vst [vmem:[#allocation2 + $0x18] sm:$0xff] %v199
  %208 = vst [vmem:[#allocation2 + $0x20] sm:$0xff] %v200
  %209 = vst [vmem:[#allocation2 + $0x28] sm:$0xff] %v201
  %210 = vst [vmem:[#allocation2 + $0x30] sm:$0xff] %v202
  %211 = vst [vmem:[#allocation2 + $0x38] sm:$0xff] %v203
  // Predicated region
  $region14: #{time_mix_forward.9} parent=0 // pred_check
    %p212 = pneg %p15
  $region15: #{time_mix_forward.9} parent=0 // pred_check_branch
    %214 = sbr.rel (%p212) target = $region17
  $region16: #{time_mix_forward.9} parent=0 // pred_region
    %v215 = vld [vmem:[#allocation2] sm:$0xff]
    %v216 = vld [vmem:[#allocation2 + $0x8] sm:$0xff]
    %v217 = vld [vmem:[#allocation2 + $0x10] sm:$0xff]
    %v218 = vld [vmem:[#allocation2 + $0x18] sm:$0xff]
    %v219 = vld [vmem:[#allocation2 + $0x20] sm:$0xff]
    %v220 = vld [vmem:[#allocation2 + $0x28] sm:$0xff]
    %v221 = vld [vmem:[#allocation2 + $0x30] sm:$0xff]
    %v222 = vld [vmem:[#allocation2 + $0x38] sm:$0xff]
    %v223 = vpack.c.bf16 %v216, %v215
    %v224 = vpack.c.bf16 %v218, %v217
    %v225 = vpack.c.bf16 %v220, %v219
    %v226 = vpack.c.bf16 %v222, %v221
    %v231 = vunpack.c.l.b16 %v223
    %v232 = vunpack.c.h.b16 %v223
    %v233 = vunpack.c.l.b16 %v224
    %v234 = vunpack.c.h.b16 %v224
    %v235 = vunpack.c.l.b16 %v225
    %v236 = vunpack.c.h.b16 %v225
    %v237 = vunpack.c.l.b16 %v226
    %v238 = vunpack.c.h.b16 %v226
    %v239 = vpack.c.b16 %v231, %v231
    %v240 = vpack.c.b16 %v232, %v232
    %v241 = vpack.c.b16 %v233, %v233
    %v242 = vpack.c.b16 %v234, %v234
    %v243 = vpack.c.b16 %v235, %v235
    %v244 = vpack.c.b16 %v236, %v236
    %v245 = vpack.c.b16 %v237, %v237
    %v246 = vpack.c.b16 %v238, %v238
    %255 = vst [vmem:[%s2] sm:$0xf] %v239
    %256 = vst [vmem:[%s2 + $0x4] sm:$0xf] %v240
    %257 = vst [vmem:[%s2 + $0x8] sm:$0xf] %v241
    %258 = vst [vmem:[%s2 + $0xc] sm:$0xf] %v242
    %259 = vst [vmem:[%s2 + $0x10] sm:$0xf] %v243
    %260 = vst [vmem:[%s2 + $0x14] sm:$0xf] %v244
    %261 = vst [vmem:[%s2 + $0x18] sm:$0xf] %v245
    %262 = vst [vmem:[%s2 + $0x1c] sm:$0xf] %v246
  $region17: #{time_mix_forward.9} parent=0 // pred_fallthru
    _
  // Predicated region
  $region18: #{time_mix_forward.9} parent=0 // pred_check
    _
  $region19: #{time_mix_forward.9} parent=0 // pred_check_branch
    %264 = sbr.rel (0) target = $region21
  $region20: #{time_mix_forward.9} parent=0 // pred_region
    _
  $region21: #{time_mix_forward.9} parent=0 // pred_fallthru
    _
  // Predicated region
  $region22: #{time_mix_forward.9} parent=0 // pred_check
    _
  $region23: #{time_mix_forward.9} parent=0 // pred_check_branch
    %266 = sbr.rel (0) target = $region25
  $region24: #{time_mix_forward.9} parent=0 // pred_region
    _
  $region25: #{time_mix_forward.9} parent=0 // pred_fallthru
    _

// kernel: time_mix_forward.8
$region0: #{time_mix_forward.8}
  #allocation0 [shape = 'u32[]', space=smem, size = 0x4, offset = 0x4, fixed_abs, tag = 'smem constant byte address 0x4 - core index']
  #allocation1 [shape = 'u32[144,128]{1,0:T(1,128)}', space=vmem, size = 0x12000, scoped, tag = 'internal scratch']
  %s0 = inlined_call_operand.vmem [shape: bf16[64,128], index: 0, kind: input, shape index: {}]
  %s1 = inlined_call_operand.vmem [shape: bf16[64,128], index: 1, kind: input, shape index: {}]
  %s2 = inlined_call_operand.vmem [shape: f32[1,128], index: 2, kind: input, shape index: {}]
  %s3 = inlined_call_operand.vmem [shape: bf16[128,160], index: 3, kind: input, shape index: {}]
  %s4 = inlined_call_operand.vmem [shape: bf16[5,32,128], index: 4, kind: input, shape index: {}]
  %s5 = inlined_call_operand.vmem [shape: f32[5,1,128], index: 5, kind: input, shape index: {}]
  %s6 = inlined_call_operand.vmem [shape: bf16[5,64,128], index: 6, kind: output, shape index: {}]
  %s7 = sld [smem:[#allocation0]]
  $region34: #{time_mix_forward.8} parent=0
    _
  %s9 = ssub.s32 1, %s7
  %s10 = scalar_select 0, %s9, %s7
  // Predicated region
  $region2: #{time_mix_forward.8} parent=0 // pred_check
    _
  $region3: #{time_mix_forward.8} parent=0 // pred_check_branch
    %12 = sbr.rel (0) target = $region5
  $region4: #{time_mix_forward.8} parent=0 // pred_region
    _
  $region5: #{time_mix_forward.8} parent=0 // pred_fallthru
    _
  // Predicated region
  $region6: #{time_mix_forward.8} parent=0 // pred_check
    _
  $region7: #{time_mix_forward.8} parent=0 // pred_check_branch
    %14 = sbr.rel (0) target = $region9
  $region8: #{time_mix_forward.8} parent=0 // pred_region
    _
  $region9: #{time_mix_forward.8} parent=0 // pred_fallthru
    _
  // Predicated region
  $region10: #{time_mix_forward.8} parent=0 // pred_check
    _
  $region11: #{time_mix_forward.8} parent=0 // pred_check_branch
    %16 = sbr.rel (0) target = $region13
  $region12: #{time_mix_forward.8} parent=0 // pred_region
    _
  $region13: #{time_mix_forward.8} parent=0 // pred_fallthru
    _
  // Predicated region
  $region14: #{time_mix_forward.8} parent=0 // pred_check
    _
  $region15: #{time_mix_forward.8} parent=0 // pred_check_branch
    %18 = sbr.rel (0) target = $region17
  $region16: #{time_mix_forward.8} parent=0 // pred_region
    _
  $region17: #{time_mix_forward.8} parent=0 // pred_fallthru
    _
  // Predicated region
  $region18: #{time_mix_forward.8} parent=0 // pred_check
    _
  $region19: #{time_mix_forward.8} parent=0 // pred_check_branch
    %20 = sbr.rel (0) target = $region21
  $region20: #{time_mix_forward.8} parent=0 // pred_region
    _
  $region21: #{time_mix_forward.8} parent=0 // pred_fallthru
    _
  // Predicated region
  $region22: #{time_mix_forward.8} parent=0 // pred_check
    _
  $region23: #{time_mix_forward.8} parent=0 // pred_check_branch
    %22 = sbr.rel (0) target = $region25
  $region24: #{time_mix_forward.8} parent=0 // pred_region
    _
  $region25: #{time_mix_forward.8} parent=0 // pred_fallthru
    _
  %v24 = vld [vmem:[%s0] sm:$0xf]
  %v25 = vld [vmem:[%s0 + $0x4] sm:$0xf]
  %v26 = vld [vmem:[%s0 + $0x8] sm:$0xf]
  %v27 = vld [vmem:[%s0 + $0xc] sm:$0xf]
  %v28 = vld [vmem:[%s0 + $0x10] sm:$0xf]
  %v29 = vld [vmem:[%s0 + $0x14] sm:$0xf]
  %v30 = vld [vmem:[%s0 + $0x18] sm:$0xf]
  %v31 = vld [vmem:[%s0 + $0x1c] sm:$0xf]
  %v32 = vunpack.c.l.bf16 %v24
  %v33 = vunpack.c.l.bf16 %v25
  %v34 = vunpack.c.l.bf16 %v26
  %v35 = vunpack.c.l.bf16 %v27
  %v36 = vunpack.c.l.bf16 %v28
  %v37 = vunpack.c.l.bf16 %v29
  %v38 = vunpack.c.l.bf16 %v30
  %v39 = vunpack.c.l.bf16 %v31
  %v40 = vld [vmem:[%s1] sm:$0xf]
  %v41 = vld [vmem:[%s1 + $0x4] sm:$0xf]
  %v42 = vld [vmem:[%s1 + $0x8] sm:$0xf]
  %v43 = vld [vmem:[%s1 + $0xc] sm:$0xf]
  %v44 = vld [vmem:[%s1 + $0x10] sm:$0xf]
  %v45 = vld [vmem:[%s1 + $0x14] sm:$0xf]
  %v46 = vld [vmem:[%s1 + $0x18] sm:$0xf]
  %v47 = vld [vmem:[%s1 + $0x1c] sm:$0xf]
  %v48 = vunpack.c.l.bf16 %v40
  %v49 = vunpack.c.l.bf16 %v41
  %v50 = vunpack.c.l.bf16 %v42
  %v51 = vunpack.c.l.bf16 %v43
  %v52 = vunpack.c.l.bf16 %v44
  %v53 = vunpack.c.l.bf16 %v45
  %v54 = vunpack.c.l.bf16 %v46
  %v55 = vunpack.c.l.bf16 %v47
  %v56 = vsub.f32 %v48, %v32
  %v57 = vsub.f32 %v49, %v33
  %v58 = vsub.f32 %v50, %v34
  %v59 = vsub.f32 %v51, %v35
  %v60 = vsub.f32 %v52, %v36
  %v61 = vsub.f32 %v53, %v37
  %v62 = vsub.f32 %v54, %v38
  %v63 = vsub.f32 %v55, %v39
  %v64 = vld [vmem:[%s2] sm:$0x1]
  %v66 = vlaneseq
  %v67 = vshrl.u32 %v66, 7
  %v68 = vsub.s32 0, %v67
  %v69 = vrot.slane %v64, %v68
  %v71 = vmul.f32 %v56, %v69
  %v72 = vmul.f32 %v57, %v69
  %v73 = vmul.f32 %v58, %v69
  %v74 = vmul.f32 %v59, %v69
  %v75 = vmul.f32 %v60, %v69
  %v76 = vmul.f32 %v61, %v69
  %v77 = vmul.f32 %v62, %v69
  %v78 = vmul.f32 %v63, %v69
  %v79 = vadd.f32 %v32, %v71
  %v80 = vadd.f32 %v33, %v72
  %v81 = vadd.f32 %v34, %v73
  %v82 = vadd.f32 %v35, %v74
  %v83 = vadd.f32 %v36, %v75
  %v84 = vadd.f32 %v37, %v76
  %v85 = vadd.f32 %v38, %v77
  %v86 = vadd.f32 %v39, %v78
  %v87 = vpack.c.bf16 %v80, %v79
  %v88 = vpack.c.bf16 %v82, %v81
  %v89 = vpack.c.bf16 %v84, %v83
  %v90 = vpack.c.bf16 %v86, %v85
  %v91 = vld [vmem:[%s3] sm:$0xff]
  %v92 = vld [vmem:[%s3 + $0x8] sm:$0xff]
  %v93 = vld [vmem:[%s3 + $0x10] sm:$0xff]
  %v94 = vld [vmem:[%s3 + $0x18] sm:$0xff]
  %v95 = vld [vmem:[%s3 + $0x20] sm:$0xff]
  %v96 = vld [vmem:[%s3 + $0x28] sm:$0xff]
  %v97 = vld [vmem:[%s3 + $0x30] sm:$0xff]
  %v98 = vld [vmem:[%s3 + $0x38] sm:$0xff]
  %v99 = vld [vmem:[%s3 + $0x40] sm:$0xff]
  %v100 = vld [vmem:[%s3 + $0x48] sm:$0xff]
  %v101 = vld [vmem:[%s3 + $0x50] sm:$0xff]
  %v102 = vld [vmem:[%s3 + $0x58] sm:$0xff]
  %v103 = vld [vmem:[%s3 + $0x60] sm:$0xff]
  %v104 = vld [vmem:[%s3 + $0x68] sm:$0xff]
  %v105 = vld [vmem:[%s3 + $0x70] sm:$0xff]
  %v106 = vld [vmem:[%s3 + $0x78] sm:$0xff]
  %v123 = vunpack.c.l.b16 %v91
  %v124 = vunpack.c.h.b16 %v91
  %v125 = vunpack.c.l.b16 %v92
  %v126 = vunpack.c.h.b16 %v92
  %v127 = vunpack.c.l.b16 %v93
  %v128 = vunpack.c.h.b16 %v93
  %v129 = vunpack.c.l.b16 %v94
  %v130 = vunpack.c.h.b16 %v94
  %v131 = vunpack.c.l.b16 %v95
  %v132 = vunpack.c.h.b16 %v95
  %v133 = vunpack.c.l.b16 %v96
  %v134 = vunpack.c.h.b16 %v96
  %v135 = vunpack.c.l.b16 %v97
  %v136 = vunpack.c.h.b16 %v97
  %v137 = vunpack.c.l.b16 %v98
  %v138 = vunpack.c.h.b16 %v98
  %v139 = vunpack.c.l.b16 %v99
  %v140 = vunpack.c.h.b16 %v99
  %v141 = vunpack.c.l.b16 %v100
  %v142 = vunpack.c.h.b16 %v100
  %v143 = vunpack.c.l.b16 %v101
  %v144 = vunpack.c.h.b16 %v101
  %v145 = vunpack.c.l.b16 %v102
  %v146 = vunpack.c.h.b16 %v102
  %v147 = vunpack.c.l.b16 %v103
  %v148 = vunpack.c.h.b16 %v103
  %v149 = vunpack.c.l.b16 %v104
  %v150 = vunpack.c.h.b16 %v104
  %v151 = vunpack.c.l.b16 %v105
  %v152 = vunpack.c.h.b16 %v105
  %v153 = vunpack.c.l.b16 %v106
  %v154 = vunpack.c.h.b16 %v106
  %v155 = vpack.c.b16 %v125, %v123
  %v156 = vpack.c.b16 %v126, %v124
  %v157 = vpack.c.b16 %v129, %v127
  %v158 = vpack.c.b16 %v130, %v128
  %v159 = vpack.c.b16 %v133, %v131
  %v160 = vpack.c.b16 %v134, %v132
  %v161 = vpack.c.b16 %v137, %v135
  %v162 = vpack.c.b16 %v138, %v136
  %v163 = vpack.c.b16 %v141, %v139
  %v164 = vpack.c.b16 %v142, %v140
  %v165 = vpack.c.b16 %v145, %v143
  %v166 = vpack.c.b16 %v146, %v144
  %v167 = vpack.c.b16 %v149, %v147
  %v168 = vpack.c.b16 %v150, %v148
  %v169 = vpack.c.b16 %v153, %v151
  %v170 = vpack.c.b16 %v154, %v152
  %187 = vmatprep.subr.bf16.mxu0 %v170
  %188 = vmatpush1.bf16.msra.mxu0 %v169
  %189 = vmatprep.subr.bf16.mxu0 %v168
  %190 = vmatpush1.bf16.msra.mxu0 %v167
  %191 = vmatprep.subr.bf16.mxu0 %v166
  %192 = vmatpush1.bf16.msra.mxu0 %v165
  %193 = vmatprep.subr.bf16.mxu0 %v164
  %194 = vmatpush1.bf16.msra.mxu0 %v163
  %195 = vmatprep.subr.bf16.mxu0 %v162
  %196 = vmatpush1.bf16.msra.mxu0 %v161
  %197 = vmatprep.subr.bf16.mxu0 %v160
  %198 = vmatpush1.bf16.msra.mxu0 %v159
  %199 = vmatprep.subr.bf16.mxu0 %v158
  %200 = vmatpush1.bf16.msra.mxu0 %v157
  %201 = vmatprep.subr.bf16.mxu0 %v156
  %202 = vmatpush1.bf16.msra.mxu0 %v155
  %203 = vmatprep.subr.bf16.mxu0 0
  %204 = vmatpush2.bf16.msra.mxu0 0
  %205 = vmatprep.subr.bf16.mxu0 0
  %206 = vmatpush2.bf16.msra.mxu0 0
  %207 = vmatprep.subr.bf16.mxu0 0
  %208 = vmatpush2.bf16.msra.mxu0 0
  %209 = vmatprep.subr.bf16.mxu0 0
  %210 = vmatpush2.bf16.msra.mxu0 0
  %211 = vmatprep.subr.bf16.mxu0 0
  %212 = vmatpush2.bf16.msra.mxu0 0
  %213 = vmatprep.subr.bf16.mxu0 0
  %214 = vmatpush2.bf16.msra.mxu0 0
  %215 = vmatprep.subr.bf16.mxu0 0
  %216 = vmatpush2.bf16.msra.mxu0 0
  %217 = vmatprep.subr.bf16.mxu0 0
  %218 = vmatpush2.bf16.msra.mxu0 0
  %219 = vmatprep.mubr.bf16.mxu0 0
  %220 = vmatmul.mubr.bf16.gmra.mxu0 %v87
  %v221 = vpop.f32.mrf.mxu0
  %v222 = vadd.f32 0.0, %v221
  %v223 = vpop.f32.mrf.mxu0
  %v224 = vadd.f32 0.0, %v223
  %v225 = vpop.f32.mrf.mxu0
  %v226 = vadd.f32 0.0, %v225
  %v227 = vpop.f32.mrf.mxu0
  %v228 = vadd.f32 0.0, %v227
  %229 = vmatprep.mubr.bf16.mxu0 0
  %230 = vmatmul.mubr.bf16.gmra.mxu0 %v88
  %v231 = vpop.f32.mrf.mxu0
  %v232 = vadd.f32 0.0, %v231
  %v233 = vpop.f32.mrf.mxu0
  %v234 = vadd.f32 0.0, %v233
  %v235 = vpop.f32.mrf.mxu0
  %v236 = vadd.f32 0.0, %v235
  %v237 = vpop.f32.mrf.mxu0
  %v238 = vadd.f32 0.0, %v237
  %239 = vmatprep.mubr.bf16.mxu0 0
  %240 = vmatmul.mubr.bf16.gmra.mxu0 %v89
  %v241 = vpop.f32.mrf.mxu0
  %v242 = vadd.f32 0.0, %v241
  %v243 = vpop.f32.mrf.mxu0
  %v244 = vadd.f32 0.0, %v243
  %v245 = vpop.f32.mrf.mxu0
  %v246 = vadd.f32 0.0, %v245
  %v247 = vpop.f32.mrf.mxu0
  %v248 = vadd.f32 0.0, %v247
  %249 = vmatprep.mubr.bf16.mxu0 0
  %250 = vmatmul.mubr.bf16.gmra.mxu0 %v90
  %v251 = vpop.f32.mrf.mxu0
  %v252 = vadd.f32 0.0, %v251
  %v253 = vpop.f32.mrf.mxu0
  %v254 = vadd.f32 0.0, %v253
  %v255 = vpop.f32.mrf.mxu0
  %v256 = vadd.f32 0.0, %v255
  %v257 = vpop.f32.mrf.mxu0
  %v258 = vadd.f32 0.0, %v257
  %259 = vdwg.mxu0
  %v260 = vtanh.pop %v222
  %v261 = vtanh.pop %v224
  %v262 = vtanh.pop %v226
  %v263 = vtanh.pop %v228
  %v264 = vtanh.pop %v232
  %v265 = vtanh.pop %v234
  %v266 = vtanh.pop %v236
  %v267 = vtanh.pop %v238
  %v268 = vtanh.pop %v242
  %v269 = vtanh.pop %v244
  %v270 = vtanh.pop %v246
  %v271 = vtanh.pop %v248
  %v272 = vtanh.pop %v252
  %v273 = vtanh.pop %v254
  %v274 = vtanh.pop %v256
  %v275 = vtanh.pop %v258
  %v276 = vpack.c.bf16 %v262, %v260
  %v277 = vpack.c.bf16 %v266, %v264
  %v278 = vpack.c.bf16 %v270, %v268
  %v279 = vpack.c.bf16 %v274, %v272
  %v280 = vld [vmem:[%s4] sm:$0xf]
  %v281 = vld [vmem:[%s4 + $0x4] sm:$0xf]
  %v282 = vld [vmem:[%s4 + $0x8] sm:$0xf]
  %v283 = vld [vmem:[%s4 + $0xc] sm:$0xf]
  %v288 = vunpack.c.l.b16 %v280
  %v289 = vunpack.c.l.b16 %v281
  %v290 = vunpack.c.l.b16 %v282
  %v291 = vunpack.c.l.b16 %v283
  %v292 = vpack.c.b16 %v289, %v288
  %v293 = vpack.c.b16 %v291, %v290
  %vm296 = vcmask 261120
  %v298 = vsel %vm296, %v276, 0
  %v301 = vsel %vm296, %v277, 0
  %v304 = vsel %vm296, %v278, 0
  %v307 = vsel %vm296, %v279, 0
  %309 = vmatprep.subr.bf16.mxu0 0
  %310 = vmatpush1.bf16.msra.mxu0 0
  %311 = vmatprep.subr.bf16.mxu0 0
  %312 = vmatpush1.bf16.msra.mxu0 0
  %313 = vmatprep.subr.bf16.mxu0 0
  %314 = vmatpush1.bf16.msra.mxu0 0
  %315 = vmatprep.subr.bf16.mxu0 0
  %316 = vmatpush1.bf16.msra.mxu0 0
  %317 = vmatprep.subr.bf16.mxu0 0
  %318 = vmatpush1.bf16.msra.mxu0 0
  %319 = vmatprep.subr.bf16.mxu0 0
  %320 = vmatpush1.bf16.msra.mxu0 0
  %321 = vmatprep.subr.bf16.mxu0 0
  %322 = vmatpush1.bf16.msra.mxu0 %v293
  %323 = vmatprep.subr.bf16.mxu0 0
  %324 = vmatpush1.bf16.msra.mxu0 %v292
  %325 = vmatprep.subr.bf16.mxu0 0
  %326 = vmatpush2.bf16.msra.mxu0 0
  %327 = vmatprep.subr.bf16.mxu0 0
  %328 = vmatpush2.bf16.msra.mxu0 0
  %329 = vmatprep.subr.bf16.mxu0 0
  %330 = vmatpush2.bf16.msra.mxu0 0
  %331 = vmatprep.subr.bf16.mxu0 0
  %332 = vmatpush2.bf16.msra.mxu0 0
  %333 = vmatprep.subr.bf16.mxu0 0
  %334 = vmatpush2.bf16.msra.mxu0 0
  %335 = vmatprep.subr.bf16.mxu0 0
  %336 = vmatpush2.bf16.msra.mxu0 0
  %337 = vmatprep.subr.bf16.mxu0 0
  %338 = vmatpush2.bf16.msra.mxu0 0
  %339 = vmatprep.subr.bf16.mxu0 0
  %340 = vmatpush2.bf16.msra.mxu0 0
  %341 = vmatprep.mubr.bf16.mxu0 0
  %342 = vmatmul.mubr.bf16.gmra.mxu0 %v298
  %v343 = vpop.f32.mrf.mxu0
  %v344 = vadd.f32 0.0, %v343
  %v345 = vpop.f32.mrf.mxu0
  %v346 = vpop.f32.mrf.mxu0
  %v347 = vadd.f32 0.0, %v346
  %v348 = vpop.f32.mrf.mxu0
  %349 = vmatprep.mubr.bf16.mxu0 0
  %350 = vmatmul.mubr.bf16.gmra.mxu0 %v301
  %v351 = vpop.f32.mrf.mxu0
  %v352 = vadd.f32 0.0, %v351
  %v353 = vpop.f32.mrf.mxu0
  %v354 = vpop.f32.mrf.mxu0
  %v355 = vadd.f32 0.0, %v354
  %v356 = vpop.f32.mrf.mxu0
  %357 = vmatprep.mubr.bf16.mxu0 0
  %358 = vmatmul.mubr.bf16.gmra.mxu0 %v304
  %v359 = vpop.f32.mrf.mxu0
  %v360 = vadd.f32 0.0, %v359
  %v361 = vpop.f32.mrf.mxu0
  %v362 = vpop.f32.mrf.mxu0
  %v363 = vadd.f32 0.0, %v362
  %v364 = vpop.f32.mrf.mxu0
  %365 = vmatprep.mubr.bf16.mxu0 0
  %366 = vmatmul.mubr.bf16.gmra.mxu0 %v307
  %v367 = vpop.f32.mrf.mxu0
  %v368 = vadd.f32 0.0, %v367
  %v369 = vpop.f32.mrf.mxu0
  %v370 = vpop.f32.mrf.mxu0
  %v371 = vadd.f32 0.0, %v370
  %v372 = vpop.f32.mrf.mxu0
  %373 = vdwg.mxu0
  %v374 = vld [vmem:[%s5] sm:$0x1]
  %v376 = vlaneseq
  %v377 = vshrl.u32 %v376, 7
  %v378 = vsub.s32 0, %v377
  %v379 = vrot.slane %v374, %v378
  %v381 = vadd.f32 %v379, %v344
  %v382 = vadd.f32 %v379, %v347
  %v383 = vadd.f32 %v379, %v352
  %v384 = vadd.f32 %v379, %v355
  %v385 = vadd.f32 %v379, %v360
  %v386 = vadd.f32 %v379, %v363
  %v387 = vadd.f32 %v379, %v368
  %v388 = vadd.f32 %v379, %v371
  %v389 = vmul.f32 %v56, %v381
  %v390 = vmul.f32 %v57, %v382
  %v391 = vmul.f32 %v58, %v383
  %v392 = vmul.f32 %v59, %v384
  %v393 = vmul.f32 %v60, %v385
  %v394 = vmul.f32 %v61, %v386
  %v395 = vmul.f32 %v62, %v387
  %v396 = vmul.f32 %v63, %v388
  %v397 = vadd.f32 %v32, %v389
  %v398 = vadd.f32 %v33, %v390
  %v399 = vadd.f32 %v34, %v391
  %v400 = vadd.f32 %v35, %v392
  %v401 = vadd.f32 %v36, %v393
  %v402 = vadd.f32 %v37, %v394
  %v403 = vadd.f32 %v38, %v395
  %v404 = vadd.f32 %v39, %v396
  %v405 = vpack.c.bf16 %v398, %v397
  %v406 = vpack.c.bf16 %v400, %v399
  %v407 = vpack.c.bf16 %v402, %v401
  %v408 = vpack.c.bf16 %v404, %v403
  %v413 = vunpack.c.l.b16 %v405
  %v414 = vunpack.c.h.b16 %v405
  %v415 = vunpack.c.l.b16 %v406
  %v416 = vunpack.c.h.b16 %v406
  %v417 = vunpack.c.l.b16 %v407
  %v418 = vunpack.c.h.b16 %v407
  %v419 = vunpack.c.l.b16 %v408
  %v420 = vunpack.c.h.b16 %v408
  %v421 = vpack.c.b16 %v413, %v413
  %v422 = vpack.c.b16 %v414, %v414
  %v423 = vpack.c.b16 %v415, %v415
  %v424 = vpack.c.b16 %v416, %v416
  %v425 = vpack.c.b16 %v417, %v417
  %v426 = vpack.c.b16 %v418, %v418
  %v427 = vpack.c.b16 %v419, %v419
  %v428 = vpack.c.b16 %v420, %v420
  %437 = vst [vmem:[%s6] sm:$0xf] %v421
  %438 = vst [vmem:[%s6 + $0x4] sm:$0xf] %v422
  %439 = vst [vmem:[%s6 + $0x8] sm:$0xf] %v423
  %440 = vst [vmem:[%s6 + $0xc] sm:$0xf] %v424
  %441 = vst [vmem:[%s6 + $0x10] sm:$0xf] %v425
  %442 = vst [vmem:[%s6 + $0x14] sm:$0xf] %v426
  %443 = vst [vmem:[%s6 + $0x18] sm:$0xf] %v427
  %444 = vst [vmem:[%s6 + $0x1c] sm:$0xf] %v428
  %s445 = scalar_lea.vmem %s4, 16
  %v446 = vld [vmem:[%s445] sm:$0xf]
  %v447 = vld [vmem:[%s445 + $0x4] sm:$0xf]
  %v448 = vld [vmem:[%s445 + $0x8] sm:$0xf]
  %v449 = vld [vmem:[%s445 + $0xc] sm:$0xf]
  %454 = vrot.lane.b32.xlu0 %v276, 96
  %v455 = vpop.permute.xlu0 %454
  %456 = vrot.lane.b32.xlu0 %v277, 96
  %v457 = vpop.permute.xlu0 %456
  %458 = vrot.lane.b32.xlu0 %v278, 96
  %v459 = vpop.permute.xlu0 %458
  %460 = vrot.lane.b32.xlu0 %v279, 96
  %v461 = vpop.permute.xlu0 %460
  %v466 = vunpack.c.l.b16 %v446
  %v467 = vunpack.c.l.b16 %v447
  %v468 = vunpack.c.l.b16 %v448
  %v469 = vunpack.c.l.b16 %v449
  %v470 = vpack.c.b16 %v467, %v466
  %v471 = vpack.c.b16 %v469, %v468
  %v475 = vsel %vm296, %v455, 0
  %v478 = vsel %vm296, %v457, 0
  %v481 = vsel %vm296, %v459, 0
  %v484 = vsel %vm296, %v461, 0
  %486 = vmatprep.subr.bf16.mxu0 0
  %487 = vmatpush1.bf16.msra.mxu0 0
  %488 = vmatprep.subr.bf16.mxu0 0
  %489 = vmatpush1.bf16.msra.mxu0 0
  %490 = vmatprep.subr.bf16.mxu0 0
  %491 = vmatpush1.bf16.msra.mxu0 0
  %492 = vmatprep.subr.bf16.mxu0 0
  %493 = vmatpush1.bf16.msra.mxu0 0
  %494 = vmatprep.subr.bf16.mxu0 0
  %495 = vmatpush1.bf16.msra.mxu0 0
  %496 = vmatprep.subr.bf16.mxu0 0
  %497 = vmatpush1.bf16.msra.mxu0 0
  %498 = vmatprep.subr.bf16.mxu0 0
  %499 = vmatpush1.bf16.msra.mxu0 %v471
  %500 = vmatprep.subr.bf16.mxu0 0
  %501 = vmatpush1.bf16.msra.mxu0 %v470
  %502 = vmatprep.subr.bf16.mxu0 0
  %503 = vmatpush2.bf16.msra.mxu0 0
  %504 = vmatprep.subr.bf16.mxu0 0
  %505 = vmatpush2.bf16.msra.mxu0 0
  %506 = vmatprep.subr.bf16.mxu0 0
  %507 = vmatpush2.bf16.msra.mxu0 0
  %508 = vmatprep.subr.bf16.mxu0 0
  %509 = vmatpush2.bf16.msra.mxu0 0
  %510 = vmatprep.subr.bf16.mxu0 0
  %511 = vmatpush2.bf16.msra.mxu0 0
  %512 = vmatprep.subr.bf16.mxu0 0
  %513 = vmatpush2.bf16.msra.mxu0 0
  %514 = vmatprep.subr.bf16.mxu0 0
  %515 = vmatpush2.bf16.msra.mxu0 0
  %516 = vmatprep.subr.bf16.mxu0 0
  %517 = vmatpush2.bf16.msra.mxu0 0
  %518 = vmatprep.mubr.bf16.mxu0 0
  %519 = vmatmul.mubr.bf16.gmra.mxu0 %v475
  %v520 = vpop.f32.mrf.mxu0
  %v521 = vadd.f32 0.0, %v520
  %v522 = vpop.f32.mrf.mxu0
  %v523 = vpop.f32.mrf.mxu0
  %v524 = vadd.f32 0.0, %v523
  %v525 = vpop.f32.mrf.mxu0
  %526 = vmatprep.mubr.bf16.mxu0 0
  %527 = vmatmul.mubr.bf16.gmra.mxu0 %v478
  %v528 = vpop.f32.mrf.mxu0
  %v529 = vadd.f32 0.0, %v528
  %v530 = vpop.f32.mrf.mxu0
  %v531 = vpop.f32.mrf.mxu0
  %v532 = vadd.f32 0.0, %v531
  %v533 = vpop.f32.mrf.mxu0
  %534 = vmatprep.mubr.bf16.mxu0 0
  %535 = vmatmul.mubr.bf16.gmra.mxu0 %v481
  %v536 = vpop.f32.mrf.mxu0
  %v537 = vadd.f32 0.0, %v536
  %v538 = vpop.f32.mrf.mxu0
  %v539 = vpop.f32.mrf.mxu0
  %v540 = vadd.f32 0.0, %v539
  %v541 = vpop.f32.mrf.mxu0
  %542 = vmatprep.mubr.bf16.mxu0 0
  %543 = vmatmul.mubr.bf16.gmra.mxu0 %v484
  %v544 = vpop.f32.mrf.mxu0
  %v545 = vadd.f32 0.0, %v544
  %v546 = vpop.f32.mrf.mxu0
  %v547 = vpop.f32.mrf.mxu0
  %v548 = vadd.f32 0.0, %v547
  %v549 = vpop.f32.mrf.mxu0
  %550 = vdwg.mxu0
  %s551 = scalar_lea.vmem %s5, 1
  %v552 = vld [vmem:[%s551] sm:$0x1]
  %v554 = vlaneseq
  %v555 = vshrl.u32 %v554, 7
  %v556 = vsub.s32 0, %v555
  %v557 = vrot.slane %v552, %v556
  %v559 = vadd.f32 %v557, %v521
  %v560 = vadd.f32 %v557, %v524
  %v561 = vadd.f32 %v557, %v529
  %v562 = vadd.f32 %v557, %v532
  %v563 = vadd.f32 %v557, %v537
  %v564 = vadd.f32 %v557, %v540
  %v565 = vadd.f32 %v557, %v545
  %v566 = vadd.f32 %v557, %v548
  %v567 = vmul.f32 %v56, %v559
  %v568 = vmul.f32 %v57, %v560
  %v569 = vmul.f32 %v58, %v561
  %v570 = vmul.f32 %v59, %v562
  %v571 = vmul.f32 %v60, %v563
  %v572 = vmul.f32 %v61, %v564
  %v573 = vmul.f32 %v62, %v565
  %v574 = vmul.f32 %v63, %v566
  %v575 = vadd.f32 %v32, %v567
  %v576 = vadd.f32 %v33, %v568
  %v577 = vadd.f32 %v34, %v569
  %v578 = vadd.f32 %v35, %v570
  %v579 = vadd.f32 %v36, %v571
  %v580 = vadd.f32 %v37, %v572
  %v581 = vadd.f32 %v38, %v573
  %v582 = vadd.f32 %v39, %v574
  %v583 = vpack.c.bf16 %v576, %v575
  %v584 = vpack.c.bf16 %v578, %v577
  %v585 = vpack.c.bf16 %v580, %v579
  %v586 = vpack.c.bf16 %v582, %v581
  %v591 = vunpack.c.l.b16 %v583
  %v592 = vunpack.c.h.b16 %v583
  %v593 = vunpack.c.l.b16 %v584
  %v594 = vunpack.c.h.b16 %v584
  %v595 = vunpack.c.l.b16 %v585
  %v596 = vunpack.c.h.b16 %v585
  %v597 = vunpack.c.l.b16 %v586
  %v598 = vunpack.c.h.b16 %v586
  %v599 = vpack.c.b16 %v591, %v591
  %v600 = vpack.c.b16 %v592, %v592
  %v601 = vpack.c.b16 %v593, %v593
  %v602 = vpack.c.b16 %v594, %v594
  %v603 = vpack.c.b16 %v595, %v595
  %v604 = vpack.c.b16 %v596, %v596
  %v605 = vpack.c.b16 %v597, %v597
  %v606 = vpack.c.b16 %v598, %v598
  %s615 = scalar_lea.vmem %s6, 32
  %616 = vst [vmem:[%s615] sm:$0xf] %v599
  %617 = vst [vmem:[%s615 + $0x4] sm:$0xf] %v600
  %618 = vst [vmem:[%s615 + $0x8] sm:$0xf] %v601
  %619 = vst [vmem:[%s615 + $0xc] sm:$0xf] %v602
  %620 = vst [vmem:[%s615 + $0x10] sm:$0xf] %v603
  %621 = vst [vmem:[%s615 + $0x14] sm:$0xf] %v604
  %622 = vst [vmem:[%s615 + $0x18] sm:$0xf] %v605
  %623 = vst [vmem:[%s615 + $0x1c] sm:$0xf] %v606
  %s624 = scalar_lea.vmem %s4, 32
  %v625 = vld [vmem:[%s624] sm:$0xf]
  %v626 = vld [vmem:[%s624 + $0x4] sm:$0xf]
  %v627 = vld [vmem:[%s624 + $0x8] sm:$0xf]
  %v628 = vld [vmem:[%s624 + $0xc] sm:$0xf]
  %629 = vrot.lane.b32.xlu0 %v276, 64
  %v630 = vpop.permute.xlu0 %629
  %631 = vrot.lane.b32.xlu0 %v277, 64
  %v632 = vpop.permute.xlu0 %631
  %633 = vrot.lane.b32.xlu0 %v278, 64
  %v634 = vpop.permute.xlu0 %633
  %635 = vrot.lane.b32.xlu0 %v279, 64
  %v636 = vpop.permute.xlu0 %635
  %v641 = vunpack.c.l.b16 %v625
  %v642 = vunpack.c.l.b16 %v626
  %v643 = vunpack.c.l.b16 %v627
  %v644 = vunpack.c.l.b16 %v628
  %v645 = vpack.c.b16 %v642, %v641
  %v646 = vpack.c.b16 %v644, %v643
  %v650 = vsel %vm296, %v630, 0
  %v653 = vsel %vm296, %v632, 0
  %v656 = vsel %vm296, %v634, 0
  %v659 = vsel %vm296, %v636, 0
  %661 = vmatprep.subr.bf16.mxu0 0
  %662 = vmatpush1.bf16.msra.mxu0 0
  %663 = vmatprep.subr.bf16.mxu0 0
  %664 = vmatpush1.bf16.msra.mxu0 0
  %665 = vmatprep.subr.bf16.mxu0 0
  %666 = vmatpush1.bf16.msra.mxu0 0
  %667 = vmatprep.subr.bf16.mxu0 0
  %668 = vmatpush1.bf16.msra.mxu0 0
  %669 = vmatprep.subr.bf16.mxu0 0
  %670 = vmatpush1.bf16.msra.mxu0 0
  %671 = vmatprep.subr.bf16.mxu0 0
  %672 = vmatpush1.bf16.msra.mxu0 0
  %673 = vmatprep.subr.bf16.mxu0 0
  %674 = vmatpush1.bf16.msra.mxu0 %v646
  %675 = vmatprep.subr.bf16.mxu0 0
  %676 = vmatpush1.bf16.msra.mxu0 %v645
  %677 = vmatprep.subr.bf16.mxu0 0
  %678 = vmatpush2.bf16.msra.mxu0 0
  %679 = vmatprep.subr.bf16.mxu0 0
  %680 = vmatpush2.bf16.msra.mxu0 0
  %681 = vmatprep.subr.bf16.mxu0 0
  %682 = vmatpush2.bf16.msra.mxu0 0
  %683 = vmatprep.subr.bf16.mxu0 0
  %684 = vmatpush2.bf16.msra.mxu0 0
  %685 = vmatprep.subr.bf16.mxu0 0
  %686 = vmatpush2.bf16.msra.mxu0 0
  %687 = vmatprep.subr.bf16.mxu0 0
  %688 = vmatpush2.bf16.msra.mxu0 0
  %689 = vmatprep.subr.bf16.mxu0 0
  %690 = vmatpush2.bf16.msra.mxu0 0
  %691 = vmatprep.subr.bf16.mxu0 0
  %692 = vmatpush2.bf16.msra.mxu0 0
  %693 = vmatprep.mubr.bf16.mxu0 0
  %694 = vmatmul.mubr.bf16.gmra.mxu0 %v650
  %v695 = vpop.f32.mrf.mxu0
  %v696 = vadd.f32 0.0, %v695
  %v697 = vpop.f32.mrf.mxu0
  %v698 = vpop.f32.mrf.mxu0
  %v699 = vadd.f32 0.0, %v698
  %v700 = vpop.f32.mrf.mxu0
  %701 = vmatprep.mubr.bf16.mxu0 0
  %702 = vmatmul.mubr.bf16.gmra.mxu0 %v653
  %v703 = vpop.f32.mrf.mxu0
  %v704 = vadd.f32 0.0, %v703
  %v705 = vpop.f32.mrf.mxu0
  %v706 = vpop.f32.mrf.mxu0
  %v707 = vadd.f32 0.0, %v706
  %v708 = vpop.f32.mrf.mxu0
  %709 = vmatprep.mubr.bf16.mxu0 0
  %710 = vmatmul.mubr.bf16.gmra.mxu0 %v656
  %v711 = vpop.f32.mrf.mxu0
  %v712 = vadd.f32 0.0, %v711
  %v713 = vpop.f32.mrf.mxu0
  %v714 = vpop.f32.mrf.mxu0
  %v715 = vadd.f32 0.0, %v714
  %v716 = vpop.f32.mrf.mxu0
  %717 = vmatprep.mubr.bf16.mxu0 0
  %718 = vmatmul.mubr.bf16.gmra.mxu0 %v659
  %v719 = vpop.f32.mrf.mxu0
  %v720 = vadd.f32 0.0, %v719
  %v721 = vpop.f32.mrf.mxu0
  %v722 = vpop.f32.mrf.mxu0
  %v723 = vadd.f32 0.0, %v722
  %v724 = vpop.f32.mrf.mxu0
  %725 = vdwg.mxu0
  %s726 = scalar_lea.vmem %s5, 2
  %v727 = vld [vmem:[%s726] sm:$0x1]
  %v729 = vlaneseq
  %v730 = vshrl.u32 %v729, 7
  %v731 = vsub.s32 0, %v730
  %v732 = vrot.slane %v727, %v731
  %v734 = vadd.f32 %v732, %v696
  %v735 = vadd.f32 %v732, %v699
  %v736 = vadd.f32 %v732, %v704
  %v737 = vadd.f32 %v732, %v707
  %v738 = vadd.f32 %v732, %v712
  %v739 = vadd.f32 %v732, %v715
  %v740 = vadd.f32 %v732, %v720
  %v741 = vadd.f32 %v732, %v723
  %v742 = vmul.f32 %v56, %v734
  %v743 = vmul.f32 %v57, %v735
  %v744 = vmul.f32 %v58, %v736
  %v745 = vmul.f32 %v59, %v737
  %v746 = vmul.f32 %v60, %v738
  %v747 = vmul.f32 %v61, %v739
  %v748 = vmul.f32 %v62, %v740
  %v749 = vmul.f32 %v63, %v741
  %v750 = vadd.f32 %v32, %v742
  %v751 = vadd.f32 %v33, %v743
  %v752 = vadd.f32 %v34, %v744
  %v753 = vadd.f32 %v35, %v745
  %v754 = vadd.f32 %v36, %v746
  %v755 = vadd.f32 %v37, %v747
  %v756 = vadd.f32 %v38, %v748
  %v757 = vadd.f32 %v39, %v749
  %v758 = vpack.c.bf16 %v751, %v750
  %v759 = vpack.c.bf16 %v753, %v752
  %v760 = vpack.c.bf16 %v755, %v754
  %v761 = vpack.c.bf16 %v757, %v756
  %v766 = vunpack.c.l.b16 %v758
  %v767 = vunpack.c.h.b16 %v758
  %v768 = vunpack.c.l.b16 %v759
  %v769 = vunpack.c.h.b16 %v759
  %v770 = vunpack.c.l.b16 %v760
  %v771 = vunpack.c.h.b16 %v760
  %v772 = vunpack.c.l.b16 %v761
  %v773 = vunpack.c.h.b16 %v761
  %v774 = vpack.c.b16 %v766, %v766
  %v775 = vpack.c.b16 %v767, %v767
  %v776 = vpack.c.b16 %v768, %v768
  %v777 = vpack.c.b16 %v769, %v769
  %v778 = vpack.c.b16 %v770, %v770
  %v779 = vpack.c.b16 %v771, %v771
  %v780 = vpack.c.b16 %v772, %v772
  %v781 = vpack.c.b16 %v773, %v773
  %s790 = scalar_lea.vmem %s6, 64
  %791 = vst [vmem:[%s790] sm:$0xf] %v774
  %792 = vst [vmem:[%s790 + $0x4] sm:$0xf] %v775
  %793 = vst [vmem:[%s790 + $0x8] sm:$0xf] %v776
  %794 = vst [vmem:[%s790 + $0xc] sm:$0xf] %v777
  %795 = vst [vmem:[%s790 + $0x10] sm:$0xf] %v778
  %796 = vst [vmem:[%s790 + $0x14] sm:$0xf] %v779
  %797 = vst [vmem:[%s790 + $0x18] sm:$0xf] %v780
  %798 = vst [vmem:[%s790 + $0x1c] sm:$0xf] %v781
  %s799 = scalar_lea.vmem %s4, 48
  %v800 = vld [vmem:[%s799] sm:$0xf]
  %v801 = vld [vmem:[%s799 + $0x4] sm:$0xf]
  %v802 = vld [vmem:[%s799 + $0x8] sm:$0xf]
  %v803 = vld [vmem:[%s799 + $0xc] sm:$0xf]
  %804 = vrot.lane.b32.xlu0 %v276, 32
  %v805 = vpop.permute.xlu0 %804
  %806 = vrot.lane.b32.xlu0 %v277, 32
  %v807 = vpop.permute.xlu0 %806
  %808 = vrot.lane.b32.xlu0 %v278, 32
  %v809 = vpop.permute.xlu0 %808
  %810 = vrot.lane.b32.xlu0 %v279, 32
  %v811 = vpop.permute.xlu0 %810
  %v816 = vunpack.c.l.b16 %v800
  %v817 = vunpack.c.l.b16 %v801
  %v818 = vunpack.c.l.b16 %v802
  %v819 = vunpack.c.l.b16 %v803
  %v820 = vpack.c.b16 %v817, %v816
  %v821 = vpack.c.b16 %v819, %v818
  %v825 = vsel %vm296, %v805, 0
  %v828 = vsel %vm296, %v807, 0
  %v831 = vsel %vm296, %v809, 0
  %v834 = vsel %vm296, %v811, 0
  %836 = vmatprep.subr.bf16.mxu0 0
  %837 = vmatpush1.bf16.msra.mxu0 0
  %838 = vmatprep.subr.bf16.mxu0 0
  %839 = vmatpush1.bf16.msra.mxu0 0
  %840 = vmatprep.subr.bf16.mxu0 0
  %841 = vmatpush1.bf16.msra.mxu0 0
  %842 = vmatprep.subr.bf16.mxu0 0
  %843 = vmatpush1.bf16.msra.mxu0 0
  %844 = vmatprep.subr.bf16.mxu0 0
  %845 = vmatpush1.bf16.msra.mxu0 0
  %846 = vmatprep.subr.bf16.mxu0 0
  %847 = vmatpush1.bf16.msra.mxu0 0
  %848 = vmatprep.subr.bf16.mxu0 0
  %849 = vmatpush1.bf16.msra.mxu0 %v821
  %850 = vmatprep.subr.bf16.mxu0 0
  %851 = vmatpush1.bf16.msra.mxu0 %v820
  %852 = vmatprep.subr.bf16.mxu0 0
  %853 = vmatpush2.bf16.msra.mxu0 0
  %854 = vmatprep.subr.bf16.mxu0 0
  %855 = vmatpush2.bf16.msra.mxu0 0
  %856 = vmatprep.subr.bf16.mxu0 0
  %857 = vmatpush2.bf16.msra.mxu0 0
  %858 = vmatprep.subr.bf16.mxu0 0
  %859 = vmatpush2.bf16.msra.mxu0 0
  %860 = vmatprep.subr.bf16.mxu0 0
  %861 = vmatpush2.bf16.msra.mxu0 0
  %862 = vmatprep.subr.bf16.mxu0 0
  %863 = vmatpush2.bf16.msra.mxu0 0
  %864 = vmatprep.subr.bf16.mxu0 0
  %865 = vmatpush2.bf16.msra.mxu0 0
  %866 = vmatprep.subr.bf16.mxu0 0
  %867 = vmatpush2.bf16.msra.mxu0 0
  %868 = vmatprep.mubr.bf16.mxu0 0
  %869 = vmatmul.mubr.bf16.gmra.mxu0 %v825
  %v870 = vpop.f32.mrf.mxu0
  %v871 = vadd.f32 0.0, %v870
  %v872 = vpop.f32.mrf.mxu0
  %v873 = vpop.f32.mrf.mxu0
  %v874 = vadd.f32 0.0, %v873
  %v875 = vpop.f32.mrf.mxu0
  %876 = vmatprep.mubr.bf16.mxu0 0
  %877 = vmatmul.mubr.bf16.gmra.mxu0 %v828
  %v878 = vpop.f32.mrf.mxu0
  %v879 = vadd.f32 0.0, %v878
  %v880 = vpop.f32.mrf.mxu0
  %v881 = vpop.f32.mrf.mxu0
  %v882 = vadd.f32 0.0, %v881
  %v883 = vpop.f32.mrf.mxu0
  %884 = vmatprep.mubr.bf16.mxu0 0
  %885 = vmatmul.mubr.bf16.gmra.mxu0 %v831
  %v886 = vpop.f32.mrf.mxu0
  %v887 = vadd.f32 0.0, %v886
  %v888 = vpop.f32.mrf.mxu0
  %v889 = vpop.f32.mrf.mxu0
  %v890 = vadd.f32 0.0, %v889
  %v891 = vpop.f32.mrf.mxu0
  %892 = vmatprep.mubr.bf16.mxu0 0
  %893 = vmatmul.mubr.bf16.gmra.mxu0 %v834
  %v894 = vpop.f32.mrf.mxu0
  %v895 = vadd.f32 0.0, %v894
  %v896 = vpop.f32.mrf.mxu0
  %v897 = vpop.f32.mrf.mxu0
  %v898 = vadd.f32 0.0, %v897
  %v899 = vpop.f32.mrf.mxu0
  %900 = vdwg.mxu0
  %s901 = scalar_lea.vmem %s5, 3
  %v902 = vld [vmem:[%s901] sm:$0x1]
  %v904 = vlaneseq
  %v905 = vshrl.u32 %v904, 7
  %v906 = vsub.s32 0, %v905
  %v907 = vrot.slane %v902, %v906
  %v909 = vadd.f32 %v907, %v871
  %v910 = vadd.f32 %v907, %v874
  %v911 = vadd.f32 %v907, %v879
  %v912 = vadd.f32 %v907, %v882
  %v913 = vadd.f32 %v907, %v887
  %v914 = vadd.f32 %v907, %v890
  %v915 = vadd.f32 %v907, %v895
  %v916 = vadd.f32 %v907, %v898
  %v917 = vmul.f32 %v56, %v909
  %v918 = vmul.f32 %v57, %v910
  %v919 = vmul.f32 %v58, %v911
  %v920 = vmul.f32 %v59, %v912
  %v921 = vmul.f32 %v60, %v913
  %v922 = vmul.f32 %v61, %v914
  %v923 = vmul.f32 %v62, %v915
  %v924 = vmul.f32 %v63, %v916
  %v925 = vadd.f32 %v32, %v917
  %v926 = vadd.f32 %v33, %v918
  %v927 = vadd.f32 %v34, %v919
  %v928 = vadd.f32 %v35, %v920
  %v929 = vadd.f32 %v36, %v921
  %v930 = vadd.f32 %v37, %v922
  %v931 = vadd.f32 %v38, %v923
  %v932 = vadd.f32 %v39, %v924
  %v933 = vpack.c.bf16 %v926, %v925
  %v934 = vpack.c.bf16 %v928, %v927
  %v935 = vpack.c.bf16 %v930, %v929
  %v936 = vpack.c.bf16 %v932, %v931
  %v941 = vunpack.c.l.b16 %v933
  %v942 = vunpack.c.h.b16 %v933
  %v943 = vunpack.c.l.b16 %v934
  %v944 = vunpack.c.h.b16 %v934
  %v945 = vunpack.c.l.b16 %v935
  %v946 = vunpack.c.h.b16 %v935
  %v947 = vunpack.c.l.b16 %v936
  %v948 = vunpack.c.h.b16 %v936
  %v949 = vpack.c.b16 %v941, %v941
  %v950 = vpack.c.b16 %v942, %v942
  %v951 = vpack.c.b16 %v943, %v943
  %v952 = vpack.c.b16 %v944, %v944
  %v953 = vpack.c.b16 %v945, %v945
  %v954 = vpack.c.b16 %v946, %v946
  %v955 = vpack.c.b16 %v947, %v947
  %v956 = vpack.c.b16 %v948, %v948
  %s965 = scalar_lea.vmem %s6, 96
  %966 = vst [vmem:[%s965] sm:$0xf] %v949
  %967 = vst [vmem:[%s965 + $0x4] sm:$0xf] %v950
  %968 = vst [vmem:[%s965 + $0x8] sm:$0xf] %v951
  %969 = vst [vmem:[%s965 + $0xc] sm:$0xf] %v952
  %970 = vst [vmem:[%s965 + $0x10] sm:$0xf] %v953
  %971 = vst [vmem:[%s965 + $0x14] sm:$0xf] %v954
  %972 = vst [vmem:[%s965 + $0x18] sm:$0xf] %v955
  %973 = vst [vmem:[%s965 + $0x1c] sm:$0xf] %v956
  %v974 = vpack.c.bf16 %v263, %v261
  %v975 = vpack.c.bf16 %v267, %v265
  %v976 = vpack.c.bf16 %v271, %v269
  %v977 = vpack.c.bf16 %v275, %v273
  %s978 = scalar_lea.vmem %s4, 64
  %v979 = vld [vmem:[%s978] sm:$0xf]
  %v980 = vld [vmem:[%s978 + $0x4] sm:$0xf]
  %v981 = vld [vmem:[%s978 + $0x8] sm:$0xf]
  %v982 = vld [vmem:[%s978 + $0xc] sm:$0xf]
  %v987 = vunpack.c.l.b16 %v979
  %v988 = vunpack.c.l.b16 %v980
  %v989 = vunpack.c.l.b16 %v981
  %v990 = vunpack.c.l.b16 %v982
  %v991 = vpack.c.b16 %v988, %v987
  %v992 = vpack.c.b16 %v990, %v989
  %v996 = vsel %vm296, %v974, 0
  %v999 = vsel %vm296, %v975, 0
  %v1002 = vsel %vm296, %v976, 0
  %v1005 = vsel %vm296, %v977, 0
  %1007 = vmatprep.subr.bf16.mxu0 0
  %1008 = vmatpush1.bf16.msra.mxu0 0
  %1009 = vmatprep.subr.bf16.mxu0 0
  %1010 = vmatpush1.bf16.msra.mxu0 0
  %1011 = vmatprep.subr.bf16.mxu0 0
  %1012 = vmatpush1.bf16.msra.mxu0 0
  %1013 = vmatprep.subr.bf16.mxu0 0
  %1014 = vmatpush1.bf16.msra.mxu0 0
  %1015 = vmatprep.subr.bf16.mxu0 0
  %1016 = vmatpush1.bf16.msra.mxu0 0
  %1017 = vmatprep.subr.bf16.mxu0 0
  %1018 = vmatpush1.bf16.msra.mxu0 0
  %1019 = vmatprep.subr.bf16.mxu0 0
  %1020 = vmatpush1.bf16.msra.mxu0 %v992
  %1021 = vmatprep.subr.bf16.mxu0 0
  %1022 = vmatpush1.bf16.msra.mxu0 %v991
  %1023 = vmatprep.subr.bf16.mxu0 0
  %1024 = vmatpush2.bf16.msra.mxu0 0
  %1025 = vmatprep.subr.bf16.mxu0 0
  %1026 = vmatpush2.bf16.msra.mxu0 0
  %1027 = vmatprep.subr.bf16.mxu0 0
  %1028 = vmatpush2.bf16.msra.mxu0 0
  %1029 = vmatprep.subr.bf16.mxu0 0
  %1030 = vmatpush2.bf16.msra.mxu0 0
  %1031 = vmatprep.subr.bf16.mxu0 0
  %1032 = vmatpush2.bf16.msra.mxu0 0
  %1033 = vmatprep.subr.bf16.mxu0 0
  %1034 = vmatpush2.bf16.msra.mxu0 0
  %1035 = vmatprep.subr.bf16.mxu0 0
  %1036 = vmatpush2.bf16.msra.mxu0 0
  %1037 = vmatprep.subr.bf16.mxu0 0
  %1038 = vmatpush2.bf16.msra.mxu0 0
  %1039 = vmatprep.mubr.bf16.mxu0 0
  %1040 = vmatmul.mubr.bf16.gmra.mxu0 %v996
  %v1041 = vpop.f32.mrf.mxu0
  %v1042 = vadd.f32 0.0, %v1041
  %v1043 = vpop.f32.mrf.mxu0
  %v1044 = vpop.f32.mrf.mxu0
  %v1045 = vadd.f32 0.0, %v1044
  %v1046 = vpop.f32.mrf.mxu0
  %1047 = vmatprep.mubr.bf16.mxu0 0
  %1048 = vmatmul.mubr.bf16.gmra.mxu0 %v999
  %v1049 = vpop.f32.mrf.mxu0
  %v1050 = vadd.f32 0.0, %v1049
  %v1051 = vpop.f32.mrf.mxu0
  %v1052 = vpop.f32.mrf.mxu0
  %v1053 = vadd.f32 0.0, %v1052
  %v1054 = vpop.f32.mrf.mxu0
  %1055 = vmatprep.mubr.bf16.mxu0 0
  %1056 = vmatmul.mubr.bf16.gmra.mxu0 %v1002
  %v1057 = vpop.f32.mrf.mxu0
  %v1058 = vadd.f32 0.0, %v1057
  %v1059 = vpop.f32.mrf.mxu0
  %v1060 = vpop.f32.mrf.mxu0
  %v1061 = vadd.f32 0.0, %v1060
  %v1062 = vpop.f32.mrf.mxu0
  %1063 = vmatprep.mubr.bf16.mxu0 0
  %1064 = vmatmul.mubr.bf16.gmra.mxu0 %v1005
  %v1065 = vpop.f32.mrf.mxu0
  %v1066 = vadd.f32 0.0, %v1065
  %v1067 = vpop.f32.mrf.mxu0
  %v1068 = vpop.f32.mrf.mxu0
  %v1069 = vadd.f32 0.0, %v1068
  %v1070 = vpop.f32.mrf.mxu0
  %1071 = vdwg.mxu0
  %s1072 = scalar_lea.vmem %s5, 4
  %v1073 = vld [vmem:[%s1072] sm:$0x1]
  %v1075 = vlaneseq
  %v1076 = vshrl.u32 %v1075, 7
  %v1077 = vsub.s32 0, %v1076
  %v1078 = vrot.slane %v1073, %v1077
  %v1080 = vadd.f32 %v1078, %v1042
  %v1081 = vadd.f32 %v1078, %v1045
  %v1082 = vadd.f32 %v1078, %v1050
  %v1083 = vadd.f32 %v1078, %v1053
  %v1084 = vadd.f32 %v1078, %v1058
  %v1085 = vadd.f32 %v1078, %v1061
  %v1086 = vadd.f32 %v1078, %v1066
  %v1087 = vadd.f32 %v1078, %v1069
  %v1088 = vmul.f32 %v56, %v1080
  %v1089 = vmul.f32 %v57, %v1081
  %v1090 = vmul.f32 %v58, %v1082
  %v1091 = vmul.f32 %v59, %v1083
  %v1092 = vmul.f32 %v60, %v1084
  %v1093 = vmul.f32 %v61, %v1085
  %v1094 = vmul.f32 %v62, %v1086
  %v1095 = vmul.f32 %v63, %v1087
  %v1096 = vadd.f32 %v32, %v1088
  %v1097 = vadd.f32 %v33, %v1089
  %v1098 = vadd.f32 %v34, %v1090
  %v1099 = vadd.f32 %v35, %v1091
  %v1100 = vadd.f32 %v36, %v1092
  %v1101 = vadd.f32 %v37, %v1093
  %v1102 = vadd.f32 %v38, %v1094
  %v1103 = vadd.f32 %v39, %v1095
  %v1104 = vpack.c.bf16 %v1097, %v1096
  %v1105 = vpack.c.bf16 %v1099, %v1098
  %v1106 = vpack.c.bf16 %v1101, %v1100
  %v1107 = vpack.c.bf16 %v1103, %v1102
  %v1112 = vunpack.c.l.b16 %v1104
  %v1113 = vunpack.c.h.b16 %v1104
  %v1114 = vunpack.c.l.b16 %v1105
  %v1115 = vunpack.c.h.b16 %v1105
  %v1116 = vunpack.c.l.b16 %v1106
  %v1117 = vunpack.c.h.b16 %v1106
  %v1118 = vunpack.c.l.b16 %v1107
  %v1119 = vunpack.c.h.b16 %v1107
  %v1120 = vpack.c.b16 %v1112, %v1112
  %v1121 = vpack.c.b16 %v1113, %v1113
  %v1122 = vpack.c.b16 %v1114, %v1114
  %v1123 = vpack.c.b16 %v1115, %v1115
  %v1124 = vpack.c.b16 %v1116, %v1116
  %v1125 = vpack.c.b16 %v1117, %v1117
  %v1126 = vpack.c.b16 %v1118, %v1118
  %v1127 = vpack.c.b16 %v1119, %v1119
  %s1136 = scalar_lea.vmem %s6, 128
  %1137 = vst [vmem:[%s1136] sm:$0xf] %v1120
  %1138 = vst [vmem:[%s1136 + $0x4] sm:$0xf] %v1121
  %1139 = vst [vmem:[%s1136 + $0x8] sm:$0xf] %v1122
  %1140 = vst [vmem:[%s1136 + $0xc] sm:$0xf] %v1123
  %1141 = vst [vmem:[%s1136 + $0x10] sm:$0xf] %v1124
  %1142 = vst [vmem:[%s1136 + $0x14] sm:$0xf] %v1125
  %1143 = vst [vmem:[%s1136 + $0x18] sm:$0xf] %v1126
  %1144 = vst [vmem:[%s1136 + $0x1c] sm:$0xf] %v1127
  // Predicated region
  $region26: #{time_mix_forward.8} parent=0 // pred_check
    _
  $region27: #{time_mix_forward.8} parent=0 // pred_check_branch
    %1146 = sbr.rel (0) target = $region29
  $region28: #{time_mix_forward.8} parent=0 // pred_region
    _
  $region29: #{time_mix_forward.8} parent=0 // pred_fallthru
    _
  // Predicated region
  $region30: #{time_mix_forward.8} parent=0 // pred_check
    _
  $region31: #{time_mix_forward.8} parent=0 // pred_check_branch
    %1148 = sbr.rel (0) target = $region33
  $region32: #{time_mix_forward.8} parent=0 // pred_region
    _
  $region33: #{time_mix_forward.8} parent=0 // pred_fallthru
    _

// kernel: time_mix_forward.12
$region0: #{time_mix_forward.12}
  #allocation0 [shape = 'u32[]', space=smem, size = 0x4, offset = 0x4, fixed_abs, tag = 'smem constant byte address 0x4 - core index']
  #allocation1 [shape = 'u32[144,128]{1,0:T(1,128)}', space=vmem, size = 0x12000, scoped, tag = 'internal scratch']
  #allocation2 [shape = 'f32[64,128]{1,0:T(8,128)}', space=vmem, size = 0x8000, scoped, tag = 'scratch operand']
  %s0 = inlined_call_operand.vmem [shape: bf16[5,64,128], index: 0, kind: input, shape index: {}]
  %s1 = inlined_call_operand.vmem [shape: bf16[128,128], index: 1, kind: input, shape index: {}]
  %s2 = inlined_call_operand.vmem [shape: bf16[64,128], index: 2, kind: output, shape index: {}]
  %s3 = sld [smem:[#allocation0]]
  $region26: #{time_mix_forward.12} parent=0
    _
  %s5 = ssub.s32 1, %s3
  %s6 = scalar_select 0, %s5, %s3
  // Predicated region
  $region2: #{time_mix_forward.12} parent=0 // pred_check
    _
  $region3: #{time_mix_forward.12} parent=0 // pred_check_branch
    %8 = sbr.rel (0) target = $region5
  $region4: #{time_mix_forward.12} parent=0 // pred_region
    %s9 = scalar_lea.vmem %s0, 128
  $region5: #{time_mix_forward.12} parent=0 // pred_fallthru
    _
  // Predicated region
  $region6: #{time_mix_forward.12} parent=0 // pred_check
    _
  $region7: #{time_mix_forward.12} parent=0 // pred_check_branch
    %11 = sbr.rel (0) target = $region9
  $region8: #{time_mix_forward.12} parent=0 // pred_region
    _
  $region9: #{time_mix_forward.12} parent=0 // pred_fallthru
    _
  %s12 = scalar_lea.vmem %s0, 128
  %s13 = scalar_lea.vmem %s0, 128
  %p15 = scmp.eq.s32.totalorder 0, 0
  // Predicated region
  $region10: #{time_mix_forward.12} parent=0 // pred_check
    %p16 = pneg %p15
  $region11: #{time_mix_forward.12} parent=0 // pred_check_branch
    %18 = sbr.rel (%p16) target = $region13
  $region12: #{time_mix_forward.12} parent=0 // pred_region
    %19 = vst [vmem:[#allocation2] sm:$0xff] 0.0
    %20 = vst [vmem:[#allocation2 + $0x8] sm:$0xff] 0.0
    %21 = vst [vmem:[#allocation2 + $0x10] sm:$0xff] 0.0
    %22 = vst [vmem:[#allocation2 + $0x18] sm:$0xff] 0.0
    %23 = vst [vmem:[#allocation2 + $0x20] sm:$0xff] 0.0
    %24 = vst [vmem:[#allocation2 + $0x28] sm:$0xff] 0.0
    %25 = vst [vmem:[#allocation2 + $0x30] sm:$0xff] 0.0
    %26 = vst [vmem:[#allocation2 + $0x38] sm:$0xff] 0.0
  $region13: #{time_mix_forward.12} parent=0 // pred_fallthru
    _
  %v27 = vld [vmem:[#allocation2] sm:$0xff]
  %v28 = vld [vmem:[#allocation2 + $0x8] sm:$0xff]
  %v29 = vld [vmem:[#allocation2 + $0x10] sm:$0xff]
  %v30 = vld [vmem:[#allocation2 + $0x18] sm:$0xff]
  %v31 = vld [vmem:[#allocation2 + $0x20] sm:$0xff]
  %v32 = vld [vmem:[#allocation2 + $0x28] sm:$0xff]
  %v33 = vld [vmem:[#allocation2 + $0x30] sm:$0xff]
  %v34 = vld [vmem:[#allocation2 + $0x38] sm:$0xff]
  %v35 = vld [vmem:[%s13] sm:$0xf]
  %v36 = vld [vmem:[%s13 + $0x4] sm:$0xf]
  %v37 = vld [vmem:[%s13 + $0x8] sm:$0xf]
  %v38 = vld [vmem:[%s13 + $0xc] sm:$0xf]
  %v39 = vld [vmem:[%s13 + $0x10] sm:$0xf]
  %v40 = vld [vmem:[%s13 + $0x14] sm:$0xf]
  %v41 = vld [vmem:[%s13 + $0x18] sm:$0xf]
  %v42 = vld [vmem:[%s13 + $0x1c] sm:$0xf]
  %v43 = vld [vmem:[%s1] sm:$0xf]
  %v44 = vld [vmem:[%s1 + $0x4] sm:$0xf]
  %v45 = vld [vmem:[%s1 + $0x8] sm:$0xf]
  %v46 = vld [vmem:[%s1 + $0xc] sm:$0xf]
  %v47 = vld [vmem:[%s1 + $0x10] sm:$0xf]
  %v48 = vld [vmem:[%s1 + $0x14] sm:$0xf]
  %v49 = vld [vmem:[%s1 + $0x18] sm:$0xf]
  %v50 = vld [vmem:[%s1 + $0x1c] sm:$0xf]
  %v51 = vld [vmem:[%s1 + $0x20] sm:$0xf]
  %v52 = vld [vmem:[%s1 + $0x24] sm:$0xf]
  %v53 = vld [vmem:[%s1 + $0x28] sm:$0xf]
  %v54 = vld [vmem:[%s1 + $0x2c] sm:$0xf]
  %v55 = vld [vmem:[%s1 + $0x30] sm:$0xf]
  %v56 = vld [vmem:[%s1 + $0x34] sm:$0xf]
  %v57 = vld [vmem:[%s1 + $0x38] sm:$0xf]
  %v58 = vld [vmem:[%s1 + $0x3c] sm:$0xf]
  %v67 = vunpack.c.l.b16 %v35
  %v68 = vunpack.c.l.b16 %v36
  %v69 = vunpack.c.l.b16 %v37
  %v70 = vunpack.c.l.b16 %v38
  %v71 = vunpack.c.l.b16 %v39
  %v72 = vunpack.c.l.b16 %v40
  %v73 = vunpack.c.l.b16 %v41
  %v74 = vunpack.c.l.b16 %v42
  %v75 = vpack.c.b16 %v68, %v67
  %v76 = vpack.c.b16 %v70, %v69
  %v77 = vpack.c.b16 %v72, %v71
  %v78 = vpack.c.b16 %v74, %v73
  %v99 = vunpack.c.l.b16 %v43
  %v100 = vunpack.c.l.b16 %v44
  %v101 = vunpack.c.l.b16 %v45
  %v102 = vunpack.c.l.b16 %v46
  %v103 = vunpack.c.l.b16 %v47
  %v104 = vunpack.c.l.b16 %v48
  %v105 = vunpack.c.l.b16 %v49
  %v106 = vunpack.c.l.b16 %v50
  %v107 = vunpack.c.l.b16 %v51
  %v108 = vunpack.c.l.b16 %v52
  %v109 = vunpack.c.l.b16 %v53
  %v110 = vunpack.c.l.b16 %v54
  %v111 = vunpack.c.l.b16 %v55
  %v112 = vunpack.c.l.b16 %v56
  %v113 = vunpack.c.l.b16 %v57
  %v114 = vunpack.c.l.b16 %v58
  %v115 = vpack.c.b16 %v100, %v99
  %v116 = vpack.c.b16 %v102, %v101
  %v117 = vpack.c.b16 %v104, %v103
  %v118 = vpack.c.b16 %v106, %v105
  %v119 = vpack.c.b16 %v108, %v107
  %v120 = vpack.c.b16 %v110, %v109
  %v121 = vpack.c.b16 %v112, %v111
  %v122 = vpack.c.b16 %v114, %v113
  %131 = vmatprep.subr.bf16.mxu0 0
  %132 = vmatpush1.bf16.msra.mxu0 %v122
  %133 = vmatprep.subr.bf16.mxu0 0
  %134 = vmatpush1.bf16.msra.mxu0 %v121
  %135 = vmatprep.subr.bf16.mxu0 0
  %136 = vmatpush1.bf16.msra.mxu0 %v120
  %137 = vmatprep.subr.bf16.mxu0 0
  %138 = vmatpush1.bf16.msra.mxu0 %v119
  %139 = vmatprep.subr.bf16.mxu0 0
  %140 = vmatpush1.bf16.msra.mxu0 %v118
  %141 = vmatprep.subr.bf16.mxu0 0
  %142 = vmatpush1.bf16.msra.mxu0 %v117
  %143 = vmatprep.subr.bf16.mxu0 0
  %144 = vmatpush1.bf16.msra.mxu0 %v116
  %145 = vmatprep.subr.bf16.mxu0 0
  %146 = vmatpush1.bf16.msra.mxu0 %v115
  %147 = vmatprep.subr.bf16.mxu0 0
  %148 = vmatpush2.bf16.msra.mxu0 0
  %149 = vmatprep.subr.bf16.mxu0 0
  %150 = vmatpush2.bf16.msra.mxu0 0
  %151 = vmatprep.subr.bf16.mxu0 0
  %152 = vmatpush2.bf16.msra.mxu0 0
  %153 = vmatprep.subr.bf16.mxu0 0
  %154 = vmatpush2.bf16.msra.mxu0 0
  %155 = vmatprep.subr.bf16.mxu0 0
  %156 = vmatpush2.bf16.msra.mxu0 0
  %157 = vmatprep.subr.bf16.mxu0 0
  %158 = vmatpush2.bf16.msra.mxu0 0
  %159 = vmatprep.subr.bf16.mxu0 0
  %160 = vmatpush2.bf16.msra.mxu0 0
  %161 = vmatprep.subr.bf16.mxu0 0
  %162 = vmatpush2.bf16.msra.mxu0 0
  %163 = vmatprep.mubr.bf16.mxu0 0
  %164 = vmatmul.mubr.bf16.gmra.mxu0 %v75
  %v165 = vpop.f32.mrf.mxu0
  %v166 = vadd.f32 0.0, %v165
  %v167 = vpop.f32.mrf.mxu0
  %v168 = vpop.f32.mrf.mxu0
  %v169 = vadd.f32 0.0, %v168
  %v170 = vpop.f32.mrf.mxu0
  %171 = vmatprep.mubr.bf16.mxu0 0
  %172 = vmatmul.mubr.bf16.gmra.mxu0 %v76
  %v173 = vpop.f32.mrf.mxu0
  %v174 = vadd.f32 0.0, %v173
  %v175 = vpop.f32.mrf.mxu0
  %v176 = vpop.f32.mrf.mxu0
  %v177 = vadd.f32 0.0, %v176
  %v178 = vpop.f32.mrf.mxu0
  %179 = vmatprep.mubr.bf16.mxu0 0
  %180 = vmatmul.mubr.bf16.gmra.mxu0 %v77
  %v181 = vpop.f32.mrf.mxu0
  %v182 = vadd.f32 0.0, %v181
  %v183 = vpop.f32.mrf.mxu0
  %v184 = vpop.f32.mrf.mxu0
  %v185 = vadd.f32 0.0, %v184
  %v186 = vpop.f32.mrf.mxu0
  %187 = vmatprep.mubr.bf16.mxu0 0
  %188 = vmatmul.mubr.bf16.gmra.mxu0 %v78
  %v189 = vpop.f32.mrf.mxu0
  %v190 = vadd.f32 0.0, %v189
  %v191 = vpop.f32.mrf.mxu0
  %v192 = vpop.f32.mrf.mxu0
  %v193 = vadd.f32 0.0, %v192
  %v194 = vpop.f32.mrf.mxu0
  %195 = vdwg.mxu0
  %v196 = vadd.f32 %v27, %v166
  %v197 = vadd.f32 %v28, %v169
  %v198 = vadd.f32 %v29, %v174
  %v199 = vadd.f32 %v30, %v177
  %v200 = vadd.f32 %v31, %v182
  %v201 = vadd.f32 %v32, %v185
  %v202 = vadd.f32 %v33, %v190
  %v203 = vadd.f32 %v34, %v193
  %204 = vst [vmem:[#allocation2] sm:$0xff] %v196
  %205 = vst [vmem:[#allocation2 + $0x8] sm:$0xff] %v197
  %206 = vst [vmem:[#allocation2 + $0x10] sm:$0xff] %v198
  %207 = vst [vmem:[#allocation2 + $0x18] sm:$0xff] %v199
  %208 = vst [vmem:[#allocation2 + $0x20] sm:$0xff] %v200
  %209 = vst [vmem:[#allocation2 + $0x28] sm:$0xff] %v201
  %210 = vst [vmem:[#allocation2 + $0x30] sm:$0xff] %v202
  %211 = vst [vmem:[#allocation2 + $0x38] sm:$0xff] %v203
  // Predicated region
  $region14: #{time_mix_forward.12} parent=0 // pred_check
    %p212 = pneg %p15
  $region15: #{time_mix_forward.12} parent=0 // pred_check_branch
    %214 = sbr.rel (%p212) target = $region17
  $region16: #{time_mix_forward.12} parent=0 // pred_region
    %v215 = vld [vmem:[#allocation2] sm:$0xff]
    %v216 = vld [vmem:[#allocation2 + $0x8] sm:$0xff]
    %v217 = vld [vmem:[#allocation2 + $0x10] sm:$0xff]
    %v218 = vld [vmem:[#allocation2 + $0x18] sm:$0xff]
    %v219 = vld [vmem:[#allocation2 + $0x20] sm:$0xff]
    %v220 = vld [vmem:[#allocation2 + $0x28] sm:$0xff]
    %v221 = vld [vmem:[#allocation2 + $0x30] sm:$0xff]
    %v222 = vld [vmem:[#allocation2 + $0x38] sm:$0xff]
    %v223 = vpack.c.bf16 %v216, %v215
    %v224 = vpack.c.bf16 %v218, %v217
    %v225 = vpack.c.bf16 %v220, %v219
    %v226 = vpack.c.bf16 %v222, %v221
    %v231 = vunpack.c.l.b16 %v223
    %v232 = vunpack.c.h.b16 %v223
    %v233 = vunpack.c.l.b16 %v224
    %v234 = vunpack.c.h.b16 %v224
    %v235 = vunpack.c.l.b16 %v225
    %v236 = vunpack.c.h.b16 %v225
    %v237 = vunpack.c.l.b16 %v226
    %v238 = vunpack.c.h.b16 %v226
    %v239 = vpack.c.b16 %v231, %v231
    %v240 = vpack.c.b16 %v232, %v232
    %v241 = vpack.c.b16 %v233, %v233
    %v242 = vpack.c.b16 %v234, %v234
    %v243 = vpack.c.b16 %v235, %v235
    %v244 = vpack.c.b16 %v236, %v236
    %v245 = vpack.c.b16 %v237, %v237
    %v246 = vpack.c.b16 %v238, %v238
    %255 = vst [vmem:[%s2] sm:$0xf] %v239
    %256 = vst [vmem:[%s2 + $0x4] sm:$0xf] %v240
    %257 = vst [vmem:[%s2 + $0x8] sm:$0xf] %v241
    %258 = vst [vmem:[%s2 + $0xc] sm:$0xf] %v242
    %259 = vst [vmem:[%s2 + $0x10] sm:$0xf] %v243
    %260 = vst [vmem:[%s2 + $0x14] sm:$0xf] %v244
    %261 = vst [vmem:[%s2 + $0x18] sm:$0xf] %v245
    %262 = vst [vmem:[%s2 + $0x1c] sm:$0xf] %v246
  $region17: #{time_mix_forward.12} parent=0 // pred_fallthru
    _
  // Predicated region
  $region18: #{time_mix_forward.12} parent=0 // pred_check
    _
  $region19: #{time_mix_forward.12} parent=0 // pred_check_branch
    %264 = sbr.rel (0) target = $region21
  $region20: #{time_mix_forward.12} parent=0 // pred_region
    _
  $region21: #{time_mix_forward.12} parent=0 // pred_fallthru
    _
  // Predicated region
  $region22: #{time_mix_forward.12} parent=0 // pred_check
    _
  $region23: #{time_mix_forward.12} parent=0 // pred_check_branch
    %266 = sbr.rel (0) target = $region25
  $region24: #{time_mix_forward.12} parent=0 // pred_region
    _
  $region25: #{time_mix_forward.12} parent=0 // pred_fallthru
    _

// kernel: time_mix_forward.10
$region0: #{time_mix_forward.10}
  #allocation0 [shape = 'u32[]', space=smem, size = 0x4, offset = 0x4, fixed_abs, tag = 'smem constant byte address 0x4 - core index']
  #allocation1 [shape = 'u32[144,128]{1,0:T(1,128)}', space=vmem, size = 0x12000, scoped, tag = 'internal scratch']
  #allocation2 [shape = 'f32[64,128]{1,0:T(8,128)}', space=vmem, size = 0x8000, scoped, tag = 'scratch operand']
  %s0 = inlined_call_operand.vmem [shape: bf16[5,64,128], index: 0, kind: input, shape index: {}]
  %s1 = inlined_call_operand.vmem [shape: bf16[128,128], index: 1, kind: input, shape index: {}]
  %s2 = inlined_call_operand.vmem [shape: bf16[64,128], index: 2, kind: output, shape index: {}]
  %s3 = sld [smem:[#allocation0]]
  $region26: #{time_mix_forward.10} parent=0
    _
  %s5 = ssub.s32 1, %s3
  %s6 = scalar_select 0, %s5, %s3
  // Predicated region
  $region2: #{time_mix_forward.10} parent=0 // pred_check
    _
  $region3: #{time_mix_forward.10} parent=0 // pred_check_branch
    %8 = sbr.rel (0) target = $region5
  $region4: #{time_mix_forward.10} parent=0 // pred_region
    %s9 = scalar_lea.vmem %s0, 64
  $region5: #{time_mix_forward.10} parent=0 // pred_fallthru
    _
  // Predicated region
  $region6: #{time_mix_forward.10} parent=0 // pred_check
    _
  $region7: #{time_mix_forward.10} parent=0 // pred_check_branch
    %11 = sbr.rel (0) target = $region9
  $region8: #{time_mix_forward.10} parent=0 // pred_region
    _
  $region9: #{time_mix_forward.10} parent=0 // pred_fallthru
    _
  %s12 = scalar_lea.vmem %s0, 64
  %s13 = scalar_lea.vmem %s0, 64
  %p15 = scmp.eq.s32.totalorder 0, 0
  // Predicated region
  $region10: #{time_mix_forward.10} parent=0 // pred_check
    %p16 = pneg %p15
  $region11: #{time_mix_forward.10} parent=0 // pred_check_branch
    %18 = sbr.rel (%p16) target = $region13
  $region12: #{time_mix_forward.10} parent=0 // pred_region
    %19 = vst [vmem:[#allocation2] sm:$0xff] 0.0
    %20 = vst [vmem:[#allocation2 + $0x8] sm:$0xff] 0.0
    %21 = vst [vmem:[#allocation2 + $0x10] sm:$0xff] 0.0
    %22 = vst [vmem:[#allocation2 + $0x18] sm:$0xff] 0.0
    %23 = vst [vmem:[#allocation2 + $0x20] sm:$0xff] 0.0
    %24 = vst [vmem:[#allocation2 + $0x28] sm:$0xff] 0.0
    %25 = vst [vmem:[#allocation2 + $0x30] sm:$0xff] 0.0
    %26 = vst [vmem:[#allocation2 + $0x38] sm:$0xff] 0.0
  $region13: #{time_mix_forward.10} parent=0 // pred_fallthru
    _
  %v27 = vld [vmem:[#allocation2] sm:$0xff]
  %v28 = vld [vmem:[#allocation2 + $0x8] sm:$0xff]
  %v29 = vld [vmem:[#allocation2 + $0x10] sm:$0xff]
  %v30 = vld [vmem:[#allocation2 + $0x18] sm:$0xff]
  %v31 = vld [vmem:[#allocation2 + $0x20] sm:$0xff]
  %v32 = vld [vmem:[#allocation2 + $0x28] sm:$0xff]
  %v33 = vld [vmem:[#allocation2 + $0x30] sm:$0xff]
  %v34 = vld [vmem:[#allocation2 + $0x38] sm:$0xff]
  %v35 = vld [vmem:[%s13] sm:$0xf]
  %v36 = vld [vmem:[%s13 + $0x4] sm:$0xf]
  %v37 = vld [vmem:[%s13 + $0x8] sm:$0xf]
  %v38 = vld [vmem:[%s13 + $0xc] sm:$0xf]
  %v39 = vld [vmem:[%s13 + $0x10] sm:$0xf]
  %v40 = vld [vmem:[%s13 + $0x14] sm:$0xf]
  %v41 = vld [vmem:[%s13 + $0x18] sm:$0xf]
  %v42 = vld [vmem:[%s13 + $0x1c] sm:$0xf]
  %v43 = vld [vmem:[%s1] sm:$0xf]
  %v44 = vld [vmem:[%s1 + $0x4] sm:$0xf]
  %v45 = vld [vmem:[%s1 + $0x8] sm:$0xf]
  %v46 = vld [vmem:[%s1 + $0xc] sm:$0xf]
  %v47 = vld [vmem:[%s1 + $0x10] sm:$0xf]
  %v48 = vld [vmem:[%s1 + $0x14] sm:$0xf]
  %v49 = vld [vmem:[%s1 + $0x18] sm:$0xf]
  %v50 = vld [vmem:[%s1 + $0x1c] sm:$0xf]
  %v51 = vld [vmem:[%s1 + $0x20] sm:$0xf]
  %v52 = vld [vmem:[%s1 + $0x24] sm:$0xf]
  %v53 = vld [vmem:[%s1 + $0x28] sm:$0xf]
  %v54 = vld [vmem:[%s1 + $0x2c] sm:$0xf]
  %v55 = vld [vmem:[%s1 + $0x30] sm:$0xf]
  %v56 = vld [vmem:[%s1 + $0x34] sm:$0xf]
  %v57 = vld [vmem:[%s1 + $0x38] sm:$0xf]
  %v58 = vld [vmem:[%s1 + $0x3c] sm:$0xf]
  %v67 = vunpack.c.l.b16 %v35
  %v68 = vunpack.c.l.b16 %v36
  %v69 = vunpack.c.l.b16 %v37
  %v70 = vunpack.c.l.b16 %v38
  %v71 = vunpack.c.l.b16 %v39
  %v72 = vunpack.c.l.b16 %v40
  %v73 = vunpack.c.l.b16 %v41
  %v74 = vunpack.c.l.b16 %v42
  %v75 = vpack.c.b16 %v68, %v67
  %v76 = vpack.c.b16 %v70, %v69
  %v77 = vpack.c.b16 %v72, %v71
  %v78 = vpack.c.b16 %v74, %v73
  %v99 = vunpack.c.l.b16 %v43
  %v100 = vunpack.c.l.b16 %v44
  %v101 = vunpack.c.l.b16 %v45
  %v102 = vunpack.c.l.b16 %v46
  %v103 = vunpack.c.l.b16 %v47
  %v104 = vunpack.c.l.b16 %v48
  %v105 = vunpack.c.l.b16 %v49
  %v106 = vunpack.c.l.b16 %v50
  %v107 = vunpack.c.l.b16 %v51
  %v108 = vunpack.c.l.b16 %v52
  %v109 = vunpack.c.l.b16 %v53
  %v110 = vunpack.c.l.b16 %v54
  %v111 = vunpack.c.l.b16 %v55
  %v112 = vunpack.c.l.b16 %v56
  %v113 = vunpack.c.l.b16 %v57
  %v114 = vunpack.c.l.b16 %v58
  %v115 = vpack.c.b16 %v100, %v99
  %v116 = vpack.c.b16 %v102, %v101
  %v117 = vpack.c.b16 %v104, %v103
  %v118 = vpack.c.b16 %v106, %v105
  %v119 = vpack.c.b16 %v108, %v107
  %v120 = vpack.c.b16 %v110, %v109
  %v121 = vpack.c.b16 %v112, %v111
  %v122 = vpack.c.b16 %v114, %v113
  %131 = vmatprep.subr.bf16.mxu0 0
  %132 = vmatpush1.bf16.msra.mxu0 %v122
  %133 = vmatprep.subr.bf16.mxu0 0
  %134 = vmatpush1.bf16.msra.mxu0 %v121
  %135 = vmatprep.subr.bf16.mxu0 0
  %136 = vmatpush1.bf16.msra.mxu0 %v120
  %137 = vmatprep.subr.bf16.mxu0 0
  %138 = vmatpush1.bf16.msra.mxu0 %v119
  %139 = vmatprep.subr.bf16.mxu0 0
  %140 = vmatpush1.bf16.msra.mxu0 %v118
  %141 = vmatprep.subr.bf16.mxu0 0
  %142 = vmatpush1.bf16.msra.mxu0 %v117
  %143 = vmatprep.subr.bf16.mxu0 0
  %144 = vmatpush1.bf16.msra.mxu0 %v116
  %145 = vmatprep.subr.bf16.mxu0 0
  %146 = vmatpush1.bf16.msra.mxu0 %v115
  %147 = vmatprep.subr.bf16.mxu0 0
  %148 = vmatpush2.bf16.msra.mxu0 0
  %149 = vmatprep.subr.bf16.mxu0 0
  %150 = vmatpush2.bf16.msra.mxu0 0
  %151 = vmatprep.subr.bf16.mxu0 0
  %152 = vmatpush2.bf16.msra.mxu0 0
  %153 = vmatprep.subr.bf16.mxu0 0
  %154 = vmatpush2.bf16.msra.mxu0 0
  %155 = vmatprep.subr.bf16.mxu0 0
  %156 = vmatpush2.bf16.msra.mxu0 0
  %157 = vmatprep.subr.bf16.mxu0 0
  %158 = vmatpush2.bf16.msra.mxu0 0
  %159 = vmatprep.subr.bf16.mxu0 0
  %160 = vmatpush2.bf16.msra.mxu0 0
  %161 = vmatprep.subr.bf16.mxu0 0
  %162 = vmatpush2.bf16.msra.mxu0 0
  %163 = vmatprep.mubr.bf16.mxu0 0
  %164 = vmatmul.mubr.bf16.gmra.mxu0 %v75
  %v165 = vpop.f32.mrf.mxu0
  %v166 = vadd.f32 0.0, %v165
  %v167 = vpop.f32.mrf.mxu0
  %v168 = vpop.f32.mrf.mxu0
  %v169 = vadd.f32 0.0, %v168
  %v170 = vpop.f32.mrf.mxu0
  %171 = vmatprep.mubr.bf16.mxu0 0
  %172 = vmatmul.mubr.bf16.gmra.mxu0 %v76
  %v173 = vpop.f32.mrf.mxu0
  %v174 = vadd.f32 0.0, %v173
  %v175 = vpop.f32.mrf.mxu0
  %v176 = vpop.f32.mrf.mxu0
  %v177 = vadd.f32 0.0, %v176
  %v178 = vpop.f32.mrf.mxu0
  %179 = vmatprep.mubr.bf16.mxu0 0
  %180 = vmatmul.mubr.bf16.gmra.mxu0 %v77
  %v181 = vpop.f32.mrf.mxu0
  %v182 = vadd.f32 0.0, %v181
  %v183 = vpop.f32.mrf.mxu0
  %v184 = vpop.f32.mrf.mxu0
  %v185 = vadd.f32 0.0, %v184
  %v186 = vpop.f32.mrf.mxu0
  %187 = vmatprep.mubr.bf16.mxu0 0
  %188 = vmatmul.mubr.bf16.gmra.mxu0 %v78
  %v189 = vpop.f32.mrf.mxu0
  %v190 = vadd.f32 0.0, %v189
  %v191 = vpop.f32.mrf.mxu0
  %v192 = vpop.f32.mrf.mxu0
  %v193 = vadd.f32 0.0, %v192
  %v194 = vpop.f32.mrf.mxu0
  %195 = vdwg.mxu0
  %v196 = vadd.f32 %v27, %v166
  %v197 = vadd.f32 %v28, %v169
  %v198 = vadd.f32 %v29, %v174
  %v199 = vadd.f32 %v30, %v177
  %v200 = vadd.f32 %v31, %v182
  %v201 = vadd.f32 %v32, %v185
  %v202 = vadd.f32 %v33, %v190
  %v203 = vadd.f32 %v34, %v193
  %204 = vst [vmem:[#allocation2] sm:$0xff] %v196
  %205 = vst [vmem:[#allocation2 + $0x8] sm:$0xff] %v197
  %206 = vst [vmem:[#allocation2 + $0x10] sm:$0xff] %v198
  %207 = vst [vmem:[#allocation2 + $0x18] sm:$0xff] %v199
  %208 = vst [vmem:[#allocation2 + $0x20] sm:$0xff] %v200
  %209 = vst [vmem:[#allocation2 + $0x28] sm:$0xff] %v201
  %210 = vst [vmem:[#allocation2 + $0x30] sm:$0xff] %v202
  %211 = vst [vmem:[#allocation2 + $0x38] sm:$0xff] %v203
  // Predicated region
  $region14: #{time_mix_forward.10} parent=0 // pred_check
    %p212 = pneg %p15
  $region15: #{time_mix_forward.10} parent=0 // pred_check_branch
    %214 = sbr.rel (%p212) target = $region17
  $region16: #{time_mix_forward.10} parent=0 // pred_region
    %v215 = vld [vmem:[#allocation2] sm:$0xff]
    %v216 = vld [vmem:[#allocation2 + $0x8] sm:$0xff]
    %v217 = vld [vmem:[#allocation2 + $0x10] sm:$0xff]
    %v218 = vld [vmem:[#allocation2 + $0x18] sm:$0xff]
    %v219 = vld [vmem:[#allocation2 + $0x20] sm:$0xff]
    %v220 = vld [vmem:[#allocation2 + $0x28] sm:$0xff]
    %v221 = vld [vmem:[#allocation2 + $0x30] sm:$0xff]
    %v222 = vld [vmem:[#allocation2 + $0x38] sm:$0xff]
    %v223 = vpack.c.bf16 %v216, %v215
    %v224 = vpack.c.bf16 %v218, %v217
    %v225 = vpack.c.bf16 %v220, %v219
    %v226 = vpack.c.bf16 %v222, %v221
    %v231 = vunpack.c.l.b16 %v223
    %v232 = vunpack.c.h.b16 %v223
    %v233 = vunpack.c.l.b16 %v224
    %v234 = vunpack.c.h.b16 %v224
    %v235 = vunpack.c.l.b16 %v225
    %v236 = vunpack.c.h.b16 %v225
    %v237 = vunpack.c.l.b16 %v226
    %v238 = vunpack.c.h.b16 %v226
    %v239 = vpack.c.b16 %v231, %v231
    %v240 = vpack.c.b16 %v232, %v232
    %v241 = vpack.c.b16 %v233, %v233
    %v242 = vpack.c.b16 %v234, %v234
    %v243 = vpack.c.b16 %v235, %v235
    %v244 = vpack.c.b16 %v236, %v236
    %v245 = vpack.c.b16 %v237, %v237
    %v246 = vpack.c.b16 %v238, %v238
    %255 = vst [vmem:[%s2] sm:$0xf] %v239
    %256 = vst [vmem:[%s2 + $0x4] sm:$0xf] %v240
    %257 = vst [vmem:[%s2 + $0x8] sm:$0xf] %v241
    %258 = vst [vmem:[%s2 + $0xc] sm:$0xf] %v242
    %259 = vst [vmem:[%s2 + $0x10] sm:$0xf] %v243
    %260 = vst [vmem:[%s2 + $0x14] sm:$0xf] %v244
    %261 = vst [vmem:[%s2 + $0x18] sm:$0xf] %v245
    %262 = vst [vmem:[%s2 + $0x1c] sm:$0xf] %v246
  $region17: #{time_mix_forward.10} parent=0 // pred_fallthru
    _
  // Predicated region
  $region18: #{time_mix_forward.10} parent=0 // pred_check
    _
  $region19: #{time_mix_forward.10} parent=0 // pred_check_branch
    %264 = sbr.rel (0) target = $region21
  $region20: #{time_mix_forward.10} parent=0 // pred_region
    _
  $region21: #{time_mix_forward.10} parent=0 // pred_fallthru
    _
  // Predicated region
  $region22: #{time_mix_forward.10} parent=0 // pred_check
    _
  $region23: #{time_mix_forward.10} parent=0 // pred_check_branch
    %266 = sbr.rel (0) target = $region25
  $region24: #{time_mix_forward.10} parent=0 // pred_region
    _
  $region25: #{time_mix_forward.10} parent=0 // pred_fallthru
    _

// kernel: time_mix_forward.15
$region0: #{time_mix_forward.15}
  #allocation0 [shape = 'u32[]', space=smem, size = 0x4, offset = 0x4, fixed_abs, tag = 'smem constant byte address 0x4 - core index']
  #allocation1 [shape = 'u32[144,128]{1,0:T(1,128)}', space=vmem, size = 0x12000, scoped, tag = 'internal scratch']
  #allocation2 [shape = 'f32[64,128]{1,0:T(8,128)}', space=vmem, size = 0x8000, scoped, tag = 'scratch operand']
  %s0 = inlined_call_operand.vmem [shape: bf16[64,128], index: 0, kind: input, shape index: {}]
  %s1 = inlined_call_operand.vmem [shape: bf16[128,128], index: 1, kind: input, shape index: {}]
  %s2 = inlined_call_operand.hbm [shape: bf16[64,128], index: 2, kind: output, shape index: {}]
  %s3 = sld [smem:[#allocation0]]
  $region26: #{time_mix_forward.15} parent=0
    _
  %s5 = ssub.s32 1, %s3
  %s6 = scalar_select 0, %s5, %s3
  $region1: #{time_mix_forward.15} parent=0
    #allocation3 [shape = 'u8[16384]{0}', space=vmem, size = 0x4000, scoped, tag = 'output window, operand 0, single buffered']
    #allocation4 [shape = 's32[1]{0}', space=sflag, size = 0x4, scoped, tag = 'scoped memory for time_mix_forward.15']
    %7 = vsyncpa [#allocation4], 0
    // Predicated region
    $region2: #{time_mix_forward.15} parent=1 // pred_check
      _
    $region3: #{time_mix_forward.15} parent=1 // pred_check_branch
      %9 = sbr.rel (0) target = $region5
    $region4: #{time_mix_forward.15} parent=1 // pred_region
      _
    $region5: #{time_mix_forward.15} parent=1 // pred_fallthru
      _
    // Predicated region
    $region6: #{time_mix_forward.15} parent=1 // pred_check
      _
    $region7: #{time_mix_forward.15} parent=1 // pred_check_branch
      %11 = sbr.rel (0) target = $region9
    $region8: #{time_mix_forward.15} parent=1 // pred_region
      _
    $region9: #{time_mix_forward.15} parent=1 // pred_fallthru
      _
    %p13 = scmp.eq.s32.totalorder 0, 0
    // Predicated region
    $region10: #{time_mix_forward.15} parent=1 // pred_check
      %p14 = pneg %p13
    $region11: #{time_mix_forward.15} parent=1 // pred_check_branch
      %16 = sbr.rel (%p14) target = $region13
    $region12: #{time_mix_forward.15} parent=1 // pred_region
      %17 = vst [vmem:[#allocation2] sm:$0xff] 0.0
      %18 = vst [vmem:[#allocation2 + $0x8] sm:$0xff] 0.0
      %19 = vst [vmem:[#allocation2 + $0x10] sm:$0xff] 0.0
      %20 = vst [vmem:[#allocation2 + $0x18] sm:$0xff] 0.0
      %21 = vst [vmem:[#allocation2 + $0x20] sm:$0xff] 0.0
      %22 = vst [vmem:[#allocation2 + $0x28] sm:$0xff] 0.0
      %23 = vst [vmem:[#allocation2 + $0x30] sm:$0xff] 0.0
      %24 = vst [vmem:[#allocation2 + $0x38] sm:$0xff] 0.0
    $region13: #{time_mix_forward.15} parent=1 // pred_fallthru
      _
    %v25 = vld [vmem:[#allocation2] sm:$0xff]
    %v26 = vld [vmem:[#allocation2 + $0x8] sm:$0xff]
    %v27 = vld [vmem:[#allocation2 + $0x10] sm:$0xff]
    %v28 = vld [vmem:[#allocation2 + $0x18] sm:$0xff]
    %v29 = vld [vmem:[#allocation2 + $0x20] sm:$0xff]
    %v30 = vld [vmem:[#allocation2 + $0x28] sm:$0xff]
    %v31 = vld [vmem:[#allocation2 + $0x30] sm:$0xff]
    %v32 = vld [vmem:[#allocation2 + $0x38] sm:$0xff]
    %v33 = vld [vmem:[%s0] sm:$0xf]
    %v34 = vld [vmem:[%s0 + $0x4] sm:$0xf]
    %v35 = vld [vmem:[%s0 + $0x8] sm:$0xf]
    %v36 = vld [vmem:[%s0 + $0xc] sm:$0xf]
    %v37 = vld [vmem:[%s0 + $0x10] sm:$0xf]
    %v38 = vld [vmem:[%s0 + $0x14] sm:$0xf]
    %v39 = vld [vmem:[%s0 + $0x18] sm:$0xf]
    %v40 = vld [vmem:[%s0 + $0x1c] sm:$0xf]
    %v41 = vld [vmem:[%s1] sm:$0xf]
    %v42 = vld [vmem:[%s1 + $0x4] sm:$0xf]
    %v43 = vld [vmem:[%s1 + $0x8] sm:$0xf]
    %v44 = vld [vmem:[%s1 + $0xc] sm:$0xf]
    %v45 = vld [vmem:[%s1 + $0x10] sm:$0xf]
    %v46 = vld [vmem:[%s1 + $0x14] sm:$0xf]
    %v47 = vld [vmem:[%s1 + $0x18] sm:$0xf]
    %v48 = vld [vmem:[%s1 + $0x1c] sm:$0xf]
    %v49 = vld [vmem:[%s1 + $0x20] sm:$0xf]
    %v50 = vld [vmem:[%s1 + $0x24] sm:$0xf]
    %v51 = vld [vmem:[%s1 + $0x28] sm:$0xf]
    %v52 = vld [vmem:[%s1 + $0x2c] sm:$0xf]
    %v53 = vld [vmem:[%s1 + $0x30] sm:$0xf]
    %v54 = vld [vmem:[%s1 + $0x34] sm:$0xf]
    %v55 = vld [vmem:[%s1 + $0x38] sm:$0xf]
    %v56 = vld [vmem:[%s1 + $0x3c] sm:$0xf]
    %v65 = vunpack.c.l.b16 %v33
    %v66 = vunpack.c.l.b16 %v34
    %v67 = vunpack.c.l.b16 %v35
    %v68 = vunpack.c.l.b16 %v36
    %v69 = vunpack.c.l.b16 %v37
    %v70 = vunpack.c.l.b16 %v38
    %v71 = vunpack.c.l.b16 %v39
    %v72 = vunpack.c.l.b16 %v40
    %v73 = vpack.c.b16 %v66, %v65
    %v74 = vpack.c.b16 %v68, %v67
    %v75 = vpack.c.b16 %v70, %v69
    %v76 = vpack.c.b16 %v72, %v71
    %v97 = vunpack.c.l.b16 %v41
    %v98 = vunpack.c.l.b16 %v42
    %v99 = vunpack.c.l.b16 %v43
    %v100 = vunpack.c.l.b16 %v44
    %v101 = vunpack.c.l.b16 %v45
    %v102 = vunpack.c.l.b16 %v46
    %v103 = vunpack.c.l.b16 %v47
    %v104 = vunpack.c.l.b16 %v48
    %v105 = vunpack.c.l.b16 %v49
    %v106 = vunpack.c.l.b16 %v50
    %v107 = vunpack.c.l.b16 %v51
    %v108 = vunpack.c.l.b16 %v52
    %v109 = vunpack.c.l.b16 %v53
    %v110 = vunpack.c.l.b16 %v54
    %v111 = vunpack.c.l.b16 %v55
    %v112 = vunpack.c.l.b16 %v56
    %v113 = vpack.c.b16 %v98, %v97
    %v114 = vpack.c.b16 %v100, %v99
    %v115 = vpack.c.b16 %v102, %v101
    %v116 = vpack.c.b16 %v104, %v103
    %v117 = vpack.c.b16 %v106, %v105
    %v118 = vpack.c.b16 %v108, %v107
    %v119 = vpack.c.b16 %v110, %v109
    %v120 = vpack.c.b16 %v112, %v111
    %129 = vmatprep.subr.bf16.mxu0 0
    %130 = vmatpush1.bf16.msra.mxu0 %v120
    %131 = vmatprep.subr.bf16.mxu0 0
    %132 = vmatpush1.bf16.msra.mxu0 %v119
    %133 = vmatprep.subr.bf16.mxu0 0
    %134 = vmatpush1.bf16.msra.mxu0 %v118
    %135 = vmatprep.subr.bf16.mxu0 0
    %136 = vmatpush1.bf16.msra.mxu0 %v117
    %137 = vmatprep.subr.bf16.mxu0 0
    %138 = vmatpush1.bf16.msra.mxu0 %v116
    %139 = vmatprep.subr.bf16.mxu0 0
    %140 = vmatpush1.bf16.msra.mxu0 %v115
    %141 = vmatprep.subr.bf16.mxu0 0
    %142 = vmatpush1.bf16.msra.mxu0 %v114
    %143 = vmatprep.subr.bf16.mxu0 0
    %144 = vmatpush1.bf16.msra.mxu0 %v113
    %145 = vmatprep.subr.bf16.mxu0 0
    %146 = vmatpush2.bf16.msra.mxu0 0
    %147 = vmatprep.subr.bf16.mxu0 0
    %148 = vmatpush2.bf16.msra.mxu0 0
    %149 = vmatprep.subr.bf16.mxu0 0
    %150 = vmatpush2.bf16.msra.mxu0 0
    %151 = vmatprep.subr.bf16.mxu0 0
    %152 = vmatpush2.bf16.msra.mxu0 0
    %153 = vmatprep.subr.bf16.mxu0 0
    %154 = vmatpush2.bf16.msra.mxu0 0
    %155 = vmatprep.subr.bf16.mxu0 0
    %156 = vmatpush2.bf16.msra.mxu0 0
    %157 = vmatprep.subr.bf16.mxu0 0
    %158 = vmatpush2.bf16.msra.mxu0 0
    %159 = vmatprep.subr.bf16.mxu0 0
    %160 = vmatpush2.bf16.msra.mxu0 0
    %161 = vmatprep.mubr.bf16.mxu0 0
    %162 = vmatmul.mubr.bf16.gmra.mxu0 %v73
    %v163 = vpop.f32.mrf.mxu0
    %v164 = vadd.f32 0.0, %v163
    %v165 = vpop.f32.mrf.mxu0
    %v166 = vpop.f32.mrf.mxu0
    %v167 = vadd.f32 0.0, %v166
    %v168 = vpop.f32.mrf.mxu0
    %169 = vmatprep.mubr.bf16.mxu0 0
    %170 = vmatmul.mubr.bf16.gmra.mxu0 %v74
    %v171 = vpop.f32.mrf.mxu0
    %v172 = vadd.f32 0.0, %v171
    %v173 = vpop.f32.mrf.mxu0
    %v174 = vpop.f32.mrf.mxu0
    %v175 = vadd.f32 0.0, %v174
    %v176 = vpop.f32.mrf.mxu0
    %177 = vmatprep.mubr.bf16.mxu0 0
    %178 = vmatmul.mubr.bf16.gmra.mxu0 %v75
    %v179 = vpop.f32.mrf.mxu0
    %v180 = vadd.f32 0.0, %v179
    %v181 = vpop.f32.mrf.mxu0
    %v182 = vpop.f32.mrf.mxu0
    %v183 = vadd.f32 0.0, %v182
    %v184 = vpop.f32.mrf.mxu0
    %185 = vmatprep.mubr.bf16.mxu0 0
    %186 = vmatmul.mubr.bf16.gmra.mxu0 %v76
    %v187 = vpop.f32.mrf.mxu0
    %v188 = vadd.f32 0.0, %v187
    %v189 = vpop.f32.mrf.mxu0
    %v190 = vpop.f32.mrf.mxu0
    %v191 = vadd.f32 0.0, %v190
    %v192 = vpop.f32.mrf.mxu0
    %193 = vdwg.mxu0
    %v194 = vadd.f32 %v25, %v164
    %v195 = vadd.f32 %v26, %v167
    %v196 = vadd.f32 %v27, %v172
    %v197 = vadd.f32 %v28, %v175
    %v198 = vadd.f32 %v29, %v180
    %v199 = vadd.f32 %v30, %v183
    %v200 = vadd.f32 %v31, %v188
    %v201 = vadd.f32 %v32, %v191
    %202 = vst [vmem:[#allocation2] sm:$0xff] %v194
    %203 = vst [vmem:[#allocation2 + $0x8] sm:$0xff] %v195
    %204 = vst [vmem:[#allocation2 + $0x10] sm:$0xff] %v196
    %205 = vst [vmem:[#allocation2 + $0x18] sm:$0xff] %v197
    %206 = vst [vmem:[#allocation2 + $0x20] sm:$0xff] %v198
    %207 = vst [vmem:[#allocation2 + $0x28] sm:$0xff] %v199
    %208 = vst [vmem:[#allocation2 + $0x30] sm:$0xff] %v200
    %209 = vst [vmem:[#allocation2 + $0x38] sm:$0xff] %v201
    // Predicated region
    $region14: #{time_mix_forward.15} parent=1 // pred_check
      %p210 = pneg %p13
    $region15: #{time_mix_forward.15} parent=1 // pred_check_branch
      %212 = sbr.rel (%p210) target = $region17
    $region16: #{time_mix_forward.15} parent=1 // pred_region
      %v213 = vld [vmem:[#allocation2] sm:$0xff]
      %v214 = vld [vmem:[#allocation2 + $0x8] sm:$0xff]
      %v215 = vld [vmem:[#allocation2 + $0x10] sm:$0xff]
      %v216 = vld [vmem:[#allocation2 + $0x18] sm:$0xff]
      %v217 = vld [vmem:[#allocation2 + $0x20] sm:$0xff]
      %v218 = vld [vmem:[#allocation2 + $0x28] sm:$0xff]
      %v219 = vld [vmem:[#allocation2 + $0x30] sm:$0xff]
      %v220 = vld [vmem:[#allocation2 + $0x38] sm:$0xff]
      %v221 = vpack.c.bf16 %v214, %v213
      %v222 = vpack.c.bf16 %v216, %v215
      %v223 = vpack.c.bf16 %v218, %v217
      %v224 = vpack.c.bf16 %v220, %v219
      %v229 = vunpack.c.l.b16 %v221
      %v230 = vunpack.c.h.b16 %v221
      %v231 = vunpack.c.l.b16 %v222
      %v232 = vunpack.c.h.b16 %v222
      %v233 = vunpack.c.l.b16 %v223
      %v234 = vunpack.c.h.b16 %v223
      %v235 = vunpack.c.l.b16 %v224
      %v236 = vunpack.c.h.b16 %v224
      %v237 = vpack.c.b16 %v229, %v229
      %v238 = vpack.c.b16 %v230, %v230
      %v239 = vpack.c.b16 %v231, %v231
      %v240 = vpack.c.b16 %v232, %v232
      %v241 = vpack.c.b16 %v233, %v233
      %v242 = vpack.c.b16 %v234, %v234
      %v243 = vpack.c.b16 %v235, %v235
      %v244 = vpack.c.b16 %v236, %v236
      %253 = vst [vmem:[#allocation3] sm:$0xf] %v237
      %254 = vst [vmem:[#allocation3 + $0x4] sm:$0xf] %v238
      %255 = vst [vmem:[#allocation3 + $0x8] sm:$0xf] %v239
      %256 = vst [vmem:[#allocation3 + $0xc] sm:$0xf] %v240
      %257 = vst [vmem:[#allocation3 + $0x10] sm:$0xf] %v241
      %258 = vst [vmem:[#allocation3 + $0x14] sm:$0xf] %v242
      %259 = vst [vmem:[#allocation3 + $0x18] sm:$0xf] %v243
      %260 = vst [vmem:[#allocation3 + $0x1c] sm:$0xf] %v244
    $region17: #{time_mix_forward.15} parent=1 // pred_fallthru
      _
    // Predicated region
    $region18: #{time_mix_forward.15} parent=1 // pred_check
      _
    $region19: #{time_mix_forward.15} parent=1 // pred_check_branch
      %262 = sbr.rel (0) target = $region21
    $region20: #{time_mix_forward.15} parent=1 // pred_region
      %s264 = ssub.s32 512, 512
      %265 = vsyncadd [#allocation4], %s264
      %s266 = sshll.u32 [#allocation3], 4
      %s267 = int_to_ptr.vmem [resolvable:$true] %s266
      %272 = dma.vmem_to_hbm [thread:$0]  %s267, 512, %s2, [#allocation4], 64, 64, 4
    $region21: #{time_mix_forward.15} parent=1 // pred_fallthru
      _
    // Predicated region
    $region22: #{time_mix_forward.15} parent=1 // pred_check
      _
    $region23: #{time_mix_forward.15} parent=1 // pred_check_branch
      %274 = sbr.rel (0) target = $region25
    $region24: #{time_mix_forward.15} parent=1 // pred_region
      %275 = dma.done [#allocation4], 512
    $region25: #{time_mix_forward.15} parent=1 // pred_fallthru
      _
    %276 = vsyncpa [#allocation4], 1

// kernel: time_mix_forward.14
$region0: #{time_mix_forward.14}
  #allocation0 [shape = 'u32[]', space=smem, size = 0x4, offset = 0x4, fixed_abs, tag = 'smem constant byte address 0x4 - core index']
  #allocation1 [shape = 'u32[144,128]{1,0:T(1,128)}', space=vmem, size = 0x12000, scoped, tag = 'internal scratch']
  #allocation2 [shape = 'f32[128,128]{1,0:T(8,128)}', space=vmem, size = 0x10000, scoped, tag = 'scratch operand']
  %s0 = inlined_call_operand.vmem [shape: bf16[2,32,128], index: 0, kind: input, shape index: {}]
  %s1 = inlined_call_operand.vmem [shape: bf16[2,32,128], index: 1, kind: input, shape index: {}]
  %s2 = inlined_call_operand.vmem [shape: bf16[2,32,128], index: 2, kind: input, shape index: {}]
  %s3 = inlined_call_operand.vmem [shape: bf16[2,32,128], index: 3, kind: input, shape index: {}]
  %s4 = inlined_call_operand.vmem [shape: f32[2,32,128], index: 4, kind: input, shape index: {}]
  %s5 = inlined_call_operand.vmem [shape: f32[1,128,128], index: 5, kind: input, shape index: {}]
  %s6 = inlined_call_operand.vmem [shape: f32[1,128], index: 6, kind: input, shape index: {}]
  %s7 = inlined_call_operand.vmem [shape: f32[1,128], index: 7, kind: input, shape index: {}]
  %s8 = inlined_call_operand.vmem [shape: f32[1,128], index: 8, kind: input, shape index: {}]
  %s9 = inlined_call_operand.vmem [shape: f32[1,128], index: 9, kind: input, shape index: {}]
  %s10 = inlined_call_operand.vmem [shape: f32[16,16], index: 10, kind: input, shape index: {}]
  %s11 = inlined_call_operand.vmem [shape: f32[16,16], index: 11, kind: input, shape index: {}]
  %s12 = inlined_call_operand.vmem [shape: f32[128,128], index: 12, kind: input, shape index: {}]
  %s13 = inlined_call_operand.vmem [shape: bf16[2,32,128], index: 13, kind: output, shape index: {}]
  %s14 = sld [smem:[#allocation0]]
  $region96: #{time_mix_forward.14} parent=0
    _
  %s16 = ssub.s32 1, %s14
  %s17 = scalar_select 0, %s16, %s14
  loop: start=0, step=1, limit=4
  $region2: #{time_mix_forward.14} parent=0 // loop_pre_header
    _
  $region3: #{time_mix_forward.14} parent=0 // loop_header
    %s19 = sphi 0, %s23
    %p20 = scmp.ge.s32.totalorder %s19, 4
    %s26 = sphi 0, %s45
    %s27 = sphi 0, %s41
    %s28 = sphi 0, %s37
    %s29 = sphi 0, %s26
    %s30 = sphi 0, %s27
    %s31 = sphi 0, %s28
    %s32 = sphi 0, %s29
    %s33 = sphi 0, %s30
    %s34 = sphi 0, %s31
    %s52 = sphi 0, %s54
    %s55 = sphi 0, %s52
    %s56 = sphi 0, %s55
    %s72 = sphi 0, %s56
    %s82 = sphi 0, %s84
    %s85 = sphi 0, %s82
    %s86 = sphi 0, %s85
    %s102 = sphi 0, %s86
    %s112 = sphi 0, %s114
    %s115 = sphi 0, %s112
    %s116 = sphi 0, %s115
    %s132 = sphi 0, %s116
    %s142 = sphi 0, %s144
    %s145 = sphi 0, %s142
    %s146 = sphi 0, %s145
    %s162 = sphi 0, %s146
    %s170 = sphi 0, %s172
    %s173 = sphi 0, %s170
    %s174 = sphi 0, %s173
    %s190 = sphi 0, %s174
    %s196 = sphi 0, %s198
    %s199 = sphi 0, %s196
    %s200 = sphi 0, %s199
    %s216 = sphi 0, %s200
    %s222 = sphi 0, %s224
    %s225 = sphi 0, %s222
    %s226 = sphi 0, %s225
    %s242 = sphi 0, %s226
    %s248 = sphi 0, %s250
    %s251 = sphi 0, %s248
    %s252 = sphi 0, %s251
    %s268 = sphi 0, %s252
    %s274 = sphi 0, %s276
    %s277 = sphi 0, %s274
    %s278 = sphi 0, %s277
    %s294 = sphi 0, %s278
    %s300 = sphi 0, %s302
    %s303 = sphi 0, %s300
    %s304 = sphi 0, %s303
    %s320 = sphi 0, %s304
    %s324 = sphi 0, %s324
    %s326 = sphi 0, %s324
    %s327 = sphi 0, %s326
    %s341 = sphi 0, %s327
    %s345 = sphi 0, %s345
    %s347 = sphi 0, %s345
    %s348 = sphi 0, %s347
    %s362 = sphi 0, %s348
    %s366 = sphi 0, %s366
    %s368 = sphi 0, %s366
    %s369 = sphi 0, %s368
    %s383 = sphi 0, %s369
    %s393 = sphi 0, %s395
    %s396 = sphi 0, %s393
    %s397 = sphi 0, %s396
    %s413 = sphi 0, %s397
  $region4: #{time_mix_forward.14} parent=0 // loop_header_branch
    %22 = sbr.rel (%p20) target = $region8
  $region5: #{time_mix_forward.14} parent=0 // loop_body
    %s24 = ssub.s32 %s19, 1
    %s25 = ssub.s32 %s19, 2
    %s35 = sadd.s32 1, %s28
    %p36 = scmp.ge.s32.totalorder %s35, 1
    %s37 = scalar_select %p36, 0, %s35
    %s38 = sadd.s32 1, %s27
    %s39 = scalar_select %p36, %s38, %s27
    %p40 = scmp.ge.s32.totalorder %s39, 1
    %s41 = scalar_select %p40, 0, %s39
    %s42 = sadd.s32 1, %s26
    %s43 = scalar_select %p40, %s42, %s26
    %p44 = scmp.ge.s32.totalorder %s43, 2
    %s45 = scalar_select %p44, 0, %s43
    %s46 = ssub.s32 %s26, %s45
    %s47 = ssub.s32 %s28, %s37
    %s48 = sor.u32 %s46, %s47
    %s49 = ssub.s32 %s27, %s41
    %s50 = sor.u32 %s48, %s49
    %p51 = scmp.eq.s32.totalorder %s50, 0
    %s53 = sadd.s32 %s52, 1
    %s54 = scalar_select %p51, %s52, %s53
    %p57 = pneg %p51
    %p58 = scmp.eq.s32.totalorder %s19, 1
    %p59 = por %p57, %p58
    %p60 = scmp.ne.s32.totalorder %s52, %s55
    %p61 = scmp.eq.s32.totalorder %s19, 0
    %p62 = por %p60, %p61
    %p63 = scmp.ne.s32.totalorder %s52, %s55
    %p64 = scmp.eq.s32.totalorder %s24, 1
    %p65 = por %p63, %p64
    %p66 = scmp.ne.s32.totalorder %s55, %s56
    %p67 = scmp.eq.s32.totalorder %s24, 0
    %p68 = por %p66, %p67
    %p69 = scmp.ne.s32.totalorder %s55, %s56
    %p70 = scmp.eq.s32.totalorder %s25, 1
    %p71 = por %p69, %p70
    %p73 = scmp.ne.s32.totalorder %s56, %s72
    %p74 = scmp.eq.s32.totalorder %s25, 0
    %p75 = por %p73, %p74
    %s76 = ssub.s32 %s26, %s45
    %s77 = ssub.s32 %s28, %s37
    %s78 = sor.u32 %s76, %s77
    %s79 = ssub.s32 %s27, %s41
    %s80 = sor.u32 %s78, %s79
    %p81 = scmp.eq.s32.totalorder %s80, 0
    %s83 = sadd.s32 %s82, 1
    %s84 = scalar_select %p81, %s82, %s83
    %p87 = pneg %p81
    %p88 = scmp.eq.s32.totalorder %s19, 1
    %p89 = por %p87, %p88
    %p90 = scmp.ne.s32.totalorder %s82, %s85
    %p91 = scmp.eq.s32.totalorder %s19, 0
    %p92 = por %p90, %p91
    %p93 = scmp.ne.s32.totalorder %s82, %s85
    %p94 = scmp.eq.s32.totalorder %s24, 1
    %p95 = por %p93, %p94
    %p96 = scmp.ne.s32.totalorder %s85, %s86
    %p97 = scmp.eq.s32.totalorder %s24, 0
    %p98 = por %p96, %p97
    %p99 = scmp.ne.s32.totalorder %s85, %s86
    %p100 = scmp.eq.s32.totalorder %s25, 1
    %p101 = por %p99, %p100
    %p103 = scmp.ne.s32.totalorder %s86, %s102
    %p104 = scmp.eq.s32.totalorder %s25, 0
    %p105 = por %p103, %p104
    %s106 = ssub.s32 %s26, %s45
    %s107 = ssub.s32 %s28, %s37
    %s108 = sor.u32 %s106, %s107
    %s109 = ssub.s32 %s27, %s41
    %s110 = sor.u32 %s108, %s109
    %p111 = scmp.eq.s32.totalorder %s110, 0
    %s113 = sadd.s32 %s112, 1
    %s114 = scalar_select %p111, %s112, %s113
    %p117 = pneg %p111
    %p118 = scmp.eq.s32.totalorder %s19, 1
    %p119 = por %p117, %p118
    %p120 = scmp.ne.s32.totalorder %s112, %s115
    %p121 = scmp.eq.s32.totalorder %s19, 0
    %p122 = por %p120, %p121
    %p123 = scmp.ne.s32.totalorder %s112, %s115
    %p124 = scmp.eq.s32.totalorder %s24, 1
    %p125 = por %p123, %p124
    %p126 = scmp.ne.s32.totalorder %s115, %s116
    %p127 = scmp.eq.s32.totalorder %s24, 0
    %p128 = por %p126, %p127
    %p129 = scmp.ne.s32.totalorder %s115, %s116
    %p130 = scmp.eq.s32.totalorder %s25, 1
    %p131 = por %p129, %p130
    %p133 = scmp.ne.s32.totalorder %s116, %s132
    %p134 = scmp.eq.s32.totalorder %s25, 0
    %p135 = por %p133, %p134
    %s136 = ssub.s32 %s26, %s45
    %s137 = ssub.s32 %s28, %s37
    %s138 = sor.u32 %s136, %s137
    %s139 = ssub.s32 %s27, %s41
    %s140 = sor.u32 %s138, %s139
    %p141 = scmp.eq.s32.totalorder %s140, 0
    %s143 = sadd.s32 %s142, 1
    %s144 = scalar_select %p141, %s142, %s143
    %p147 = pneg %p141
    %p148 = scmp.eq.s32.totalorder %s19, 1
    %p149 = por %p147, %p148
    %p150 = scmp.ne.s32.totalorder %s142, %s145
    %p151 = scmp.eq.s32.totalorder %s19, 0
    %p152 = por %p150, %p151
    %p153 = scmp.ne.s32.totalorder %s142, %s145
    %p154 = scmp.eq.s32.totalorder %s24, 1
    %p155 = por %p153, %p154
    %p156 = scmp.ne.s32.totalorder %s145, %s146
    %p157 = scmp.eq.s32.totalorder %s24, 0
    %p158 = por %p156, %p157
    %p159 = scmp.ne.s32.totalorder %s145, %s146
    %p160 = scmp.eq.s32.totalorder %s25, 1
    %p161 = por %p159, %p160
    %p163 = scmp.ne.s32.totalorder %s146, %s162
    %p164 = scmp.eq.s32.totalorder %s25, 0
    %p165 = por %p163, %p164
    %s166 = ssub.s32 %s26, %s45
    %s167 = ssub.s32 %s28, %s37
    %s168 = sor.u32 %s166, %s167
    %p169 = scmp.eq.s32.totalorder %s168, 0
    %s171 = sadd.s32 %s170, 1
    %s172 = scalar_select %p169, %s170, %s171
    %p175 = pneg %p169
    %p176 = scmp.eq.s32.totalorder %s19, 1
    %p177 = por %p175, %p176
    %p178 = scmp.ne.s32.totalorder %s170, %s173
    %p179 = scmp.eq.s32.totalorder %s19, 0
    %p180 = por %p178, %p179
    %p181 = scmp.ne.s32.totalorder %s170, %s173
    %p182 = scmp.eq.s32.totalorder %s24, 1
    %p183 = por %p181, %p182
    %p184 = scmp.ne.s32.totalorder %s173, %s174
    %p185 = scmp.eq.s32.totalorder %s24, 0
    %p186 = por %p184, %p185
    %p187 = scmp.ne.s32.totalorder %s173, %s174
    %p188 = scmp.eq.s32.totalorder %s25, 1
    %p189 = por %p187, %p188
    %p191 = scmp.ne.s32.totalorder %s174, %s190
    %p192 = scmp.eq.s32.totalorder %s25, 0
    %p193 = por %p191, %p192
    %s194 = ssub.s32 %s27, %s41
    %p195 = scmp.eq.s32.totalorder %s194, 0
    %s197 = sadd.s32 %s196, 1
    %s198 = scalar_select %p195, %s196, %s197
    %p201 = pneg %p195
    %p202 = scmp.eq.s32.totalorder %s19, 1
    %p203 = por %p201, %p202
    %p204 = scmp.ne.s32.totalorder %s196, %s199
    %p205 = scmp.eq.s32.totalorder %s19, 0
    %p206 = por %p204, %p205
    %p207 = scmp.ne.s32.totalorder %s196, %s199
    %p208 = scmp.eq.s32.totalorder %s24, 1
    %p209 = por %p207, %p208
    %p210 = scmp.ne.s32.totalorder %s199, %s200
    %p211 = scmp.eq.s32.totalorder %s24, 0
    %p212 = por %p210, %p211
    %p213 = scmp.ne.s32.totalorder %s199, %s200
    %p214 = scmp.eq.s32.totalorder %s25, 1
    %p215 = por %p213, %p214
    %p217 = scmp.ne.s32.totalorder %s200, %s216
    %p218 = scmp.eq.s32.totalorder %s25, 0
    %p219 = por %p217, %p218
    %s220 = ssub.s32 %s27, %s41
    %p221 = scmp.eq.s32.totalorder %s220, 0
    %s223 = sadd.s32 %s222, 1
    %s224 = scalar_select %p221, %s222, %s223
    %p227 = pneg %p221
    %p228 = scmp.eq.s32.totalorder %s19, 1
    %p229 = por %p227, %p228
    %p230 = scmp.ne.s32.totalorder %s222, %s225
    %p231 = scmp.eq.s32.totalorder %s19, 0
    %p232 = por %p230, %p231
    %p233 = scmp.ne.s32.totalorder %s222, %s225
    %p234 = scmp.eq.s32.totalorder %s24, 1
    %p235 = por %p233, %p234
    %p236 = scmp.ne.s32.totalorder %s225, %s226
    %p237 = scmp.eq.s32.totalorder %s24, 0
    %p238 = por %p236, %p237
    %p239 = scmp.ne.s32.totalorder %s225, %s226
    %p240 = scmp.eq.s32.totalorder %s25, 1
    %p241 = por %p239, %p240
    %p243 = scmp.ne.s32.totalorder %s226, %s242
    %p244 = scmp.eq.s32.totalorder %s25, 0
    %p245 = por %p243, %p244
    %s246 = ssub.s32 %s27, %s41
    %p247 = scmp.eq.s32.totalorder %s246, 0
    %s249 = sadd.s32 %s248, 1
    %s250 = scalar_select %p247, %s248, %s249
    %p253 = pneg %p247
    %p254 = scmp.eq.s32.totalorder %s19, 1
    %p255 = por %p253, %p254
    %p256 = scmp.ne.s32.totalorder %s248, %s251
    %p257 = scmp.eq.s32.totalorder %s19, 0
    %p258 = por %p256, %p257
    %p259 = scmp.ne.s32.totalorder %s248, %s251
    %p260 = scmp.eq.s32.totalorder %s24, 1
    %p261 = por %p259, %p260
    %p262 = scmp.ne.s32.totalorder %s251, %s252
    %p263 = scmp.eq.s32.totalorder %s24, 0
    %p264 = por %p262, %p263
    %p265 = scmp.ne.s32.totalorder %s251, %s252
    %p266 = scmp.eq.s32.totalorder %s25, 1
    %p267 = por %p265, %p266
    %p269 = scmp.ne.s32.totalorder %s252, %s268
    %p270 = scmp.eq.s32.totalorder %s25, 0
    %p271 = por %p269, %p270
    %s272 = ssub.s32 %s27, %s41
    %p273 = scmp.eq.s32.totalorder %s272, 0
    %s275 = sadd.s32 %s274, 1
    %s276 = scalar_select %p273, %s274, %s275
    %p279 = pneg %p273
    %p280 = scmp.eq.s32.totalorder %s19, 1
    %p281 = por %p279, %p280
    %p282 = scmp.ne.s32.totalorder %s274, %s277
    %p283 = scmp.eq.s32.totalorder %s19, 0
    %p284 = por %p282, %p283
    %p285 = scmp.ne.s32.totalorder %s274, %s277
    %p286 = scmp.eq.s32.totalorder %s24, 1
    %p287 = por %p285, %p286
    %p288 = scmp.ne.s32.totalorder %s277, %s278
    %p289 = scmp.eq.s32.totalorder %s24, 0
    %p290 = por %p288, %p289
    %p291 = scmp.ne.s32.totalorder %s277, %s278
    %p292 = scmp.eq.s32.totalorder %s25, 1
    %p293 = por %p291, %p292
    %p295 = scmp.ne.s32.totalorder %s278, %s294
    %p296 = scmp.eq.s32.totalorder %s25, 0
    %p297 = por %p295, %p296
    %s298 = ssub.s32 %s27, %s41
    %p299 = scmp.eq.s32.totalorder %s298, 0
    %s301 = sadd.s32 %s300, 1
    %s302 = scalar_select %p299, %s300, %s301
    %p305 = pneg %p299
    %p306 = scmp.eq.s32.totalorder %s19, 1
    %p307 = por %p305, %p306
    %p308 = scmp.ne.s32.totalorder %s300, %s303
    %p309 = scmp.eq.s32.totalorder %s19, 0
    %p310 = por %p308, %p309
    %p311 = scmp.ne.s32.totalorder %s300, %s303
    %p312 = scmp.eq.s32.totalorder %s24, 1
    %p313 = por %p311, %p312
    %p314 = scmp.ne.s32.totalorder %s303, %s304
    %p315 = scmp.eq.s32.totalorder %s24, 0
    %p316 = por %p314, %p315
    %p317 = scmp.ne.s32.totalorder %s303, %s304
    %p318 = scmp.eq.s32.totalorder %s25, 1
    %p319 = por %p317, %p318
    %p321 = scmp.ne.s32.totalorder %s304, %s320
    %p322 = scmp.eq.s32.totalorder %s25, 0
    %p323 = por %p321, %p322
    %s325 = sadd.s32 %s324, 1
    %p328 = scmp.eq.s32.totalorder %s19, 1
    %p329 = scmp.ne.s32.totalorder %s324, %s326
    %p330 = scmp.eq.s32.totalorder %s19, 0
    %p331 = por %p329, %p330
    %p332 = scmp.ne.s32.totalorder %s324, %s326
    %p333 = scmp.eq.s32.totalorder %s24, 1
    %p334 = por %p332, %p333
    %p335 = scmp.ne.s32.totalorder %s326, %s327
    %p336 = scmp.eq.s32.totalorder %s24, 0
    %p337 = por %p335, %p336
    %p338 = scmp.ne.s32.totalorder %s326, %s327
    %p339 = scmp.eq.s32.totalorder %s25, 1
    %p340 = por %p338, %p339
    %p342 = scmp.ne.s32.totalorder %s327, %s341
    %p343 = scmp.eq.s32.totalorder %s25, 0
    %p344 = por %p342, %p343
    %s346 = sadd.s32 %s345, 1
    %p349 = scmp.eq.s32.totalorder %s19, 1
    %p350 = scmp.ne.s32.totalorder %s345, %s347
    %p351 = scmp.eq.s32.totalorder %s19, 0
    %p352 = por %p350, %p351
    %p353 = scmp.ne.s32.totalorder %s345, %s347
    %p354 = scmp.eq.s32.totalorder %s24, 1
    %p355 = por %p353, %p354
    %p356 = scmp.ne.s32.totalorder %s347, %s348
    %p357 = scmp.eq.s32.totalorder %s24, 0
    %p358 = por %p356, %p357
    %p359 = scmp.ne.s32.totalorder %s347, %s348
    %p360 = scmp.eq.s32.totalorder %s25, 1
    %p361 = por %p359, %p360
    %p363 = scmp.ne.s32.totalorder %s348, %s362
    %p364 = scmp.eq.s32.totalorder %s25, 0
    %p365 = por %p363, %p364
    %s367 = sadd.s32 %s366, 1
    %p370 = scmp.eq.s32.totalorder %s19, 1
    %p371 = scmp.ne.s32.totalorder %s366, %s368
    %p372 = scmp.eq.s32.totalorder %s19, 0
    %p373 = por %p371, %p372
    %p374 = scmp.ne.s32.totalorder %s366, %s368
    %p375 = scmp.eq.s32.totalorder %s24, 1
    %p376 = por %p374, %p375
    %p377 = scmp.ne.s32.totalorder %s368, %s369
    %p378 = scmp.eq.s32.totalorder %s24, 0
    %p379 = por %p377, %p378
    %p380 = scmp.ne.s32.totalorder %s368, %s369
    %p381 = scmp.eq.s32.totalorder %s25, 1
    %p382 = por %p380, %p381
    %p384 = scmp.ne.s32.totalorder %s369, %s383
    %p385 = scmp.eq.s32.totalorder %s25, 0
    %p386 = por %p384, %p385
    %s387 = ssub.s32 %s26, %s45
    %s388 = ssub.s32 %s28, %s37
    %s389 = sor.u32 %s387, %s388
    %s390 = ssub.s32 %s27, %s41
    %s391 = sor.u32 %s389, %s390
    %p392 = scmp.eq.s32.totalorder %s391, 0
    %s394 = sadd.s32 %s393, 1
    %s395 = scalar_select %p392, %s393, %s394
    %p398 = pneg %p392
    %p399 = scmp.eq.s32.totalorder %s19, 1
    %p400 = por %p398, %p399
    %p401 = scmp.ne.s32.totalorder %s393, %s396
    %p402 = scmp.eq.s32.totalorder %s19, 0
    %p403 = por %p401, %p402
    %p404 = scmp.ne.s32.totalorder %s393, %s396
    %p405 = scmp.eq.s32.totalorder %s24, 1
    %p406 = por %p404, %p405
    %p407 = scmp.ne.s32.totalorder %s396, %s397
    %p408 = scmp.eq.s32.totalorder %s24, 0
    %p409 = por %p407, %p408
    %p410 = scmp.ne.s32.totalorder %s396, %s397
    %p411 = scmp.eq.s32.totalorder %s25, 1
    %p412 = por %p410, %p411
    %p414 = scmp.ne.s32.totalorder %s397, %s413
    %p415 = scmp.eq.s32.totalorder %s25, 0
    %p416 = por %p414, %p415
    %p417 = scmp.le.s32.totalorder 1, %s19
    %p418 = scmp.lt.s32.totalorder %s19, 3
    %p419 = pnand %p417, %p418
    %p420 = pneg %p419
    // Predicated region
    $region9: #{time_mix_forward.14} parent=5 // pred_check
      _
    $region10: #{time_mix_forward.14} parent=5 // pred_check_branch
      %422 = sbr.rel (%p419) target = $region12
    $region11: #{time_mix_forward.14} parent=5 // pred_region
      %s423 = ssub.s32 %s19, 1
      // Predicated region
      $region13: #{time_mix_forward.14} parent=11 // pred_check
        %p424 = pneg %p212
      $region14: #{time_mix_forward.14} parent=11 // pred_check_branch
        %426 = sbr.rel (%p424) target = $region16
      $region15: #{time_mix_forward.14} parent=11 // pred_region
        %p427 = scmp.lt.s32.totalorder %s30, 0
        %s428 = scalar_select %p427, %s30, 0
        %s429 = smul.addr %s428, 16
        %s430 = smul.addr %s429, 8
        %s431 = scalar_lea.vmem %s5, %s430
      $region16: #{time_mix_forward.14} parent=11 // pred_fallthru
        _
      // Predicated region
      $region17: #{time_mix_forward.14} parent=11 // pred_check
        %p432 = pneg %p238
      $region18: #{time_mix_forward.14} parent=11 // pred_check_branch
        %434 = sbr.rel (%p432) target = $region20
      $region19: #{time_mix_forward.14} parent=11 // pred_region
        %p435 = scmp.lt.s32.totalorder %s30, 0
        %s436 = scalar_select %p435, %s30, 0
        %s437 = scalar_lea.vmem %s6, %s436
      $region20: #{time_mix_forward.14} parent=11 // pred_fallthru
        _
      // Predicated region
      $region21: #{time_mix_forward.14} parent=11 // pred_check
        %p438 = pneg %p264
      $region22: #{time_mix_forward.14} parent=11 // pred_check_branch
        %440 = sbr.rel (%p438) target = $region24
      $region23: #{time_mix_forward.14} parent=11 // pred_region
        %p441 = scmp.lt.s32.totalorder %s30, 0
        %s442 = scalar_select %p441, %s30, 0
        %s443 = scalar_lea.vmem %s7, %s442
      $region24: #{time_mix_forward.14} parent=11 // pred_fallthru
        _
      // Predicated region
      $region25: #{time_mix_forward.14} parent=11 // pred_check
        %p444 = pneg %p290
      $region26: #{time_mix_forward.14} parent=11 // pred_check_branch
        %446 = sbr.rel (%p444) target = $region28
      $region27: #{time_mix_forward.14} parent=11 // pred_region
        %p447 = scmp.lt.s32.totalorder %s30, 0
        %s448 = scalar_select %p447, %s30, 0
        %s449 = scalar_lea.vmem %s8, %s448
      $region28: #{time_mix_forward.14} parent=11 // pred_fallthru
        _
      // Predicated region
      $region29: #{time_mix_forward.14} parent=11 // pred_check
        %p450 = pneg %p316
      $region30: #{time_mix_forward.14} parent=11 // pred_check_branch
        %452 = sbr.rel (%p450) target = $region32
      $region31: #{time_mix_forward.14} parent=11 // pred_region
        %p453 = scmp.lt.s32.totalorder %s30, 0
        %s454 = scalar_select %p453, %s30, 0
        %s455 = scalar_lea.vmem %s9, %s454
      $region32: #{time_mix_forward.14} parent=11 // pred_fallthru
        _
      // Predicated region
      $region33: #{time_mix_forward.14} parent=11 // pred_check
        %p456 = pneg %p337
      $region34: #{time_mix_forward.14} parent=11 // pred_check_branch
        %458 = sbr.rel (%p456) target = $region36
      $region35: #{time_mix_forward.14} parent=11 // pred_region
        _
      $region36: #{time_mix_forward.14} parent=11 // pred_fallthru
        _
      // Predicated region
      $region37: #{time_mix_forward.14} parent=11 // pred_check
        %p459 = pneg %p358
      $region38: #{time_mix_forward.14} parent=11 // pred_check_branch
        %461 = sbr.rel (%p459) target = $region40
      $region39: #{time_mix_forward.14} parent=11 // pred_region
        _
      $region40: #{time_mix_forward.14} parent=11 // pred_fallthru
        _
      // Predicated region
      $region41: #{time_mix_forward.14} parent=11 // pred_check
        %p462 = pneg %p379
      $region42: #{time_mix_forward.14} parent=11 // pred_check_branch
        %464 = sbr.rel (%p462) target = $region44
      $region43: #{time_mix_forward.14} parent=11 // pred_region
        _
      $region44: #{time_mix_forward.14} parent=11 // pred_fallthru
        _
    $region12: #{time_mix_forward.14} parent=5 // pred_fallthru
      _
    %p465 = scmp.lt.s32.totalorder %s19, 2
    // Predicated region
    $region45: #{time_mix_forward.14} parent=5 // pred_check
      %p466 = pneg %p465
    $region46: #{time_mix_forward.14} parent=5 // pred_check_branch
      %468 = sbr.rel (%p466) target = $region48
    $region47: #{time_mix_forward.14} parent=5 // pred_region
      // Predicated region
      $region49: #{time_mix_forward.14} parent=47 // pred_check
        %p469 = pneg %p62
      $region50: #{time_mix_forward.14} parent=47 // pred_check_branch
        %471 = sbr.rel (%p469) target = $region52
      $region51: #{time_mix_forward.14} parent=47 // pred_region
        %s472 = smul.u32 4, %s28
        %p473 = scmp.lt.s32.totalorder %s26, 1
        %s474 = scalar_select %p473, %s26, 1
        %p475 = scmp.lt.s32.totalorder %s472, 3
        %s476 = scalar_select %p475, %s472, 3
        %p477 = scmp.lt.s32.totalorder %s27, 0
        %s478 = scalar_select %p477, %s27, 0
        %s479 = sadd.s32 %s478, %s476
        %s480 = smul.addr %s474, 4
        %s481 = sadd.s32 %s479, %s480
        %s482 = smul.addr %s481, 4
        %s483 = scalar_lea.vmem %s0, %s482
        %s484 = smul.u32 4, %s28
      $region52: #{time_mix_forward.14} parent=47 // pred_fallthru
        _
      // Predicated region
      $region53: #{time_mix_forward.14} parent=47 // pred_check
        %p485 = pneg %p92
      $region54: #{time_mix_forward.14} parent=47 // pred_check_branch
        %487 = sbr.rel (%p485) target = $region56
      $region55: #{time_mix_forward.14} parent=47 // pred_region
        %s488 = smul.u32 4, %s28
        %p489 = scmp.lt.s32.totalorder %s26, 1
        %s490 = scalar_select %p489, %s26, 1
        %p491 = scmp.lt.s32.totalorder %s488, 3
        %s492 = scalar_select %p491, %s488, 3
        %p493 = scmp.lt.s32.totalorder %s27, 0
        %s494 = scalar_select %p493, %s27, 0
        %s495 = sadd.s32 %s494, %s492
        %s496 = smul.addr %s490, 4
        %s497 = sadd.s32 %s495, %s496
        %s498 = smul.addr %s497, 4
        %s499 = scalar_lea.vmem %s1, %s498
        %s500 = smul.u32 4, %s28
      $region56: #{time_mix_forward.14} parent=47 // pred_fallthru
        _
      // Predicated region
      $region57: #{time_mix_forward.14} parent=47 // pred_check
        %p501 = pneg %p122
      $region58: #{time_mix_forward.14} parent=47 // pred_check_branch
        %503 = sbr.rel (%p501) target = $region60
      $region59: #{time_mix_forward.14} parent=47 // pred_region
        %s504 = smul.u32 4, %s28
        %p505 = scmp.lt.s32.totalorder %s26, 1
        %s506 = scalar_select %p505, %s26, 1
        %p507 = scmp.lt.s32.totalorder %s504, 3
        %s508 = scalar_select %p507, %s504, 3
        %p509 = scmp.lt.s32.totalorder %s27, 0
        %s510 = scalar_select %p509, %s27, 0
        %s511 = sadd.s32 %s510, %s508
        %s512 = smul.addr %s506, 4
        %s513 = sadd.s32 %s511, %s512
        %s514 = smul.addr %s513, 4
        %s515 = scalar_lea.vmem %s2, %s514
        %s516 = smul.u32 4, %s28
      $region60: #{time_mix_forward.14} parent=47 // pred_fallthru
        _
      // Predicated region
      $region61: #{time_mix_forward.14} parent=47 // pred_check
        %p517 = pneg %p152
      $region62: #{time_mix_forward.14} parent=47 // pred_check_branch
        %519 = sbr.rel (%p517) target = $region64
      $region63: #{time_mix_forward.14} parent=47 // pred_region
        %s520 = smul.u32 4, %s28
        %p521 = scmp.lt.s32.totalorder %s26, 1
        %s522 = scalar_select %p521, %s26, 1
        %p523 = scmp.lt.s32.totalorder %s520, 3
        %s524 = scalar_select %p523, %s520, 3
        %p525 = scmp.lt.s32.totalorder %s27, 0
        %s526 = scalar_select %p525, %s27, 0
        %s527 = sadd.s32 %s526, %s524
        %s528 = smul.addr %s522, 4
        %s529 = sadd.s32 %s527, %s528
        %s530 = smul.addr %s529, 4
        %s531 = scalar_lea.vmem %s3, %s530
        %s532 = smul.u32 4, %s28
      $region64: #{time_mix_forward.14} parent=47 // pred_fallthru
        _
      // Predicated region
      $region65: #{time_mix_forward.14} parent=47 // pred_check
        %p533 = pneg %p180
      $region66: #{time_mix_forward.14} parent=47 // pred_check_branch
        %535 = sbr.rel (%p533) target = $region68
      $region67: #{time_mix_forward.14} parent=47 // pred_region
        %s536 = smul.u32 4, %s28
        %p537 = scmp.lt.s32.totalorder %s26, 1
        %s538 = scalar_select %p537, %s26, 1
        %p539 = scmp.lt.s32.totalorder %s536, 3
        %s540 = scalar_select %p539, %s536, 3
        %s541 = smul.addr %s538, 4
        %s542 = sadd.s32 %s540, %s541
        %s543 = smul.addr %s542, 8
        %s544 = scalar_lea.vmem %s4, %s543
        %s545 = smul.u32 4, %s28
      $region68: #{time_mix_forward.14} parent=47 // pred_fallthru
        _
    $region48: #{time_mix_forward.14} parent=5 // pred_fallthru
      _
    %p546 = scmp.le.s32.totalorder 1, %s19
    %p547 = scmp.lt.s32.totalorder %s19, 3
    %p548 = pnand %p546, %p547
    %p549 = pneg %p548
    // Predicated region
    $region69: #{time_mix_forward.14} parent=5 // pred_check
      _
    $region70: #{time_mix_forward.14} parent=5 // pred_check_branch
      %551 = sbr.rel (%p548) target = $region72
    $region71: #{time_mix_forward.14} parent=5 // pred_region
      %s552 = ssub.s32 %s19, 1
      %s553 = smul.u32 4, %s31
      %p554 = scmp.lt.s32.totalorder %s29, 1
      %s555 = scalar_select %p554, %s29, 1
      %p556 = scmp.lt.s32.totalorder %s553, 3
      %s557 = scalar_select %p556, %s553, 3
      %p558 = scmp.lt.s32.totalorder %s30, 0
      %s559 = scalar_select %p558, %s30, 0
      %s560 = sadd.s32 %s559, %s557
      %s561 = smul.addr %s555, 4
      %s562 = sadd.s32 %s560, %s561
      %s563 = smul.addr %s562, 4
      %s564 = scalar_lea.vmem %s0, %s563
      %p565 = pneg %p68
      %p566 = pneg %p65
      %s567 = smul.u32 4, %s31
      %p568 = scmp.lt.s32.totalorder %s29, 1
      %s569 = scalar_select %p568, %s29, 1
      %p570 = scmp.lt.s32.totalorder %s567, 3
      %s571 = scalar_select %p570, %s567, 3
      %p572 = scmp.lt.s32.totalorder %s30, 0
      %s573 = scalar_select %p572, %s30, 0
      %s574 = sadd.s32 %s573, %s571
      %s575 = smul.addr %s569, 4
      %s576 = sadd.s32 %s574, %s575
      %s577 = smul.addr %s576, 4
      %s578 = scalar_lea.vmem %s1, %s577
      %p579 = pneg %p98
      %p580 = pneg %p95
      %s581 = smul.u32 4, %s31
      %p582 = scmp.lt.s32.totalorder %s29, 1
      %s583 = scalar_select %p582, %s29, 1
      %p584 = scmp.lt.s32.totalorder %s581, 3
      %s585 = scalar_select %p584, %s581, 3
      %p586 = scmp.lt.s32.totalorder %s30, 0
      %s587 = scalar_select %p586, %s30, 0
      %s588 = sadd.s32 %s587, %s585
      %s589 = smul.addr %s583, 4
      %s590 = sadd.s32 %s588, %s589
      %s591 = smul.addr %s590, 4
      %s592 = scalar_lea.vmem %s2, %s591
      %p593 = pneg %p128
      %p594 = pneg %p125
      %s595 = smul.u32 4, %s31
      %p596 = scmp.lt.s32.totalorder %s29, 1
      %s597 = scalar_select %p596, %s29, 1
      %p598 = scmp.lt.s32.totalorder %s595, 3
      %s599 = scalar_select %p598, %s595, 3
      %p600 = scmp.lt.s32.totalorder %s30, 0
      %s601 = scalar_select %p600, %s30, 0
      %s602 = sadd.s32 %s601, %s599
      %s603 = smul.addr %s597, 4
      %s604 = sadd.s32 %s602, %s603
      %s605 = smul.addr %s604, 4
      %s606 = scalar_lea.vmem %s3, %s605
      %p607 = pneg %p158
      %p608 = pneg %p155
      %s609 = smul.u32 4, %s31
      %p610 = scmp.lt.s32.totalorder %s29, 1
      %s611 = scalar_select %p610, %s29, 1
      %p612 = scmp.lt.s32.totalorder %s609, 3
      %s613 = scalar_select %p612, %s609, 3
      %s614 = smul.addr %s611, 4
      %s615 = sadd.s32 %s613, %s614
      %s616 = smul.addr %s615, 8
      %s617 = scalar_lea.vmem %s4, %s616
      %p618 = pneg %p186
      %p619 = pneg %p183
      %p620 = scmp.lt.s32.totalorder %s30, 0
      %s621 = scalar_select %p620, %s30, 0
      %s622 = smul.addr %s621, 16
      %s623 = smul.addr %s622, 8
      %s624 = scalar_lea.vmem %s5, %s623
      %p625 = pneg %p212
      %p626 = pneg %p209
      %p627 = scmp.lt.s32.totalorder %s30, 0
      %s628 = scalar_select %p627, %s30, 0
      %s629 = scalar_lea.vmem %s6, %s628
      %p630 = pneg %p238
      %p631 = pneg %p235
      %p632 = scmp.lt.s32.totalorder %s30, 0
      %s633 = scalar_select %p632, %s30, 0
      %s634 = scalar_lea.vmem %s7, %s633
      %p635 = pneg %p264
      %p636 = pneg %p261
      %p637 = scmp.lt.s32.totalorder %s30, 0
      %s638 = scalar_select %p637, %s30, 0
      %s639 = scalar_lea.vmem %s8, %s638
      %p640 = pneg %p290
      %p641 = pneg %p287
      %p642 = scmp.lt.s32.totalorder %s30, 0
      %s643 = scalar_select %p642, %s30, 0
      %s644 = scalar_lea.vmem %s9, %s643
      %p645 = pneg %p316
      %p646 = pneg %p313
      %p647 = pneg %p337
      %p648 = pneg %p334
      %p649 = pneg %p358
      %p650 = pneg %p355
      %p651 = pneg %p379
      %p652 = pneg %p376
      %p653 = pneg %p409
      %p654 = pneg %p406
      %s655 = smul.u32 4, %s31
      %p656 = scmp.lt.s32.totalorder %s29, 1
      %s657 = scalar_select %p656, %s29, 1
      %p658 = scmp.lt.s32.totalorder %s655, 3
      %s659 = scalar_select %p658, %s655, 3
      %p660 = scmp.lt.s32.totalorder %s30, 0
      %s661 = scalar_select %p660, %s30, 0
      %s662 = sadd.s32 %s661, %s659
      %s663 = smul.addr %s657, 4
      %s664 = sadd.s32 %s662, %s663
      %s665 = smul.addr %s664, 4
      %s666 = scalar_lea.vmem %s13, %s665
      %s667 = smul.u32 4, %s31
      %p668 = scmp.lt.s32.totalorder %s29, 1
      %s669 = scalar_select %p668, %s29, 1
      %p670 = scmp.lt.s32.totalorder %s667, 3
      %s671 = scalar_select %p670, %s667, 3
      %p672 = scmp.lt.s32.totalorder %s30, 0
      %s673 = scalar_select %p672, %s30, 0
      %s674 = sadd.s32 %s673, %s671
      %s675 = smul.addr %s669, 4
      %s676 = sadd.s32 %s674, %s675
      %s677 = smul.addr %s676, 4
      %s678 = scalar_lea.vmem %s0, %s677
      %s679 = smul.u32 4, %s31
      %s680 = smul.u32 4, %s31
      %p681 = scmp.lt.s32.totalorder %s29, 1
      %s682 = scalar_select %p681, %s29, 1
      %p683 = scmp.lt.s32.totalorder %s680, 3
      %s684 = scalar_select %p683, %s680, 3
      %p685 = scmp.lt.s32.totalorder %s30, 0
      %s686 = scalar_select %p685, %s30, 0
      %s687 = sadd.s32 %s686, %s684
      %s688 = smul.addr %s682, 4
      %s689 = sadd.s32 %s687, %s688
      %s690 = smul.addr %s689, 4
      %s691 = scalar_lea.vmem %s1, %s690
      %s692 = smul.u32 4, %s31
      %s693 = smul.u32 4, %s31
      %p694 = scmp.lt.s32.totalorder %s29, 1
      %s695 = scalar_select %p694, %s29, 1
      %p696 = scmp.lt.s32.totalorder %s693, 3
      %s697 = scalar_select %p696, %s693, 3
      %p698 = scmp.lt.s32.totalorder %s30, 0
      %s699 = scalar_select %p698, %s30, 0
      %s700 = sadd.s32 %s699, %s697
      %s701 = smul.addr %s695, 4
      %s702 = sadd.s32 %s700, %s701
      %s703 = smul.addr %s702, 4
      %s704 = scalar_lea.vmem %s2, %s703
      %s705 = smul.u32 4, %s31
      %s706 = smul.u32 4, %s31
      %p707 = scmp.lt.s32.totalorder %s29, 1
      %s708 = scalar_select %p707, %s29, 1
      %p709 = scmp.lt.s32.totalorder %s706, 3
      %s710 = scalar_select %p709, %s706, 3
      %p711 = scmp.lt.s32.totalorder %s30, 0
      %s712 = scalar_select %p711, %s30, 0
      %s713 = sadd.s32 %s712, %s710
      %s714 = smul.addr %s708, 4
      %s715 = sadd.s32 %s713, %s714
      %s716 = smul.addr %s715, 4
      %s717 = scalar_lea.vmem %s3, %s716
      %s718 = smul.u32 4, %s31
      %s719 = smul.u32 4, %s31
      %p720 = scmp.lt.s32.totalorder %s29, 1
      %s721 = scalar_select %p720, %s29, 1
      %p722 = scmp.lt.s32.totalorder %s719, 3
      %s723 = scalar_select %p722, %s719, 3
      %s724 = smul.addr %s721, 4
      %s725 = sadd.s32 %s723, %s724
      %s726 = smul.addr %s725, 8
      %s727 = scalar_lea.vmem %s4, %s726
      %s728 = smul.u32 4, %s31
      %p729 = scmp.lt.s32.totalorder %s30, 0
      %s730 = scalar_select %p729, %s30, 0
      %s731 = smul.addr %s730, 16
      %s732 = smul.addr %s731, 8
      %s733 = scalar_lea.vmem %s5, %s732
      %p734 = scmp.lt.s32.totalorder %s30, 0
      %s735 = scalar_select %p734, %s30, 0
      %s736 = scalar_lea.vmem %s6, %s735
      %p737 = scmp.lt.s32.totalorder %s30, 0
      %s738 = scalar_select %p737, %s30, 0
      %s739 = scalar_lea.vmem %s7, %s738
      %p740 = scmp.lt.s32.totalorder %s30, 0
      %s741 = scalar_select %p740, %s30, 0
      %s742 = scalar_lea.vmem %s8, %s741
      %p743 = scmp.lt.s32.totalorder %s30, 0
      %s744 = scalar_select %p743, %s30, 0
      %s745 = scalar_lea.vmem %s9, %s744
      %s746 = smul.u32 4, %s31
      %p747 = scmp.lt.s32.totalorder %s29, 1
      %s748 = scalar_select %p747, %s29, 1
      %p749 = scmp.lt.s32.totalorder %s746, 3
      %s750 = scalar_select %p749, %s746, 3
      %p751 = scmp.lt.s32.totalorder %s30, 0
      %s752 = scalar_select %p751, %s30, 0
      %s753 = sadd.s32 %s752, %s750
      %s754 = smul.addr %s748, 4
      %s755 = sadd.s32 %s753, %s754
      %s756 = smul.addr %s755, 4
      %s757 = scalar_lea.vmem %s13, %s756
      %s758 = smul.u32 4, %s31
      %p759 = scmp.eq.s32.totalorder %s31, 0
      // Predicated region
      $region73: #{time_mix_forward.14} parent=71 // pred_check
        %p760 = pneg %p759
      $region74: #{time_mix_forward.14} parent=71 // pred_check_branch
        %762 = sbr.rel (%p760) target = $region76
      $region75: #{time_mix_forward.14} parent=71 // pred_region
        %763 = vst [vmem:[#allocation2] sm:$0xff] 0.0
        %764 = vst [vmem:[#allocation2 + $0x8] sm:$0xff] 0.0
        %765 = vst [vmem:[#allocation2 + $0x10] sm:$0xff] 0.0
        %766 = vst [vmem:[#allocation2 + $0x18] sm:$0xff] 0.0
        %767 = vst [vmem:[#allocation2 + $0x20] sm:$0xff] 0.0
        %768 = vst [vmem:[#allocation2 + $0x28] sm:$0xff] 0.0
        %769 = vst [vmem:[#allocation2 + $0x30] sm:$0xff] 0.0
        %770 = vst [vmem:[#allocation2 + $0x38] sm:$0xff] 0.0
        %771 = vst [vmem:[#allocation2 + $0x40] sm:$0xff] 0.0
        %772 = vst [vmem:[#allocation2 + $0x48] sm:$0xff] 0.0
        %773 = vst [vmem:[#allocation2 + $0x50] sm:$0xff] 0.0
        %774 = vst [vmem:[#allocation2 + $0x58] sm:$0xff] 0.0
        %775 = vst [vmem:[#allocation2 + $0x60] sm:$0xff] 0.0
        %776 = vst [vmem:[#allocation2 + $0x68] sm:$0xff] 0.0
        %777 = vst [vmem:[#allocation2 + $0x70] sm:$0xff] 0.0
        %778 = vst [vmem:[#allocation2 + $0x78] sm:$0xff] 0.0
      $region76: #{time_mix_forward.14} parent=71 // pred_fallthru
        _
      %v779 = vld [vmem:[%s739] sm:$0x1]
      %v780 = vld [vmem:[%s736] sm:$0x1]
      %v781 = vld [vmem:[%s742] sm:$0x1]
      %v782 = vld [vmem:[%s745] sm:$0x1]
      %v783 = vld [vmem:[%s733] sm:$0xff]
      %v784 = vld [vmem:[%s733 + $0x8] sm:$0xff]
      %v785 = vld [vmem:[%s733 + $0x10] sm:$0xff]
      %v786 = vld [vmem:[%s733 + $0x18] sm:$0xff]
      %v787 = vld [vmem:[%s733 + $0x20] sm:$0xff]
      %v788 = vld [vmem:[%s733 + $0x28] sm:$0xff]
      %v789 = vld [vmem:[%s733 + $0x30] sm:$0xff]
      %v790 = vld [vmem:[%s733 + $0x38] sm:$0xff]
      %v791 = vld [vmem:[%s733 + $0x40] sm:$0xff]
      %v792 = vld [vmem:[%s733 + $0x48] sm:$0xff]
      %v793 = vld [vmem:[%s733 + $0x50] sm:$0xff]
      %v794 = vld [vmem:[%s733 + $0x58] sm:$0xff]
      %v795 = vld [vmem:[%s733 + $0x60] sm:$0xff]
      %v796 = vld [vmem:[%s733 + $0x68] sm:$0xff]
      %v797 = vld [vmem:[%s733 + $0x70] sm:$0xff]
      %v798 = vld [vmem:[%s733 + $0x78] sm:$0xff]
      %v799 = vld [vmem:[%s10] sm:$0xff]
      %v800 = vld [vmem:[%s10 + $0x8] sm:$0xff]
      %v801 = vld [vmem:[%s11] sm:$0xff]
      %v802 = vld [vmem:[%s11 + $0x8] sm:$0xff]
      %v803 = vld [vmem:[%s12] sm:$0xff]
      %v804 = vld [vmem:[%s12 + $0x8] sm:$0xff]
      %v805 = vld [vmem:[%s12 + $0x10] sm:$0xff]
      %v806 = vld [vmem:[%s12 + $0x18] sm:$0xff]
      %v807 = vld [vmem:[%s12 + $0x20] sm:$0xff]
      %v808 = vld [vmem:[%s12 + $0x28] sm:$0xff]
      %v809 = vld [vmem:[%s12 + $0x30] sm:$0xff]
      %v810 = vld [vmem:[%s12 + $0x38] sm:$0xff]
      %v811 = vld [vmem:[%s12 + $0x40] sm:$0xff]
      %v812 = vld [vmem:[%s12 + $0x48] sm:$0xff]
      %v813 = vld [vmem:[%s12 + $0x50] sm:$0xff]
      %v814 = vld [vmem:[%s12 + $0x58] sm:$0xff]
      %v815 = vld [vmem:[%s12 + $0x60] sm:$0xff]
      %v816 = vld [vmem:[%s12 + $0x68] sm:$0xff]
      %v817 = vld [vmem:[%s12 + $0x70] sm:$0xff]
      %v818 = vld [vmem:[%s12 + $0x78] sm:$0xff]
      loop: start=0, step=1, limit=2
      $region77: #{time_mix_forward.14} parent=71 // loop_pre_header
        _
      $region78: #{time_mix_forward.14} parent=71 // loop_header
        %s820 = sphi 0, %s824
        %p821 = scmp.ge.s32.totalorder %s820, 2
      $region79: #{time_mix_forward.14} parent=71 // loop_header_branch
        %823 = sbr.rel (%p821) target = $region83
      $region80: #{time_mix_forward.14} parent=71 // loop_body
        %s825 = smul.u32 %s820, 16
        %s826 = sshra.s32 %s825, 3
        %s827 = sand.u32 %s825, 7
        %s828 = smul.addr %s826, 4
        %s829 = scalar_lea.vmem %s678, %s828
        %v830 = vld [vmem:[%s829] sm:$0xf]
        %v831 = vld [vmem:[%s829 + $0x4] sm:$0xf]
        %v832 = vunpack.c.l.bf16 %v830
        %v833 = vunpack.c.l.bf16 %v831
        %s834 = smul.addr %s826, 4
        %s835 = scalar_lea.vmem %s691, %s834
        %v836 = vld [vmem:[%s835] sm:$0xf]
        %v837 = vld [vmem:[%s835 + $0x4] sm:$0xf]
        %v838 = vunpack.c.l.bf16 %v836
        %v839 = vunpack.c.l.bf16 %v837
        %s840 = smul.addr %s826, 4
        %s841 = scalar_lea.vmem %s704, %s840
        %v842 = vld [vmem:[%s841] sm:$0xf]
        %v843 = vld [vmem:[%s841 + $0x4] sm:$0xf]
        %v844 = vunpack.c.l.bf16 %v842
        %v845 = vunpack.c.l.bf16 %v843
        %s846 = smul.addr %s826, 4
        %s847 = scalar_lea.vmem %s717, %s846
        %v848 = vld [vmem:[%s847] sm:$0xf]
        %v849 = vld [vmem:[%s847 + $0x4] sm:$0xf]
        %v850 = vunpack.c.l.bf16 %v848
        %v851 = vunpack.c.l.bf16 %v849
        %s852 = scalar_lea.vmem %s727, %s825
        %v853 = vld [vmem:[%s852] sm:$0xff]
        %v854 = vld [vmem:[%s852 + $0x8] sm:$0xff]
        %v856 = vlaneseq
        %v857 = vshrl.u32 %v856, 7
        %v858 = vsub.s32 0, %v857
        %v859 = vrot.slane %v780, %v858
        %861 = vmatprep.subr.mxu0 0.0
        %862 = vmatpush1.msra.mxu0 %v798
        %863 = vmatprep.subr.mxu0 0.0
        %864 = vmatpush1.msra.mxu0 %v797
        %865 = vmatprep.subr.mxu0 0.0
        %866 = vmatpush1.msra.mxu0 %v796
        %867 = vmatprep.subr.mxu0 0.0
        %868 = vmatpush1.msra.mxu0 %v795
        %869 = vmatprep.subr.mxu0 0.0
        %870 = vmatpush1.msra.mxu0 %v794
        %871 = vmatprep.subr.mxu0 0.0
        %872 = vmatpush1.msra.mxu0 %v793
        %873 = vmatprep.subr.mxu0 0.0
        %874 = vmatpush1.msra.mxu0 %v792
        %875 = vmatprep.subr.mxu0 0.0
        %876 = vmatpush1.msra.mxu0 %v791
        %877 = vmatprep.subr.mxu0 0.0
        %878 = vmatpush1.msra.mxu0 %v790
        %879 = vmatprep.subr.mxu0 0.0
        %880 = vmatpush1.msra.mxu0 %v789
        %881 = vmatprep.subr.mxu0 0.0
        %882 = vmatpush1.msra.mxu0 %v788
        %883 = vmatprep.subr.mxu0 0.0
        %884 = vmatpush1.msra.mxu0 %v787
        %885 = vmatprep.subr.mxu0 0.0
        %886 = vmatpush1.msra.mxu0 %v786
        %887 = vmatprep.subr.mxu0 0.0
        %888 = vmatpush1.msra.mxu0 %v785
        %889 = vmatprep.subr.mxu0 0.0
        %890 = vmatpush1.msra.mxu0 %v784
        %891 = vmatprep.subr.mxu0 0.0
        %892 = vmatpush1.msra.mxu0 %v783
        %893 = vmatprep.subr.mxu0 0.0
        %894 = vmatpush2.msra.mxu0 0.0
        %895 = vmatprep.subr.mxu0 0.0
        %896 = vmatpush2.msra.mxu0 0.0
        %897 = vmatprep.subr.mxu0 0.0
        %898 = vmatpush2.msra.mxu0 0.0
        %899 = vmatprep.subr.mxu0 0.0
        %900 = vmatpush2.msra.mxu0 0.0
        %901 = vmatprep.subr.mxu0 0.0
        %902 = vmatpush2.msra.mxu0 0.0
        %903 = vmatprep.subr.mxu0 0.0
        %904 = vmatpush2.msra.mxu0 0.0
        %905 = vmatprep.subr.mxu0 0.0
        %906 = vmatpush2.msra.mxu0 0.0
        %907 = vmatprep.subr.mxu0 0.0
        %908 = vmatpush2.msra.mxu0 0.0
        %909 = vmatprep.subr.mxu0 0.0
        %910 = vmatpush2.msra.mxu0 0.0
        %911 = vmatprep.subr.mxu0 0.0
        %912 = vmatpush2.msra.mxu0 0.0
        %913 = vmatprep.subr.mxu0 0.0
        %914 = vmatpush2.msra.mxu0 0.0
        %915 = vmatprep.subr.mxu0 0.0
        %916 = vmatpush2.msra.mxu0 0.0
        %917 = vmatprep.subr.mxu0 0.0
        %918 = vmatpush2.msra.mxu0 0.0
        %919 = vmatprep.subr.mxu0 0.0
        %920 = vmatpush2.msra.mxu0 0.0
        %921 = vmatprep.subr.mxu0 0.0
        %922 = vmatpush2.msra.mxu0 0.0
        %923 = vmatprep.subr.mxu0 0.0
        %924 = vmatpush2.msra.mxu0 0.0
        %925 = vmatprep.mubr.f32.mxu0 0.0
        %926 = vmatmul.mubr.f32.gmra.mxu0 %v853
        %v927 = vpop.f32.mrf.mxu0
        %v928 = vadd.f32 %v859, %v927
        %v929 = vpop.f32.mrf.mxu0
        %930 = vmatprep.mubr.f32.mxu0 0.0
        %931 = vmatmul.mubr.f32.gmra.mxu0 %v854
        %v932 = vpop.f32.mrf.mxu0
        %v933 = vadd.f32 %v859, %v932
        %v934 = vpop.f32.mrf.mxu0
        %935 = vdwg.mxu0
        %v936 = vmul.f32 %v928, 1.442695
        %v937 = vpow.pop %v936
        %v938 = vmul.f32 %v933, 1.442695
        %v939 = vpow.pop %v938
        %v940 = vmin.f32 %v937, 4.0
        %v941 = vmin.f32 %v939, 4.0
        %v942 = vsub.f32 0.0, %v940
        %v943 = vsub.f32 0.0, %v941
        %vm944 = vcmask 130048
        %v946 = vsel %vm944, %v799, 0
        %v949 = vsel %vm944, %v800, 0
        %951 = vmatprep.subr.mxu0 0.0
        %952 = vmatpush1.msra.mxu0 0.0
        %953 = vmatprep.subr.mxu0 0.0
        %954 = vmatpush1.msra.mxu0 0.0
        %955 = vmatprep.subr.mxu0 0.0
        %956 = vmatpush1.msra.mxu0 0.0
        %957 = vmatprep.subr.mxu0 0.0
        %958 = vmatpush1.msra.mxu0 0.0
        %959 = vmatprep.subr.mxu0 0.0
        %960 = vmatpush1.msra.mxu0 0.0
        %961 = vmatprep.subr.mxu0 0.0
        %962 = vmatpush1.msra.mxu0 0.0
        %963 = vmatprep.subr.mxu0 0.0
        %964 = vmatpush1.msra.mxu0 0.0
        %965 = vmatprep.subr.mxu0 0.0
        %966 = vmatpush1.msra.mxu0 0.0
        %967 = vmatprep.subr.mxu0 0.0
        %968 = vmatpush1.msra.mxu0 0.0
        %969 = vmatprep.subr.mxu0 0.0
        %970 = vmatpush1.msra.mxu0 0.0
        %971 = vmatprep.subr.mxu0 0.0
        %972 = vmatpush1.msra.mxu0 0.0
        %973 = vmatprep.subr.mxu0 0.0
        %974 = vmatpush1.msra.mxu0 0.0
        %975 = vmatprep.subr.mxu0 0.0
        %976 = vmatpush1.msra.mxu0 0.0
        %977 = vmatprep.subr.mxu0 0.0
        %978 = vmatpush1.msra.mxu0 0.0
        %979 = vmatprep.subr.mxu0 0.0
        %980 = vmatpush1.msra.mxu0 %v943
        %981 = vmatprep.subr.mxu0 0.0
        %982 = vmatpush1.msra.mxu0 %v942
        %983 = vmatprep.subr.mxu0 0.0
        %984 = vmatpush2.msra.mxu0 0.0
        %985 = vmatprep.subr.mxu0 0.0
        %986 = vmatpush2.msra.mxu0 0.0
        %987 = vmatprep.subr.mxu0 0.0
        %988 = vmatpush2.msra.mxu0 0.0
        %989 = vmatprep.subr.mxu0 0.0
        %990 = vmatpush2.msra.mxu0 0.0
        %991 = vmatprep.subr.mxu0 0.0
        %992 = vmatpush2.msra.mxu0 0.0
        %993 = vmatprep.subr.mxu0 0.0
        %994 = vmatpush2.msra.mxu0 0.0
        %995 = vmatprep.subr.mxu0 0.0
        %996 = vmatpush2.msra.mxu0 0.0
        %997 = vmatprep.subr.mxu0 0.0
        %998 = vmatpush2.msra.mxu0 0.0
        %999 = vmatprep.subr.mxu0 0.0
        %1000 = vmatpush2.msra.mxu0 0.0
        %1001 = vmatprep.subr.mxu0 0.0
        %1002 = vmatpush2.msra.mxu0 0.0
        %1003 = vmatprep.subr.mxu0 0.0
        %1004 = vmatpush2.msra.mxu0 0.0
        %1005 = vmatprep.subr.mxu0 0.0
        %1006 = vmatpush2.msra.mxu0 0.0
        %1007 = vmatprep.subr.mxu0 0.0
        %1008 = vmatpush2.msra.mxu0 0.0
        %1009 = vmatprep.subr.mxu0 0.0
        %1010 = vmatpush2.msra.mxu0 0.0
        %1011 = vmatprep.subr.mxu0 0.0
        %1012 = vmatpush2.msra.mxu0 0.0
        %1013 = vmatprep.subr.mxu0 0.0
        %1014 = vmatpush2.msra.mxu0 0.0
        %1015 = vmatprep.mubr.f32.mxu0 0.0
        %1016 = vmatmul.mubr.f32.gmra.mxu0 %v946
        %v1017 = vpop.f32.mrf.mxu0
        %v1018 = vadd.f32 0.0, %v1017
        %v1019 = vpop.f32.mrf.mxu0
        %1020 = vmatprep.mubr.f32.mxu0 0.0
        %1021 = vmatmul.mubr.f32.gmra.mxu0 %v949
        %v1022 = vpop.f32.mrf.mxu0
        %v1023 = vadd.f32 0.0, %v1022
        %v1024 = vpop.f32.mrf.mxu0
        %1025 = vdwg.mxu0
        %v1026 = vsub.f32 %v1018, %v942
        %v1027 = vsub.f32 %v1023, %v943
        %v1028 = vmul.f32 %v1023, 1.442695
        %v1029 = vpow.pop %v1028
        %v1030 = vmul.f32 %v1026, 1.442695
        %v1031 = vpow.pop %v1030
        %v1032 = vmul.f32 %v1027, 1.442695
        %v1033 = vpow.pop %v1032
        %v1034 = vmul.f32 %v832, %v1031
        %v1035 = vmul.f32 %v833, %v1033
        %v1036 = vsub.f32 0.0, %v1018
        %v1037 = vsub.f32 0.0, %v1023
        %v1038 = vmul.f32 %v1036, 1.442695
        %v1039 = vpow.pop %v1038
        %v1040 = vmul.f32 %v1037, 1.442695
        %v1041 = vpow.pop %v1040
        %v1042 = vmul.f32 %v838, %v1039
        %v1043 = vmul.f32 %v839, %v1041
        %v1044 = vlaneseq
        %v1045 = vshrl.u32 %v1044, 7
        %v1046 = vsub.s32 7, %v1045
        %v1047 = vrot.slane %v1029, %v1046
        %v1048 = vmul.f32 %v1042, %v1047
        %v1049 = vmul.f32 %v1043, %v1047
        %v1050 = vld [vmem:[#allocation2] sm:$0xff]
        %v1051 = vld [vmem:[#allocation2 + $0x8] sm:$0xff]
        %v1052 = vld [vmem:[#allocation2 + $0x10] sm:$0xff]
        %v1053 = vld [vmem:[#allocation2 + $0x18] sm:$0xff]
        %v1054 = vld [vmem:[#allocation2 + $0x20] sm:$0xff]
        %v1055 = vld [vmem:[#allocation2 + $0x28] sm:$0xff]
        %v1056 = vld [vmem:[#allocation2 + $0x30] sm:$0xff]
        %v1057 = vld [vmem:[#allocation2 + $0x38] sm:$0xff]
        %v1058 = vld [vmem:[#allocation2 + $0x40] sm:$0xff]
        %v1059 = vld [vmem:[#allocation2 + $0x48] sm:$0xff]
        %v1060 = vld [vmem:[#allocation2 + $0x50] sm:$0xff]
        %v1061 = vld [vmem:[#allocation2 + $0x58] sm:$0xff]
        %v1062 = vld [vmem:[#allocation2 + $0x60] sm:$0xff]
        %v1063 = vld [vmem:[#allocation2 + $0x68] sm:$0xff]
        %v1064 = vld [vmem:[#allocation2 + $0x70] sm:$0xff]
        %v1065 = vld [vmem:[#allocation2 + $0x78] sm:$0xff]
        %vm1066 = vcmask 523264
        %v1068 = vsel %vm1066, %v1034, 0
        %v1071 = vsel %vm1066, %v1035, 0
        %v1074 = vsel %vm1066, %v1042, 0
        %v1077 = vsel %vm1066, %v1043, 0
        %1079 = vmatprep.subr.mxu0 0.0
        %1080 = vmatpush1.xpose.msra.mxu0 0.0
        %1081 = vmatprep.subr.mxu0 0.0
        %1082 = vmatpush1.xpose.msra.mxu0 0.0
        %1083 = vmatprep.subr.mxu0 0.0
        %1084 = vmatpush1.xpose.msra.mxu0 0.0
        %1085 = vmatprep.subr.mxu0 0.0
        %1086 = vmatpush1.xpose.msra.mxu0 0.0
        %1087 = vmatprep.subr.mxu0 0.0
        %1088 = vmatpush1.xpose.msra.mxu0 0.0
        %1089 = vmatprep.subr.mxu0 0.0
        %1090 = vmatpush1.xpose.msra.mxu0 0.0
        %1091 = vmatprep.subr.mxu0 0.0
        %1092 = vmatpush1.xpose.msra.mxu0 0.0
        %1093 = vmatprep.subr.mxu0 0.0
        %1094 = vmatpush1.xpose.msra.mxu0 0.0
        %1095 = vmatprep.subr.mxu0 0.0
        %1096 = vmatpush1.xpose.msra.mxu0 0.0
        %1097 = vmatprep.subr.mxu0 0.0
        %1098 = vmatpush1.xpose.msra.mxu0 0.0
        %1099 = vmatprep.subr.mxu0 0.0
        %1100 = vmatpush1.xpose.msra.mxu0 0.0
        %1101 = vmatprep.subr.mxu0 0.0
        %1102 = vmatpush1.xpose.msra.mxu0 0.0
        %1103 = vmatprep.subr.mxu0 0.0
        %1104 = vmatpush1.xpose.msra.mxu0 0.0
        %1105 = vmatprep.subr.mxu0 0.0
        %1106 = vmatpush1.xpose.msra.mxu0 0.0
        %1107 = vmatprep.subr.mxu0 0.0
        %1108 = vmatpush1.xpose.msra.mxu0 %v1077
        %1109 = vmatprep.subr.mxu0 0.0
        %1110 = vmatpush1.xpose.msra.mxu0 %v1074
        %1111 = vmatprep.subr.mxu0 0.0
        %1112 = vmatpush2.xpose.msra.mxu0 0.0
        %1113 = vmatprep.subr.mxu0 0.0
        %1114 = vmatpush2.xpose.msra.mxu0 0.0
        %1115 = vmatprep.subr.mxu0 0.0
        %1116 = vmatpush2.xpose.msra.mxu0 0.0
        %1117 = vmatprep.subr.mxu0 0.0
        %1118 = vmatpush2.xpose.msra.mxu0 0.0
        %1119 = vmatprep.subr.mxu0 0.0
        %1120 = vmatpush2.xpose.msra.mxu0 0.0
        %1121 = vmatprep.subr.mxu0 0.0
        %1122 = vmatpush2.xpose.msra.mxu0 0.0
        %1123 = vmatprep.subr.mxu0 0.0
        %1124 = vmatpush2.xpose.msra.mxu0 0.0
        %1125 = vmatprep.subr.mxu0 0.0
        %1126 = vmatpush2.xpose.msra.mxu0 0.0
        %1127 = vmatprep.subr.mxu0 0.0
        %1128 = vmatpush2.xpose.msra.mxu0 0.0
        %1129 = vmatprep.subr.mxu0 0.0
        %1130 = vmatpush2.xpose.msra.mxu0 0.0
        %1131 = vmatprep.subr.mxu0 0.0
        %1132 = vmatpush2.xpose.msra.mxu0 0.0
        %1133 = vmatprep.subr.mxu0 0.0
        %1134 = vmatpush2.xpose.msra.mxu0 0.0
        %1135 = vmatprep.subr.mxu0 0.0
        %1136 = vmatpush2.xpose.msra.mxu0 0.0
        %1137 = vmatprep.subr.mxu0 0.0
        %1138 = vmatpush2.xpose.msra.mxu0 0.0
        %1139 = vmatprep.subr.mxu0 0.0
        %1140 = vmatpush2.xpose.msra.mxu0 0.0
        %1141 = vmatprep.subr.mxu0 0.0
        %1142 = vmatpush2.xpose.msra.mxu0 0.0
        %1143 = vmatprep.mubr.f32.mxu0 0.0
        %1144 = vmatmul.mubr.f32.gmra.mxu0 %v1068
        %v1145 = vpop.f32.mrf.mxu0
        %v1146 = vadd.f32 0.0, %v1145
        %v1147 = vpop.f32.mrf.mxu0
        %1148 = vmatprep.mubr.f32.mxu0 0.0
        %1149 = vmatmul.mubr.f32.gmra.mxu0 %v1071
        %v1150 = vpop.f32.mrf.mxu0
        %v1151 = vadd.f32 0.0, %v1150
        %v1152 = vpop.f32.mrf.mxu0
        %1153 = vdwg.mxu0
        %v1154 = vmul.f32 %v1146, %v801
        %v1155 = vmul.f32 %v1151, %v802
        %v1157 = vsel %vm944, %v1154, 0
        %v1160 = vsel %vm944, %v1155, 0
        %1162 = vmatprep.subr.mxu0 0.0
        %1163 = vmatpush1.msra.mxu0 0.0
        %1164 = vmatprep.subr.mxu0 0.0
        %1165 = vmatpush1.msra.mxu0 0.0
        %1166 = vmatprep.subr.mxu0 0.0
        %1167 = vmatpush1.msra.mxu0 0.0
        %1168 = vmatprep.subr.mxu0 0.0
        %1169 = vmatpush1.msra.mxu0 0.0
        %1170 = vmatprep.subr.mxu0 0.0
        %1171 = vmatpush1.msra.mxu0 0.0
        %1172 = vmatprep.subr.mxu0 0.0
        %1173 = vmatpush1.msra.mxu0 0.0
        %1174 = vmatprep.subr.mxu0 0.0
        %1175 = vmatpush1.msra.mxu0 0.0
        %1176 = vmatprep.subr.mxu0 0.0
        %1177 = vmatpush1.msra.mxu0 0.0
        %1178 = vmatprep.subr.mxu0 0.0
        %1179 = vmatpush1.msra.mxu0 0.0
        %1180 = vmatprep.subr.mxu0 0.0
        %1181 = vmatpush1.msra.mxu0 0.0
        %1182 = vmatprep.subr.mxu0 0.0
        %1183 = vmatpush1.msra.mxu0 0.0
        %1184 = vmatprep.subr.mxu0 0.0
        %1185 = vmatpush1.msra.mxu0 0.0
        %1186 = vmatprep.subr.mxu0 0.0
        %1187 = vmatpush1.msra.mxu0 0.0
        %1188 = vmatprep.subr.mxu0 0.0
        %1189 = vmatpush1.msra.mxu0 0.0
        %1190 = vmatprep.subr.mxu0 0.0
        %1191 = vmatpush1.msra.mxu0 %v845
        %1192 = vmatprep.subr.mxu0 0.0
        %1193 = vmatpush1.msra.mxu0 %v844
        %1194 = vmatprep.subr.mxu0 0.0
        %1195 = vmatpush2.msra.mxu0 0.0
        %1196 = vmatprep.subr.mxu0 0.0
        %1197 = vmatpush2.msra.mxu0 0.0
        %1198 = vmatprep.subr.mxu0 0.0
        %1199 = vmatpush2.msra.mxu0 0.0
        %1200 = vmatprep.subr.mxu0 0.0
        %1201 = vmatpush2.msra.mxu0 0.0
        %1202 = vmatprep.subr.mxu0 0.0
        %1203 = vmatpush2.msra.mxu0 0.0
        %1204 = vmatprep.subr.mxu0 0.0
        %1205 = vmatpush2.msra.mxu0 0.0
        %1206 = vmatprep.subr.mxu0 0.0
        %1207 = vmatpush2.msra.mxu0 0.0
        %1208 = vmatprep.subr.mxu0 0.0
        %1209 = vmatpush2.msra.mxu0 0.0
        %1210 = vmatprep.subr.mxu0 0.0
        %1211 = vmatpush2.msra.mxu0 0.0
        %1212 = vmatprep.subr.mxu0 0.0
        %1213 = vmatpush2.msra.mxu0 0.0
        %1214 = vmatprep.subr.mxu0 0.0
        %1215 = vmatpush2.msra.mxu0 0.0
        %1216 = vmatprep.subr.mxu0 0.0
        %1217 = vmatpush2.msra.mxu0 0.0
        %1218 = vmatprep.subr.mxu0 0.0
        %1219 = vmatpush2.msra.mxu0 0.0
        %1220 = vmatprep.subr.mxu0 0.0
        %1221 = vmatpush2.msra.mxu0 0.0
        %1222 = vmatprep.subr.mxu0 0.0
        %1223 = vmatpush2.msra.mxu0 0.0
        %1224 = vmatprep.subr.mxu0 0.0
        %1225 = vmatpush2.msra.mxu0 0.0
        %1226 = vmatprep.mubr.f32.mxu0 0.0
        %1227 = vmatmul.mubr.f32.gmra.mxu0 %v1157
        %v1228 = vpop.f32.mrf.mxu0
        %v1229 = vadd.f32 0.0, %v1228
        %v1230 = vpop.f32.mrf.mxu0
        %1231 = vmatprep.mubr.f32.mxu0 0.0
        %1232 = vmatmul.mubr.f32.gmra.mxu0 %v1160
        %v1233 = vpop.f32.mrf.mxu0
        %v1234 = vadd.f32 0.0, %v1233
        %v1235 = vpop.f32.mrf.mxu0
        %1236 = vdwg.mxu0
        %1237 = vrot.lane.b32.xlu0 %v1034, 64
        %v1238 = vpop.permute.xlu0 %1237
        %1239 = vrot.lane.b32.xlu0 %v1035, 64
        %v1240 = vpop.permute.xlu0 %1239
        %1241 = vrot.lane.b32.xlu0 %v1042, 64
        %v1242 = vpop.permute.xlu0 %1241
        %1243 = vrot.lane.b32.xlu0 %v1043, 64
        %v1244 = vpop.permute.xlu0 %1243
        %v1245 = vsel %vm1066, %v1238, 0
        %v1247 = vsel %vm1066, %v1240, 0
        %v1249 = vsel %vm1066, %v1242, 0
        %v1251 = vsel %vm1066, %v1244, 0
        %1253 = vmatprep.subr.mxu0 0.0
        %1254 = vmatpush1.xpose.msra.mxu0 0.0
        %1255 = vmatprep.subr.mxu0 0.0
        %1256 = vmatpush1.xpose.msra.mxu0 0.0
        %1257 = vmatprep.subr.mxu0 0.0
        %1258 = vmatpush1.xpose.msra.mxu0 0.0
        %1259 = vmatprep.subr.mxu0 0.0
        %1260 = vmatpush1.xpose.msra.mxu0 0.0
        %1261 = vmatprep.subr.mxu0 0.0
        %1262 = vmatpush1.xpose.msra.mxu0 0.0
        %1263 = vmatprep.subr.mxu0 0.0
        %1264 = vmatpush1.xpose.msra.mxu0 0.0
        %1265 = vmatprep.subr.mxu0 0.0
        %1266 = vmatpush1.xpose.msra.mxu0 0.0
        %1267 = vmatprep.subr.mxu0 0.0
        %1268 = vmatpush1.xpose.msra.mxu0 0.0
        %1269 = vmatprep.subr.mxu0 0.0
        %1270 = vmatpush1.xpose.msra.mxu0 0.0
        %1271 = vmatprep.subr.mxu0 0.0
        %1272 = vmatpush1.xpose.msra.mxu0 0.0
        %1273 = vmatprep.subr.mxu0 0.0
        %1274 = vmatpush1.xpose.msra.mxu0 0.0
        %1275 = vmatprep.subr.mxu0 0.0
        %1276 = vmatpush1.xpose.msra.mxu0 0.0
        %1277 = vmatprep.subr.mxu0 0.0
        %1278 = vmatpush1.xpose.msra.mxu0 0.0
        %1279 = vmatprep.subr.mxu0 0.0
        %1280 = vmatpush1.xpose.msra.mxu0 0.0
        %1281 = vmatprep.subr.mxu0 0.0
        %1282 = vmatpush1.xpose.msra.mxu0 %v1251
        %1283 = vmatprep.subr.mxu0 0.0
        %1284 = vmatpush1.xpose.msra.mxu0 %v1249
        %1285 = vmatprep.subr.mxu0 0.0
        %1286 = vmatpush2.xpose.msra.mxu0 0.0
        %1287 = vmatprep.subr.mxu0 0.0
        %1288 = vmatpush2.xpose.msra.mxu0 0.0
        %1289 = vmatprep.subr.mxu0 0.0
        %1290 = vmatpush2.xpose.msra.mxu0 0.0
        %1291 = vmatprep.subr.mxu0 0.0
        %1292 = vmatpush2.xpose.msra.mxu0 0.0
        %1293 = vmatprep.subr.mxu0 0.0
        %1294 = vmatpush2.xpose.msra.mxu0 0.0
        %1295 = vmatprep.subr.mxu0 0.0
        %1296 = vmatpush2.xpose.msra.mxu0 0.0
        %1297 = vmatprep.subr.mxu0 0.0
        %1298 = vmatpush2.xpose.msra.mxu0 0.0
        %1299 = vmatprep.subr.mxu0 0.0
        %1300 = vmatpush2.xpose.msra.mxu0 0.0
        %1301 = vmatprep.subr.mxu0 0.0
        %1302 = vmatpush2.xpose.msra.mxu0 0.0
        %1303 = vmatprep.subr.mxu0 0.0
        %1304 = vmatpush2.xpose.msra.mxu0 0.0
        %1305 = vmatprep.subr.mxu0 0.0
        %1306 = vmatpush2.xpose.msra.mxu0 0.0
        %1307 = vmatprep.subr.mxu0 0.0
        %1308 = vmatpush2.xpose.msra.mxu0 0.0
        %1309 = vmatprep.subr.mxu0 0.0
        %1310 = vmatpush2.xpose.msra.mxu0 0.0
        %1311 = vmatprep.subr.mxu0 0.0
        %1312 = vmatpush2.xpose.msra.mxu0 0.0
        %1313 = vmatprep.subr.mxu0 0.0
        %1314 = vmatpush2.xpose.msra.mxu0 0.0
        %1315 = vmatprep.subr.mxu0 0.0
        %1316 = vmatpush2.xpose.msra.mxu0 0.0
        %1317 = vmatprep.mubr.f32.mxu0 0.0
        %1318 = vmatmul.mubr.f32.gmra.mxu0 %v1245
        %v1319 = vpop.f32.mrf.mxu0
        %v1320 = vadd.f32 0.0, %v1319
        %v1321 = vpop.f32.mrf.mxu0
        %1322 = vmatprep.mubr.f32.mxu0 0.0
        %1323 = vmatmul.mubr.f32.gmra.mxu0 %v1247
        %v1324 = vpop.f32.mrf.mxu0
        %v1325 = vadd.f32 0.0, %v1324
        %v1326 = vpop.f32.mrf.mxu0
        %1327 = vdwg.mxu0
        %v1328 = vmul.f32 %v1320, %v801
        %v1329 = vmul.f32 %v1325, %v802
        %1332 = vrot.lane.b32.xlu0 %v844, 64
        %v1333 = vpop.permute.xlu0 %1332
        %1334 = vrot.lane.b32.xlu0 %v845, 64
        %v1335 = vpop.permute.xlu0 %1334
        %v1339 = vsel %vm944, %v1328, 0
        %v1342 = vsel %vm944, %v1329, 0
        %1344 = vmatprep.subr.mxu0 0.0
        %1345 = vmatpush1.msra.mxu0 0.0
        %1346 = vmatprep.subr.mxu0 0.0
        %1347 = vmatpush1.msra.mxu0 0.0
        %1348 = vmatprep.subr.mxu0 0.0
        %1349 = vmatpush1.msra.mxu0 0.0
        %1350 = vmatprep.subr.mxu0 0.0
        %1351 = vmatpush1.msra.mxu0 0.0
        %1352 = vmatprep.subr.mxu0 0.0
        %1353 = vmatpush1.msra.mxu0 0.0
        %1354 = vmatprep.subr.mxu0 0.0
        %1355 = vmatpush1.msra.mxu0 0.0
        %1356 = vmatprep.subr.mxu0 0.0
        %1357 = vmatpush1.msra.mxu0 0.0
        %1358 = vmatprep.subr.mxu0 0.0
        %1359 = vmatpush1.msra.mxu0 0.0
        %1360 = vmatprep.subr.mxu0 0.0
        %1361 = vmatpush1.msra.mxu0 0.0
        %1362 = vmatprep.subr.mxu0 0.0
        %1363 = vmatpush1.msra.mxu0 0.0
        %1364 = vmatprep.subr.mxu0 0.0
        %1365 = vmatpush1.msra.mxu0 0.0
        %1366 = vmatprep.subr.mxu0 0.0
        %1367 = vmatpush1.msra.mxu0 0.0
        %1368 = vmatprep.subr.mxu0 0.0
        %1369 = vmatpush1.msra.mxu0 0.0
        %1370 = vmatprep.subr.mxu0 0.0
        %1371 = vmatpush1.msra.mxu0 0.0
        %1372 = vmatprep.subr.mxu0 0.0
        %1373 = vmatpush1.msra.mxu0 %v1335
        %1374 = vmatprep.subr.mxu0 0.0
        %1375 = vmatpush1.msra.mxu0 %v1333
        %1376 = vmatprep.subr.mxu0 0.0
        %1377 = vmatpush2.msra.mxu0 0.0
        %1378 = vmatprep.subr.mxu0 0.0
        %1379 = vmatpush2.msra.mxu0 0.0
        %1380 = vmatprep.subr.mxu0 0.0
        %1381 = vmatpush2.msra.mxu0 0.0
        %1382 = vmatprep.subr.mxu0 0.0
        %1383 = vmatpush2.msra.mxu0 0.0
        %1384 = vmatprep.subr.mxu0 0.0
        %1385 = vmatpush2.msra.mxu0 0.0
        %1386 = vmatprep.subr.mxu0 0.0
        %1387 = vmatpush2.msra.mxu0 0.0
        %1388 = vmatprep.subr.mxu0 0.0
        %1389 = vmatpush2.msra.mxu0 0.0
        %1390 = vmatprep.subr.mxu0 0.0
        %1391 = vmatpush2.msra.mxu0 0.0
        %1392 = vmatprep.subr.mxu0 0.0
        %1393 = vmatpush2.msra.mxu0 0.0
        %1394 = vmatprep.subr.mxu0 0.0
        %1395 = vmatpush2.msra.mxu0 0.0
        %1396 = vmatprep.subr.mxu0 0.0
        %1397 = vmatpush2.msra.mxu0 0.0
        %1398 = vmatprep.subr.mxu0 0.0
        %1399 = vmatpush2.msra.mxu0 0.0
        %1400 = vmatprep.subr.mxu0 0.0
        %1401 = vmatpush2.msra.mxu0 0.0
        %1402 = vmatprep.subr.mxu0 0.0
        %1403 = vmatpush2.msra.mxu0 0.0
        %1404 = vmatprep.subr.mxu0 0.0
        %1405 = vmatpush2.msra.mxu0 0.0
        %1406 = vmatprep.subr.mxu0 0.0
        %1407 = vmatpush2.msra.mxu0 0.0
        %1408 = vmatprep.mubr.f32.mxu0 0.0
        %1409 = vmatmul.mubr.f32.gmra.mxu0 %v1339
        %v1410 = vpop.f32.mrf.mxu0
        %v1411 = vadd.f32 0.0, %v1410
        %v1412 = vpop.f32.mrf.mxu0
        %1413 = vmatprep.mubr.f32.mxu0 0.0
        %1414 = vmatmul.mubr.f32.gmra.mxu0 %v1342
        %v1415 = vpop.f32.mrf.mxu0
        %v1416 = vadd.f32 0.0, %v1415
        %v1417 = vpop.f32.mrf.mxu0
        %1418 = vdwg.mxu0
        %1421 = vrot.lane.b32.xlu0 %v1411, 64
        %v1422 = vpop.permute.xlu0 %1421
        %1423 = vrot.lane.b32.xlu0 %v1416, 64
        %v1424 = vpop.permute.xlu0 %1423
        %v1427 = vsel %vm1066, %v1229, %v1422
        %v1428 = vsel %vm1066, %v1234, %v1424
        %1429 = vmatprep.subr.mxu0 0.0
        %1430 = vmatpush1.msra.mxu0 %v1065
        %1431 = vmatprep.subr.mxu0 0.0
        %1432 = vmatpush1.msra.mxu0 %v1064
        %1433 = vmatprep.subr.mxu0 0.0
        %1434 = vmatpush1.msra.mxu0 %v1063
        %1435 = vmatprep.subr.mxu0 0.0
        %1436 = vmatpush1.msra.mxu0 %v1062
        %1437 = vmatprep.subr.mxu0 0.0
        %1438 = vmatpush1.msra.mxu0 %v1061
        %1439 = vmatprep.subr.mxu0 0.0
        %1440 = vmatpush1.msra.mxu0 %v1060
        %1441 = vmatprep.subr.mxu0 0.0
        %1442 = vmatpush1.msra.mxu0 %v1059
        %1443 = vmatprep.subr.mxu0 0.0
        %1444 = vmatpush1.msra.mxu0 %v1058
        %1445 = vmatprep.subr.mxu0 0.0
        %1446 = vmatpush1.msra.mxu0 %v1057
        %1447 = vmatprep.subr.mxu0 0.0
        %1448 = vmatpush1.msra.mxu0 %v1056
        %1449 = vmatprep.subr.mxu0 0.0
        %1450 = vmatpush1.msra.mxu0 %v1055
        %1451 = vmatprep.subr.mxu0 0.0
        %1452 = vmatpush1.msra.mxu0 %v1054
        %1453 = vmatprep.subr.mxu0 0.0
        %1454 = vmatpush1.msra.mxu0 %v1053
        %1455 = vmatprep.subr.mxu0 0.0
        %1456 = vmatpush1.msra.mxu0 %v1052
        %1457 = vmatprep.subr.mxu0 0.0
        %1458 = vmatpush1.msra.mxu0 %v1051
        %1459 = vmatprep.subr.mxu0 0.0
        %1460 = vmatpush1.msra.mxu0 %v1050
        %1461 = vmatprep.subr.mxu0 0.0
        %1462 = vmatpush2.msra.mxu0 0.0
        %1463 = vmatprep.subr.mxu0 0.0
        %1464 = vmatpush2.msra.mxu0 0.0
        %1465 = vmatprep.subr.mxu0 0.0
        %1466 = vmatpush2.msra.mxu0 0.0
        %1467 = vmatprep.subr.mxu0 0.0
        %1468 = vmatpush2.msra.mxu0 0.0
        %1469 = vmatprep.subr.mxu0 0.0
        %1470 = vmatpush2.msra.mxu0 0.0
        %1471 = vmatprep.subr.mxu0 0.0
        %1472 = vmatpush2.msra.mxu0 0.0
        %1473 = vmatprep.subr.mxu0 0.0
        %1474 = vmatpush2.msra.mxu0 0.0
        %1475 = vmatprep.subr.mxu0 0.0
        %1476 = vmatpush2.msra.mxu0 0.0
        %1477 = vmatprep.subr.mxu0 0.0
        %1478 = vmatpush2.msra.mxu0 0.0
        %1479 = vmatprep.subr.mxu0 0.0
        %1480 = vmatpush2.msra.mxu0 0.0
        %1481 = vmatprep.subr.mxu0 0.0
        %1482 = vmatpush2.msra.mxu0 0.0
        %1483 = vmatprep.subr.mxu0 0.0
        %1484 = vmatpush2.msra.mxu0 0.0
        %1485 = vmatprep.subr.mxu0 0.0
        %1486 = vmatpush2.msra.mxu0 0.0
        %1487 = vmatprep.subr.mxu0 0.0
        %1488 = vmatpush2.msra.mxu0 0.0
        %1489 = vmatprep.subr.mxu0 0.0
        %1490 = vmatpush2.msra.mxu0 0.0
        %1491 = vmatprep.subr.mxu0 0.0
        %1492 = vmatpush2.msra.mxu0 0.0
        %1493 = vmatprep.mubr.f32.mxu0 0.0
        %1494 = vmatmul.mubr.f32.gmra.mxu0 %v1034
        %v1495 = vpop.f32.mrf.mxu0
        %v1496 = vadd.f32 %v1427, %v1495
        %v1497 = vpop.f32.mrf.mxu0
        %1498 = vmatprep.mubr.f32.mxu0 0.0
        %1499 = vmatmul.mubr.f32.gmra.mxu0 %v1035
        %v1500 = vpop.f32.mrf.mxu0
        %v1501 = vadd.f32 %v1428, %v1500
        %v1502 = vpop.f32.mrf.mxu0
        %1503 = vdwg.mxu0
        %v1505 = vlaneseq
        %v1506 = vshrl.u32 %v1505, 7
        %v1507 = vsub.s32 0, %v1506
        %v1508 = vrot.slane %v779, %v1507
        %v1510 = vmul.f32 %v832, %v1508
        %v1511 = vmul.f32 %v833, %v1508
        %v1512 = vmul.f32 %v1510, %v838
        %v1513 = vmul.f32 %v1511, %v839
        %1514 = vmatprep.subr.mxu0 0.0
        %1515 = vmatpush1.msra.mxu0 %v818
        %1516 = vmatprep.subr.mxu0 0.0
        %1517 = vmatpush1.msra.mxu0 %v817
        %1518 = vmatprep.subr.mxu0 0.0
        %1519 = vmatpush1.msra.mxu0 %v816
        %1520 = vmatprep.subr.mxu0 0.0
        %1521 = vmatpush1.msra.mxu0 %v815
        %1522 = vmatprep.subr.mxu0 0.0
        %1523 = vmatpush1.msra.mxu0 %v814
        %1524 = vmatprep.subr.mxu0 0.0
        %1525 = vmatpush1.msra.mxu0 %v813
        %1526 = vmatprep.subr.mxu0 0.0
        %1527 = vmatpush1.msra.mxu0 %v812
        %1528 = vmatprep.subr.mxu0 0.0
        %1529 = vmatpush1.msra.mxu0 %v811
        %1530 = vmatprep.subr.mxu0 0.0
        %1531 = vmatpush1.msra.mxu0 %v810
        %1532 = vmatprep.subr.mxu0 0.0
        %1533 = vmatpush1.msra.mxu0 %v809
        %1534 = vmatprep.subr.mxu0 0.0
        %1535 = vmatpush1.msra.mxu0 %v808
        %1536 = vmatprep.subr.mxu0 0.0
        %1537 = vmatpush1.msra.mxu0 %v807
        %1538 = vmatprep.subr.mxu0 0.0
        %1539 = vmatpush1.msra.mxu0 %v806
        %1540 = vmatprep.subr.mxu0 0.0
        %1541 = vmatpush1.msra.mxu0 %v805
        %1542 = vmatprep.subr.mxu0 0.0
        %1543 = vmatpush1.msra.mxu0 %v804
        %1544 = vmatprep.subr.mxu0 0.0
        %1545 = vmatpush1.msra.mxu0 %v803
        %1546 = vmatprep.subr.mxu0 0.0
        %1547 = vmatpush2.msra.mxu0 0.0
        %1548 = vmatprep.subr.mxu0 0.0
        %1549 = vmatpush2.msra.mxu0 0.0
        %1550 = vmatprep.subr.mxu0 0.0
        %1551 = vmatpush2.msra.mxu0 0.0
        %1552 = vmatprep.subr.mxu0 0.0
        %1553 = vmatpush2.msra.mxu0 0.0
        %1554 = vmatprep.subr.mxu0 0.0
        %1555 = vmatpush2.msra.mxu0 0.0
        %1556 = vmatprep.subr.mxu0 0.0
        %1557 = vmatpush2.msra.mxu0 0.0
        %1558 = vmatprep.subr.mxu0 0.0
        %1559 = vmatpush2.msra.mxu0 0.0
        %1560 = vmatprep.subr.mxu0 0.0
        %1561 = vmatpush2.msra.mxu0 0.0
        %1562 = vmatprep.subr.mxu0 0.0
        %1563 = vmatpush2.msra.mxu0 0.0
        %1564 = vmatprep.subr.mxu0 0.0
        %1565 = vmatpush2.msra.mxu0 0.0
        %1566 = vmatprep.subr.mxu0 0.0
        %1567 = vmatpush2.msra.mxu0 0.0
        %1568 = vmatprep.subr.mxu0 0.0
        %1569 = vmatpush2.msra.mxu0 0.0
        %1570 = vmatprep.subr.mxu0 0.0
        %1571 = vmatpush2.msra.mxu0 0.0
        %1572 = vmatprep.subr.mxu0 0.0
        %1573 = vmatpush2.msra.mxu0 0.0
        %1574 = vmatprep.subr.mxu0 0.0
        %1575 = vmatpush2.msra.mxu0 0.0
        %1576 = vmatprep.subr.mxu0 0.0
        %1577 = vmatpush2.msra.mxu0 0.0
        %1578 = vmatprep.mubr.f32.mxu0 0.0
        %1579 = vmatmul.mubr.f32.gmra.mxu0 %v1512
        %v1580 = vpop.f32.mrf.mxu0
        %v1581 = vadd.f32 0.0, %v1580
        %v1582 = vpop.f32.mrf.mxu0
        %1583 = vmatprep.mubr.f32.mxu0 0.0
        %1584 = vmatmul.mubr.f32.gmra.mxu0 %v1513
        %v1585 = vpop.f32.mrf.mxu0
        %v1586 = vadd.f32 0.0, %v1585
        %v1587 = vpop.f32.mrf.mxu0
        %1588 = vdwg.mxu0
        %v1589 = vmul.f32 %v1581, %v844
        %v1590 = vmul.f32 %v1586, %v845
        %v1591 = vadd.f32 %v1496, %v1589
        %v1592 = vadd.f32 %v1501, %v1590
        %1593 = vxpose.xlu0.b32.start [1/16] %v942, 128
        %1594 = vxpose.xlu0.b32.cont [2/16] %v943, 128
        %1595 = vxpose.xlu0.b32.cont [3/16] 0.0, 128
        %1596 = vxpose.xlu0.b32.cont [4/16] 0.0, 128
        %1597 = vxpose.xlu0.b32.cont [5/16] 0.0, 128
        %1598 = vxpose.xlu0.b32.cont [6/16] 0.0, 128
        %1599 = vxpose.xlu0.b32.cont [7/16] 0.0, 128
        %1600 = vxpose.xlu0.b32.cont [8/16] 0.0, 128
        %1601 = vxpose.xlu0.b32.cont [9/16] 0.0, 128
        %1602 = vxpose.xlu0.b32.cont [10/16] 0.0, 128
        %1603 = vxpose.xlu0.b32.cont [11/16] 0.0, 128
        %1604 = vxpose.xlu0.b32.cont [12/16] 0.0, 128
        %1605 = vxpose.xlu0.b32.cont [13/16] 0.0, 128
        %1606 = vxpose.xlu0.b32.cont [14/16] 0.0, 128
        %1607 = vxpose.xlu0.b32.cont [15/16] 0.0, 128
        %1608 = vxpose.xlu0.b32.end [16/16] 0.0, 128
        %v1609 = vpop.trf.xlu0
        %v1610 = vpop.trf.xlu0
        %v1611 = vpop.trf.xlu0
        %v1612 = vpop.trf.xlu0
        %v1613 = vpop.trf.xlu0
        %v1614 = vpop.trf.xlu0
        %v1615 = vpop.trf.xlu0
        %v1616 = vpop.trf.xlu0
        %v1617 = vpop.trf.xlu0
        %v1618 = vpop.trf.xlu0
        %v1619 = vpop.trf.xlu0
        %v1620 = vpop.trf.xlu0
        %v1621 = vpop.trf.xlu0
        %v1622 = vpop.trf.xlu0
        %v1623 = vpop.trf.xlu0
        %v1624 = vpop.trf.xlu0
        %v1626 = vsel %vm944, %v1609, 0
        %v1629 = vsel %vm944, %v1610, 0
        %v1632 = vsel %vm944, %v1611, 0
        %v1635 = vsel %vm944, %v1612, 0
        %v1638 = vsel %vm944, %v1613, 0
        %v1641 = vsel %vm944, %v1614, 0
        %v1644 = vsel %vm944, %v1615, 0
        %v1647 = vsel %vm944, %v1616, 0
        %v1650 = vsel %vm944, %v1617, 0
        %v1653 = vsel %vm944, %v1618, 0
        %v1656 = vsel %vm944, %v1619, 0
        %v1659 = vsel %vm944, %v1620, 0
        %v1662 = vsel %vm944, %v1621, 0
        %v1665 = vsel %vm944, %v1622, 0
        %v1668 = vsel %vm944, %v1623, 0
        %v1671 = vsel %vm944, %v1624, 0
        %1673 = vmatprep.subr.mxu0 0.0
        %1674 = vmatpush1.msra.mxu0 0.0
        %1675 = vmatprep.subr.mxu0 0.0
        %1676 = vmatpush1.msra.mxu0 0.0
        %1677 = vmatprep.subr.mxu0 0.0
        %1678 = vmatpush1.msra.mxu0 0.0
        %1679 = vmatprep.subr.mxu0 0.0
        %1680 = vmatpush1.msra.mxu0 0.0
        %1681 = vmatprep.subr.mxu0 0.0
        %1682 = vmatpush1.msra.mxu0 0.0
        %1683 = vmatprep.subr.mxu0 0.0
        %1684 = vmatpush1.msra.mxu0 0.0
        %1685 = vmatprep.subr.mxu0 0.0
        %1686 = vmatpush1.msra.mxu0 0.0
        %1687 = vmatprep.subr.mxu0 0.0
        %1688 = vmatpush1.msra.mxu0 0.0
        %1689 = vmatprep.subr.mxu0 0.0
        %1690 = vmatpush1.msra.mxu0 0.0
        %1691 = vmatprep.subr.mxu0 0.0
        %1692 = vmatpush1.msra.mxu0 0.0
        %1693 = vmatprep.subr.mxu0 0.0
        %1694 = vmatpush1.msra.mxu0 0.0
        %1695 = vmatprep.subr.mxu0 0.0
        %1696 = vmatpush1.msra.mxu0 0.0
        %1697 = vmatprep.subr.mxu0 0.0
        %1698 = vmatpush1.msra.mxu0 0.0
        %1699 = vmatprep.subr.mxu0 0.0
        %1700 = vmatpush1.msra.mxu0 0.0
        %1701 = vmatprep.subr.mxu0 0.0
        %1702 = vmatpush1.msra.mxu0 1.0
        %1703 = vmatprep.subr.mxu0 0.0
        %1704 = vmatpush1.msra.mxu0 1.0
        %1705 = vmatprep.subr.mxu0 0.0
        %1706 = vmatpush2.msra.mxu0 0.0
        %1707 = vmatprep.subr.mxu0 0.0
        %1708 = vmatpush2.msra.mxu0 0.0
        %1709 = vmatprep.subr.mxu0 0.0
        %1710 = vmatpush2.msra.mxu0 0.0
        %1711 = vmatprep.subr.mxu0 0.0
        %1712 = vmatpush2.msra.mxu0 0.0
        %1713 = vmatprep.subr.mxu0 0.0
        %1714 = vmatpush2.msra.mxu0 0.0
        %1715 = vmatprep.subr.mxu0 0.0
        %1716 = vmatpush2.msra.mxu0 0.0
        %1717 = vmatprep.subr.mxu0 0.0
        %1718 = vmatpush2.msra.mxu0 0.0
        %1719 = vmatprep.subr.mxu0 0.0
        %1720 = vmatpush2.msra.mxu0 0.0
        %1721 = vmatprep.subr.mxu0 0.0
        %1722 = vmatpush2.msra.mxu0 0.0
        %1723 = vmatprep.subr.mxu0 0.0
        %1724 = vmatpush2.msra.mxu0 0.0
        %1725 = vmatprep.subr.mxu0 0.0
        %1726 = vmatpush2.msra.mxu0 0.0
        %1727 = vmatprep.subr.mxu0 0.0
        %1728 = vmatpush2.msra.mxu0 0.0
        %1729 = vmatprep.subr.mxu0 0.0
        %1730 = vmatpush2.msra.mxu0 0.0
        %1731 = vmatprep.subr.mxu0 0.0
        %1732 = vmatpush2.msra.mxu0 0.0
        %1733 = vmatprep.subr.mxu0 0.0
        %1734 = vmatpush2.msra.mxu0 0.0
        %1735 = vmatprep.subr.mxu0 0.0
        %1736 = vmatpush2.msra.mxu0 0.0
        %1737 = vmatprep.mubr.f32.mxu0 0.0
        %1738 = vmatmul.mubr.f32.gmra.mxu0 %v1626
        %v1739 = vpop.f32.mrf.mxu0
        %v1740 = vadd.f32 0.0, %v1739
        %v1741 = vpop.f32.mrf.mxu0
        %1742 = vmatprep.mubr.f32.mxu0 0.0
        %1743 = vmatmul.mubr.f32.gmra.mxu0 %v1629
        %v1744 = vpop.f32.mrf.mxu0
        %v1745 = vadd.f32 0.0, %v1744
        %v1746 = vpop.f32.mrf.mxu0
        %1747 = vmatprep.mubr.f32.mxu0 0.0
        %1748 = vmatmul.mubr.f32.gmra.mxu0 %v1632
        %v1749 = vpop.f32.mrf.mxu0
        %v1750 = vadd.f32 0.0, %v1749
        %v1751 = vpop.f32.mrf.mxu0
        %1752 = vmatprep.mubr.f32.mxu0 0.0
        %1753 = vmatmul.mubr.f32.gmra.mxu0 %v1635
        %v1754 = vpop.f32.mrf.mxu0
        %v1755 = vadd.f32 0.0, %v1754
        %v1756 = vpop.f32.mrf.mxu0
        %1757 = vmatprep.mubr.f32.mxu0 0.0
        %1758 = vmatmul.mubr.f32.gmra.mxu0 %v1638
        %v1759 = vpop.f32.mrf.mxu0
        %v1760 = vadd.f32 0.0, %v1759
        %v1761 = vpop.f32.mrf.mxu0
        %1762 = vmatprep.mubr.f32.mxu0 0.0
        %1763 = vmatmul.mubr.f32.gmra.mxu0 %v1641
        %v1764 = vpop.f32.mrf.mxu0
        %v1765 = vadd.f32 0.0, %v1764
        %v1766 = vpop.f32.mrf.mxu0
        %1767 = vmatprep.mubr.f32.mxu0 0.0
        %1768 = vmatmul.mubr.f32.gmra.mxu0 %v1644
        %v1769 = vpop.f32.mrf.mxu0
        %v1770 = vadd.f32 0.0, %v1769
        %v1771 = vpop.f32.mrf.mxu0
        %1772 = vmatprep.mubr.f32.mxu0 0.0
        %1773 = vmatmul.mubr.f32.gmra.mxu0 %v1647
        %v1774 = vpop.f32.mrf.mxu0
        %v1775 = vadd.f32 0.0, %v1774
        %v1776 = vpop.f32.mrf.mxu0
        %1777 = vmatprep.mubr.f32.mxu0 0.0
        %1778 = vmatmul.mubr.f32.gmra.mxu0 %v1650
        %v1779 = vpop.f32.mrf.mxu0
        %v1780 = vadd.f32 0.0, %v1779
        %v1781 = vpop.f32.mrf.mxu0
        %1782 = vmatprep.mubr.f32.mxu0 0.0
        %1783 = vmatmul.mubr.f32.gmra.mxu0 %v1653
        %v1784 = vpop.f32.mrf.mxu0
        %v1785 = vadd.f32 0.0, %v1784
        %v1786 = vpop.f32.mrf.mxu0
        %1787 = vmatprep.mubr.f32.mxu0 0.0
        %1788 = vmatmul.mubr.f32.gmra.mxu0 %v1656
        %v1789 = vpop.f32.mrf.mxu0
        %v1790 = vadd.f32 0.0, %v1789
        %v1791 = vpop.f32.mrf.mxu0
        %1792 = vmatprep.mubr.f32.mxu0 0.0
        %1793 = vmatmul.mubr.f32.gmra.mxu0 %v1659
        %v1794 = vpop.f32.mrf.mxu0
        %v1795 = vadd.f32 0.0, %v1794
        %v1796 = vpop.f32.mrf.mxu0
        %1797 = vmatprep.mubr.f32.mxu0 0.0
        %1798 = vmatmul.mubr.f32.gmra.mxu0 %v1662
        %v1799 = vpop.f32.mrf.mxu0
        %v1800 = vadd.f32 0.0, %v1799
        %v1801 = vpop.f32.mrf.mxu0
        %1802 = vmatprep.mubr.f32.mxu0 0.0
        %1803 = vmatmul.mubr.f32.gmra.mxu0 %v1665
        %v1804 = vpop.f32.mrf.mxu0
        %v1805 = vadd.f32 0.0, %v1804
        %v1806 = vpop.f32.mrf.mxu0
        %1807 = vmatprep.mubr.f32.mxu0 0.0
        %1808 = vmatmul.mubr.f32.gmra.mxu0 %v1668
        %v1809 = vpop.f32.mrf.mxu0
        %v1810 = vadd.f32 0.0, %v1809
        %v1811 = vpop.f32.mrf.mxu0
        %1812 = vmatprep.mubr.f32.mxu0 0.0
        %1813 = vmatmul.mubr.f32.gmra.mxu0 %v1671
        %v1814 = vpop.f32.mrf.mxu0
        %v1815 = vadd.f32 0.0, %v1814
        %v1816 = vpop.f32.mrf.mxu0
        %1817 = vdwg.mxu0
        %v1818 = vmul.f32 %v1740, 1.442695
        %v1819 = vpow.pop %v1818
        %v1820 = vmul.f32 %v1745, 1.442695
        %v1821 = vpow.pop %v1820
        %v1822 = vmul.f32 %v1750, 1.442695
        %v1823 = vpow.pop %v1822
        %v1824 = vmul.f32 %v1755, 1.442695
        %v1825 = vpow.pop %v1824
        %v1826 = vmul.f32 %v1760, 1.442695
        %v1827 = vpow.pop %v1826
        %v1828 = vmul.f32 %v1765, 1.442695
        %v1829 = vpow.pop %v1828
        %v1830 = vmul.f32 %v1770, 1.442695
        %v1831 = vpow.pop %v1830
        %v1832 = vmul.f32 %v1775, 1.442695
        %v1833 = vpow.pop %v1832
        %v1834 = vmul.f32 %v1780, 1.442695
        %v1835 = vpow.pop %v1834
        %v1836 = vmul.f32 %v1785, 1.442695
        %v1837 = vpow.pop %v1836
        %v1838 = vmul.f32 %v1790, 1.442695
        %v1839 = vpow.pop %v1838
        %v1840 = vmul.f32 %v1795, 1.442695
        %v1841 = vpow.pop %v1840
        %v1842 = vmul.f32 %v1800, 1.442695
        %v1843 = vpow.pop %v1842
        %v1844 = vmul.f32 %v1805, 1.442695
        %v1845 = vpow.pop %v1844
        %v1846 = vmul.f32 %v1810, 1.442695
        %v1847 = vpow.pop %v1846
        %v1848 = vmul.f32 %v1815, 1.442695
        %v1849 = vpow.pop %v1848
        %1850 = vxpose.xlu0.b32.start [1/16] %v1048, 128
        %1851 = vxpose.xlu0.b32.cont [2/16] %v1049, 128
        %1852 = vxpose.xlu0.b32.cont [3/16] 0.0, 128
        %1853 = vxpose.xlu0.b32.cont [4/16] 0.0, 128
        %1854 = vxpose.xlu0.b32.cont [5/16] 0.0, 128
        %1855 = vxpose.xlu0.b32.cont [6/16] 0.0, 128
        %1856 = vxpose.xlu0.b32.cont [7/16] 0.0, 128
        %1857 = vxpose.xlu0.b32.cont [8/16] 0.0, 128
        %1858 = vxpose.xlu0.b32.cont [9/16] 0.0, 128
        %1859 = vxpose.xlu0.b32.cont [10/16] 0.0, 128
        %1860 = vxpose.xlu0.b32.cont [11/16] 0.0, 128
        %1861 = vxpose.xlu0.b32.cont [12/16] 0.0, 128
        %1862 = vxpose.xlu0.b32.cont [13/16] 0.0, 128
        %1863 = vxpose.xlu0.b32.cont [14/16] 0.0, 128
        %1864 = vxpose.xlu0.b32.cont [15/16] 0.0, 128
        %1865 = vxpose.xlu0.b32.end [16/16] 0.0, 128
        %v1866 = vpop.trf.xlu0
        %v1867 = vpop.trf.xlu0
        %v1868 = vpop.trf.xlu0
        %v1869 = vpop.trf.xlu0
        %v1870 = vpop.trf.xlu0
        %v1871 = vpop.trf.xlu0
        %v1872 = vpop.trf.xlu0
        %v1873 = vpop.trf.xlu0
        %v1874 = vpop.trf.xlu0
        %v1875 = vpop.trf.xlu0
        %v1876 = vpop.trf.xlu0
        %v1877 = vpop.trf.xlu0
        %v1878 = vpop.trf.xlu0
        %v1879 = vpop.trf.xlu0
        %v1880 = vpop.trf.xlu0
        %v1881 = vpop.trf.xlu0
        %v1883 = vsel %vm944, %v1866, 0
        %v1886 = vsel %vm944, %v1867, 0
        %v1889 = vsel %vm944, %v1868, 0
        %v1892 = vsel %vm944, %v1869, 0
        %v1895 = vsel %vm944, %v1870, 0
        %v1898 = vsel %vm944, %v1871, 0
        %v1901 = vsel %vm944, %v1872, 0
        %v1904 = vsel %vm944, %v1873, 0
        %v1907 = vsel %vm944, %v1874, 0
        %v1910 = vsel %vm944, %v1875, 0
        %v1913 = vsel %vm944, %v1876, 0
        %v1916 = vsel %vm944, %v1877, 0
        %v1919 = vsel %vm944, %v1878, 0
        %v1922 = vsel %vm944, %v1879, 0
        %v1925 = vsel %vm944, %v1880, 0
        %v1928 = vsel %vm944, %v1881, 0
        %1930 = vmatprep.subr.mxu0 0.0
        %1931 = vmatpush1.msra.mxu0 0.0
        %1932 = vmatprep.subr.mxu0 0.0
        %1933 = vmatpush1.msra.mxu0 0.0
        %1934 = vmatprep.subr.mxu0 0.0
        %1935 = vmatpush1.msra.mxu0 0.0
        %1936 = vmatprep.subr.mxu0 0.0
        %1937 = vmatpush1.msra.mxu0 0.0
        %1938 = vmatprep.subr.mxu0 0.0
        %1939 = vmatpush1.msra.mxu0 0.0
        %1940 = vmatprep.subr.mxu0 0.0
        %1941 = vmatpush1.msra.mxu0 0.0
        %1942 = vmatprep.subr.mxu0 0.0
        %1943 = vmatpush1.msra.mxu0 0.0
        %1944 = vmatprep.subr.mxu0 0.0
        %1945 = vmatpush1.msra.mxu0 0.0
        %1946 = vmatprep.subr.mxu0 0.0
        %1947 = vmatpush1.msra.mxu0 0.0
        %1948 = vmatprep.subr.mxu0 0.0
        %1949 = vmatpush1.msra.mxu0 0.0
        %1950 = vmatprep.subr.mxu0 0.0
        %1951 = vmatpush1.msra.mxu0 0.0
        %1952 = vmatprep.subr.mxu0 0.0
        %1953 = vmatpush1.msra.mxu0 0.0
        %1954 = vmatprep.subr.mxu0 0.0
        %1955 = vmatpush1.msra.mxu0 0.0
        %1956 = vmatprep.subr.mxu0 0.0
        %1957 = vmatpush1.msra.mxu0 0.0
        %1958 = vmatprep.subr.mxu0 0.0
        %1959 = vmatpush1.msra.mxu0 %v845
        %1960 = vmatprep.subr.mxu0 0.0
        %1961 = vmatpush1.msra.mxu0 %v844
        %1962 = vmatprep.subr.mxu0 0.0
        %1963 = vmatpush2.msra.mxu0 0.0
        %1964 = vmatprep.subr.mxu0 0.0
        %1965 = vmatpush2.msra.mxu0 0.0
        %1966 = vmatprep.subr.mxu0 0.0
        %1967 = vmatpush2.msra.mxu0 0.0
        %1968 = vmatprep.subr.mxu0 0.0
        %1969 = vmatpush2.msra.mxu0 0.0
        %1970 = vmatprep.subr.mxu0 0.0
        %1971 = vmatpush2.msra.mxu0 0.0
        %1972 = vmatprep.subr.mxu0 0.0
        %1973 = vmatpush2.msra.mxu0 0.0
        %1974 = vmatprep.subr.mxu0 0.0
        %1975 = vmatpush2.msra.mxu0 0.0
        %1976 = vmatprep.subr.mxu0 0.0
        %1977 = vmatpush2.msra.mxu0 0.0
        %1978 = vmatprep.subr.mxu0 0.0
        %1979 = vmatpush2.msra.mxu0 0.0
        %1980 = vmatprep.subr.mxu0 0.0
        %1981 = vmatpush2.msra.mxu0 0.0
        %1982 = vmatprep.subr.mxu0 0.0
        %1983 = vmatpush2.msra.mxu0 0.0
        %1984 = vmatprep.subr.mxu0 0.0
        %1985 = vmatpush2.msra.mxu0 0.0
        %1986 = vmatprep.subr.mxu0 0.0
        %1987 = vmatpush2.msra.mxu0 0.0
        %1988 = vmatprep.subr.mxu0 0.0
        %1989 = vmatpush2.msra.mxu0 0.0
        %1990 = vmatprep.subr.mxu0 0.0
        %1991 = vmatpush2.msra.mxu0 0.0
        %1992 = vmatprep.subr.mxu0 0.0
        %1993 = vmatpush2.msra.mxu0 0.0
        %1994 = vmatprep.mubr.f32.mxu0 0.0
        %1995 = vmatmul.mubr.f32.gmra.mxu0 %v1883
        %v1996 = vpop.f32.mrf.mxu0
        %v1997 = vadd.f32 0.0, %v1996
        %v1998 = vpop.f32.mrf.mxu0
        %1999 = vmatprep.mubr.f32.mxu0 0.0
        %2000 = vmatmul.mubr.f32.gmra.mxu0 %v1886
        %v2001 = vpop.f32.mrf.mxu0
        %v2002 = vadd.f32 0.0, %v2001
        %v2003 = vpop.f32.mrf.mxu0
        %2004 = vmatprep.mubr.f32.mxu0 0.0
        %2005 = vmatmul.mubr.f32.gmra.mxu0 %v1889
        %v2006 = vpop.f32.mrf.mxu0
        %v2007 = vadd.f32 0.0, %v2006
        %v2008 = vpop.f32.mrf.mxu0
        %2009 = vmatprep.mubr.f32.mxu0 0.0
        %2010 = vmatmul.mubr.f32.gmra.mxu0 %v1892
        %v2011 = vpop.f32.mrf.mxu0
        %v2012 = vadd.f32 0.0, %v2011
        %v2013 = vpop.f32.mrf.mxu0
        %2014 = vmatprep.mubr.f32.mxu0 0.0
        %2015 = vmatmul.mubr.f32.gmra.mxu0 %v1895
        %v2016 = vpop.f32.mrf.mxu0
        %v2017 = vadd.f32 0.0, %v2016
        %v2018 = vpop.f32.mrf.mxu0
        %2019 = vmatprep.mubr.f32.mxu0 0.0
        %2020 = vmatmul.mubr.f32.gmra.mxu0 %v1898
        %v2021 = vpop.f32.mrf.mxu0
        %v2022 = vadd.f32 0.0, %v2021
        %v2023 = vpop.f32.mrf.mxu0
        %2024 = vmatprep.mubr.f32.mxu0 0.0
        %2025 = vmatmul.mubr.f32.gmra.mxu0 %v1901
        %v2026 = vpop.f32.mrf.mxu0
        %v2027 = vadd.f32 0.0, %v2026
        %v2028 = vpop.f32.mrf.mxu0
        %2029 = vmatprep.mubr.f32.mxu0 0.0
        %2030 = vmatmul.mubr.f32.gmra.mxu0 %v1904
        %v2031 = vpop.f32.mrf.mxu0
        %v2032 = vadd.f32 0.0, %v2031
        %v2033 = vpop.f32.mrf.mxu0
        %2034 = vmatprep.mubr.f32.mxu0 0.0
        %2035 = vmatmul.mubr.f32.gmra.mxu0 %v1907
        %v2036 = vpop.f32.mrf.mxu0
        %v2037 = vadd.f32 0.0, %v2036
        %v2038 = vpop.f32.mrf.mxu0
        %2039 = vmatprep.mubr.f32.mxu0 0.0
        %2040 = vmatmul.mubr.f32.gmra.mxu0 %v1910
        %v2041 = vpop.f32.mrf.mxu0
        %v2042 = vadd.f32 0.0, %v2041
        %v2043 = vpop.f32.mrf.mxu0
        %2044 = vmatprep.mubr.f32.mxu0 0.0
        %2045 = vmatmul.mubr.f32.gmra.mxu0 %v1913
        %v2046 = vpop.f32.mrf.mxu0
        %v2047 = vadd.f32 0.0, %v2046
        %v2048 = vpop.f32.mrf.mxu0
        %2049 = vmatprep.mubr.f32.mxu0 0.0
        %2050 = vmatmul.mubr.f32.gmra.mxu0 %v1916
        %v2051 = vpop.f32.mrf.mxu0
        %v2052 = vadd.f32 0.0, %v2051
        %v2053 = vpop.f32.mrf.mxu0
        %2054 = vmatprep.mubr.f32.mxu0 0.0
        %2055 = vmatmul.mubr.f32.gmra.mxu0 %v1919
        %v2056 = vpop.f32.mrf.mxu0
        %v2057 = vadd.f32 0.0, %v2056
        %v2058 = vpop.f32.mrf.mxu0
        %2059 = vmatprep.mubr.f32.mxu0 0.0
        %2060 = vmatmul.mubr.f32.gmra.mxu0 %v1922
        %v2061 = vpop.f32.mrf.mxu0
        %v2062 = vadd.f32 0.0, %v2061
        %v2063 = vpop.f32.mrf.mxu0
        %2064 = vmatprep.mubr.f32.mxu0 0.0
        %2065 = vmatmul.mubr.f32.gmra.mxu0 %v1925
        %v2066 = vpop.f32.mrf.mxu0
        %v2067 = vadd.f32 0.0, %v2066
        %v2068 = vpop.f32.mrf.mxu0
        %2069 = vmatprep.mubr.f32.mxu0 0.0
        %2070 = vmatmul.mubr.f32.gmra.mxu0 %v1928
        %v2071 = vpop.f32.mrf.mxu0
        %v2072 = vadd.f32 0.0, %v2071
        %v2073 = vpop.f32.mrf.mxu0
        %2074 = vdwg.mxu0
        %2076 = vset.pattern.permute.xlu0 0
        %2077 = vperm.xlu0 %2076, %v1819
        %v2078 = vpop.permute.xlu0 %2077
        %2081 = vset.pattern.permute.xlu0 0
        %2082 = vperm.xlu0 %2081, %v1821
        %v2083 = vpop.permute.xlu0 %2082
        %2086 = vset.pattern.permute.xlu0 0
        %2087 = vperm.xlu0 %2086, %v1823
        %v2088 = vpop.permute.xlu0 %2087
        %2091 = vset.pattern.permute.xlu0 0
        %2092 = vperm.xlu0 %2091, %v1825
        %v2093 = vpop.permute.xlu0 %2092
        %2096 = vset.pattern.permute.xlu0 0
        %2097 = vperm.xlu0 %2096, %v1827
        %v2098 = vpop.permute.xlu0 %2097
        %2101 = vset.pattern.permute.xlu0 0
        %2102 = vperm.xlu0 %2101, %v1829
        %v2103 = vpop.permute.xlu0 %2102
        %2106 = vset.pattern.permute.xlu0 0
        %2107 = vperm.xlu0 %2106, %v1831
        %v2108 = vpop.permute.xlu0 %2107
        %2111 = vset.pattern.permute.xlu0 0
        %2112 = vperm.xlu0 %2111, %v1833
        %v2113 = vpop.permute.xlu0 %2112
        %2116 = vset.pattern.permute.xlu0 0
        %2117 = vperm.xlu0 %2116, %v1835
        %v2118 = vpop.permute.xlu0 %2117
        %2121 = vset.pattern.permute.xlu0 0
        %2122 = vperm.xlu0 %2121, %v1837
        %v2123 = vpop.permute.xlu0 %2122
        %2126 = vset.pattern.permute.xlu0 0
        %2127 = vperm.xlu0 %2126, %v1839
        %v2128 = vpop.permute.xlu0 %2127
        %2131 = vset.pattern.permute.xlu0 0
        %2132 = vperm.xlu0 %2131, %v1841
        %v2133 = vpop.permute.xlu0 %2132
        %2136 = vset.pattern.permute.xlu0 0
        %2137 = vperm.xlu0 %2136, %v1843
        %v2138 = vpop.permute.xlu0 %2137
        %2141 = vset.pattern.permute.xlu0 0
        %2142 = vperm.xlu0 %2141, %v1845
        %v2143 = vpop.permute.xlu0 %2142
        %2146 = vset.pattern.permute.xlu0 0
        %2147 = vperm.xlu0 %2146, %v1847
        %v2148 = vpop.permute.xlu0 %2147
        %2151 = vset.pattern.permute.xlu0 0
        %2152 = vperm.xlu0 %2151, %v1849
        %v2153 = vpop.permute.xlu0 %2152
        %v2155 = vmul.f32 %v1050, %v2078
        %v2156 = vmul.f32 %v1051, %v2083
        %v2157 = vmul.f32 %v1052, %v2088
        %v2158 = vmul.f32 %v1053, %v2093
        %v2159 = vmul.f32 %v1054, %v2098
        %v2160 = vmul.f32 %v1055, %v2103
        %v2161 = vmul.f32 %v1056, %v2108
        %v2162 = vmul.f32 %v1057, %v2113
        %v2163 = vmul.f32 %v1058, %v2118
        %v2164 = vmul.f32 %v1059, %v2123
        %v2165 = vmul.f32 %v1060, %v2128
        %v2166 = vmul.f32 %v1061, %v2133
        %v2167 = vmul.f32 %v1062, %v2138
        %v2168 = vmul.f32 %v1063, %v2143
        %v2169 = vmul.f32 %v1064, %v2148
        %v2170 = vmul.f32 %v1065, %v2153
        %v2171 = vmul.f32 %v1997, %v803
        %v2172 = vmul.f32 %v2002, %v804
        %v2173 = vmul.f32 %v2007, %v805
        %v2174 = vmul.f32 %v2012, %v806
        %v2175 = vmul.f32 %v2017, %v807
        %v2176 = vmul.f32 %v2022, %v808
        %v2177 = vmul.f32 %v2027, %v809
        %v2178 = vmul.f32 %v2032, %v810
        %v2179 = vmul.f32 %v2037, %v811
        %v2180 = vmul.f32 %v2042, %v812
        %v2181 = vmul.f32 %v2047, %v813
        %v2182 = vmul.f32 %v2052, %v814
        %v2183 = vmul.f32 %v2057, %v815
        %v2184 = vmul.f32 %v2062, %v816
        %v2185 = vmul.f32 %v2067, %v817
        %v2186 = vmul.f32 %v2072, %v818
        %v2187 = vadd.f32 %v2155, %v2171
        %v2188 = vadd.f32 %v2156, %v2172
        %v2189 = vadd.f32 %v2157, %v2173
        %v2190 = vadd.f32 %v2158, %v2174
        %v2191 = vadd.f32 %v2159, %v2175
        %v2192 = vadd.f32 %v2160, %v2176
        %v2193 = vadd.f32 %v2161, %v2177
        %v2194 = vadd.f32 %v2162, %v2178
        %v2195 = vadd.f32 %v2163, %v2179
        %v2196 = vadd.f32 %v2164, %v2180
        %v2197 = vadd.f32 %v2165, %v2181
        %v2198 = vadd.f32 %v2166, %v2182
        %v2199 = vadd.f32 %v2167, %v2183
        %v2200 = vadd.f32 %v2168, %v2184
        %v2201 = vadd.f32 %v2169, %v2185
        %v2202 = vadd.f32 %v2170, %v2186
        %2203 = vst [vmem:[#allocation2] sm:$0xff] %v2187
        %2204 = vst [vmem:[#allocation2 + $0x8] sm:$0xff] %v2188
        %2205 = vst [vmem:[#allocation2 + $0x10] sm:$0xff] %v2189
        %2206 = vst [vmem:[#allocation2 + $0x18] sm:$0xff] %v2190
        %2207 = vst [vmem:[#allocation2 + $0x20] sm:$0xff] %v2191
        %2208 = vst [vmem:[#allocation2 + $0x28] sm:$0xff] %v2192
        %2209 = vst [vmem:[#allocation2 + $0x30] sm:$0xff] %v2193
        %2210 = vst [vmem:[#allocation2 + $0x38] sm:$0xff] %v2194
        %2211 = vst [vmem:[#allocation2 + $0x40] sm:$0xff] %v2195
        %2212 = vst [vmem:[#allocation2 + $0x48] sm:$0xff] %v2196
        %2213 = vst [vmem:[#allocation2 + $0x50] sm:$0xff] %v2197
        %2214 = vst [vmem:[#allocation2 + $0x58] sm:$0xff] %v2198
        %2215 = vst [vmem:[#allocation2 + $0x60] sm:$0xff] %v2199
        %2216 = vst [vmem:[#allocation2 + $0x68] sm:$0xff] %v2200
        %2217 = vst [vmem:[#allocation2 + $0x70] sm:$0xff] %v2201
        %2218 = vst [vmem:[#allocation2 + $0x78] sm:$0xff] %v2202
        %2219 = vmatprep.subr.mxu0 0.0
        %2220 = vmatpush1.msra.mxu0 %v818
        %2221 = vmatprep.subr.mxu0 0.0
        %2222 = vmatpush1.msra.mxu0 %v817
        %2223 = vmatprep.subr.mxu0 0.0
        %2224 = vmatpush1.msra.mxu0 %v816
        %2225 = vmatprep.subr.mxu0 0.0
        %2226 = vmatpush1.msra.mxu0 %v815
        %2227 = vmatprep.subr.mxu0 0.0
        %2228 = vmatpush1.msra.mxu0 %v814
        %2229 = vmatprep.subr.mxu0 0.0
        %2230 = vmatpush1.msra.mxu0 %v813
        %2231 = vmatprep.subr.mxu0 0.0
        %2232 = vmatpush1.msra.mxu0 %v812
        %2233 = vmatprep.subr.mxu0 0.0
        %2234 = vmatpush1.msra.mxu0 %v811
        %2235 = vmatprep.subr.mxu0 0.0
        %2236 = vmatpush1.msra.mxu0 %v810
        %2237 = vmatprep.subr.mxu0 0.0
        %2238 = vmatpush1.msra.mxu0 %v809
        %2239 = vmatprep.subr.mxu0 0.0
        %2240 = vmatpush1.msra.mxu0 %v808
        %2241 = vmatprep.subr.mxu0 0.0
        %2242 = vmatpush1.msra.mxu0 %v807
        %2243 = vmatprep.subr.mxu0 0.0
        %2244 = vmatpush1.msra.mxu0 %v806
        %2245 = vmatprep.subr.mxu0 0.0
        %2246 = vmatpush1.msra.mxu0 %v805
        %2247 = vmatprep.subr.mxu0 0.0
        %2248 = vmatpush1.msra.mxu0 %v804
        %2249 = vmatprep.subr.mxu0 0.0
        %2250 = vmatpush1.msra.mxu0 %v803
        %2251 = vmatprep.subr.mxu0 0.0
        %2252 = vmatpush2.msra.mxu0 0.0
        %2253 = vmatprep.subr.mxu0 0.0
        %2254 = vmatpush2.msra.mxu0 0.0
        %2255 = vmatprep.subr.mxu0 0.0
        %2256 = vmatpush2.msra.mxu0 0.0
        %2257 = vmatprep.subr.mxu0 0.0
        %2258 = vmatpush2.msra.mxu0 0.0
        %2259 = vmatprep.subr.mxu0 0.0
        %2260 = vmatpush2.msra.mxu0 0.0
        %2261 = vmatprep.subr.mxu0 0.0
        %2262 = vmatpush2.msra.mxu0 0.0
        %2263 = vmatprep.subr.mxu0 0.0
        %2264 = vmatpush2.msra.mxu0 0.0
        %2265 = vmatprep.subr.mxu0 0.0
        %2266 = vmatpush2.msra.mxu0 0.0
        %2267 = vmatprep.subr.mxu0 0.0
        %2268 = vmatpush2.msra.mxu0 0.0
        %2269 = vmatprep.subr.mxu0 0.0
        %2270 = vmatpush2.msra.mxu0 0.0
        %2271 = vmatprep.subr.mxu0 0.0
        %2272 = vmatpush2.msra.mxu0 0.0
        %2273 = vmatprep.subr.mxu0 0.0
        %2274 = vmatpush2.msra.mxu0 0.0
        %2275 = vmatprep.subr.mxu0 0.0
        %2276 = vmatpush2.msra.mxu0 0.0
        %2277 = vmatprep.subr.mxu0 0.0
        %2278 = vmatpush2.msra.mxu0 0.0
        %2279 = vmatprep.subr.mxu0 0.0
        %2280 = vmatpush2.msra.mxu0 0.0
        %2281 = vmatprep.subr.mxu0 0.0
        %2282 = vmatpush2.msra.mxu0 0.0
        %2283 = vmatprep.mubr.f32.mxu0 0.0
        %2284 = vmatmul.mubr.f32.gmra.mxu0 %v1591
        %v2285 = vpop.f32.mrf.mxu0
        %v2286 = vadd.f32 0.0, %v2285
        %v2287 = vpop.f32.mrf.mxu0
        %2288 = vmatprep.mubr.f32.mxu0 0.0
        %2289 = vmatmul.mubr.f32.gmra.mxu0 %v1592
        %v2290 = vpop.f32.mrf.mxu0
        %v2291 = vadd.f32 0.0, %v2290
        %v2292 = vpop.f32.mrf.mxu0
        %2293 = vdwg.mxu0
        %v2294 = vmul.f32 %v2286, 0.015625
        %v2295 = vmul.f32 %v2291, 0.015625
        %v2296 = vsub.f32 %v1591, %v2294
        %v2297 = vsub.f32 %v1592, %v2295
        %v2298 = vmul.f32 %v2296, %v2296
        %v2299 = vmul.f32 %v2297, %v2297
        %2300 = vmatprep.subr.mxu0 0.0
        %2301 = vmatpush1.msra.mxu0 %v818
        %2302 = vmatprep.subr.mxu0 0.0
        %2303 = vmatpush1.msra.mxu0 %v817
        %2304 = vmatprep.subr.mxu0 0.0
        %2305 = vmatpush1.msra.mxu0 %v816
        %2306 = vmatprep.subr.mxu0 0.0
        %2307 = vmatpush1.msra.mxu0 %v815
        %2308 = vmatprep.subr.mxu0 0.0
        %2309 = vmatpush1.msra.mxu0 %v814
        %2310 = vmatprep.subr.mxu0 0.0
        %2311 = vmatpush1.msra.mxu0 %v813
        %2312 = vmatprep.subr.mxu0 0.0
        %2313 = vmatpush1.msra.mxu0 %v812
        %2314 = vmatprep.subr.mxu0 0.0
        %2315 = vmatpush1.msra.mxu0 %v811
        %2316 = vmatprep.subr.mxu0 0.0
        %2317 = vmatpush1.msra.mxu0 %v810
        %2318 = vmatprep.subr.mxu0 0.0
        %2319 = vmatpush1.msra.mxu0 %v809
        %2320 = vmatprep.subr.mxu0 0.0
        %2321 = vmatpush1.msra.mxu0 %v808
        %2322 = vmatprep.subr.mxu0 0.0
        %2323 = vmatpush1.msra.mxu0 %v807
        %2324 = vmatprep.subr.mxu0 0.0
        %2325 = vmatpush1.msra.mxu0 %v806
        %2326 = vmatprep.subr.mxu0 0.0
        %2327 = vmatpush1.msra.mxu0 %v805
        %2328 = vmatprep.subr.mxu0 0.0
        %2329 = vmatpush1.msra.mxu0 %v804
        %2330 = vmatprep.subr.mxu0 0.0
        %2331 = vmatpush1.msra.mxu0 %v803
        %2332 = vmatprep.subr.mxu0 0.0
        %2333 = vmatpush2.msra.mxu0 0.0
        %2334 = vmatprep.subr.mxu0 0.0
        %2335 = vmatpush2.msra.mxu0 0.0
        %2336 = vmatprep.subr.mxu0 0.0
        %2337 = vmatpush2.msra.mxu0 0.0
        %2338 = vmatprep.subr.mxu0 0.0
        %2339 = vmatpush2.msra.mxu0 0.0
        %2340 = vmatprep.subr.mxu0 0.0
        %2341 = vmatpush2.msra.mxu0 0.0
        %2342 = vmatprep.subr.mxu0 0.0
        %2343 = vmatpush2.msra.mxu0 0.0
        %2344 = vmatprep.subr.mxu0 0.0
        %2345 = vmatpush2.msra.mxu0 0.0
        %2346 = vmatprep.subr.mxu0 0.0
        %2347 = vmatpush2.msra.mxu0 0.0
        %2348 = vmatprep.subr.mxu0 0.0
        %2349 = vmatpush2.msra.mxu0 0.0
        %2350 = vmatprep.subr.mxu0 0.0
        %2351 = vmatpush2.msra.mxu0 0.0
        %2352 = vmatprep.subr.mxu0 0.0
        %2353 = vmatpush2.msra.mxu0 0.0
        %2354 = vmatprep.subr.mxu0 0.0
        %2355 = vmatpush2.msra.mxu0 0.0
        %2356 = vmatprep.subr.mxu0 0.0
        %2357 = vmatpush2.msra.mxu0 0.0
        %2358 = vmatprep.subr.mxu0 0.0
        %2359 = vmatpush2.msra.mxu0 0.0
        %2360 = vmatprep.subr.mxu0 0.0
        %2361 = vmatpush2.msra.mxu0 0.0
        %2362 = vmatprep.subr.mxu0 0.0
        %2363 = vmatpush2.msra.mxu0 0.0
        %2364 = vmatprep.mubr.f32.mxu0 0.0
        %2365 = vmatmul.mubr.f32.gmra.mxu0 %v2298
        %v2366 = vpop.f32.mrf.mxu0
        %v2367 = vadd.f32 0.0, %v2366
        %v2368 = vpop.f32.mrf.mxu0
        %2369 = vmatprep.mubr.f32.mxu0 0.0
        %2370 = vmatmul.mubr.f32.gmra.mxu0 %v2299
        %v2371 = vpop.f32.mrf.mxu0
        %v2372 = vadd.f32 0.0, %v2371
        %v2373 = vpop.f32.mrf.mxu0
        %2374 = vdwg.mxu0
        %v2375 = vmul.f32 %v2367, 0.015625
        %v2376 = vmul.f32 %v2372, 0.015625
        %v2377 = vadd.f32 %v2375, 2e-05
        %v2378 = vadd.f32 %v2376, 2e-05
        %v2379 = vrsqrt.pop %v2377
        %v2380 = vrsqrt.pop %v2378
        %v2381 = vmul.f32 %v2296, %v2379
        %v2382 = vmul.f32 %v2297, %v2380
        %v2384 = vlaneseq
        %v2385 = vshrl.u32 %v2384, 7
        %v2386 = vsub.s32 0, %v2385
        %v2387 = vrot.slane %v781, %v2386
        %v2389 = vmul.f32 %v2381, %v2387
        %v2390 = vmul.f32 %v2382, %v2387
        %v2392 = vlaneseq
        %v2393 = vshrl.u32 %v2392, 7
        %v2394 = vsub.s32 0, %v2393
        %v2395 = vrot.slane %v782, %v2394
        %v2397 = vadd.f32 %v2389, %v2395
        %v2398 = vadd.f32 %v2390, %v2395
        %v2399 = vmul.f32 %v2397, %v850
        %v2400 = vmul.f32 %v2398, %v851
        %v2401 = vxor.u32 %v850, 2147483648
        %v2402 = vxor.u32 %v851, 2147483648
        %v2403 = vmul.f32 %v2401, 1.442695
        %v2404 = vpow.pop %v2403
        %v2405 = vmul.f32 %v2402, 1.442695
        %v2406 = vpow.pop %v2405
        %v2407 = vadd.f32 %v2404, 1.0
        %v2408 = vadd.f32 %v2406, 1.0
        %v2409 = vrcp.pop %v2407
        %v2410 = vmul.f32 1.0, %v2409
        %v2411 = vrcp.pop %v2408
        %v2412 = vmul.f32 1.0, %v2411
        %v2413 = vmul.f32 %v2399, %v2410
        %v2414 = vmul.f32 %v2400, %v2412
        %v2415 = vpack.c.bf16 %v2414, %v2413
        %v2417 = vunpack.c.l.b16 %v2415
        %v2418 = vunpack.c.h.b16 %v2415
        %v2419 = vpack.c.b16 %v2417, %v2417
        %v2420 = vpack.c.b16 %v2418, %v2418
        %s2423 = smul.addr %s826, 4
        %s2424 = scalar_lea.vmem %s757, %s2423
        %2425 = vst [vmem:[%s2424] sm:$0xf] %v2419
        %2426 = vst [vmem:[%s2424 + $0x4] sm:$0xf] %v2420
      $region81: #{time_mix_forward.14} parent=71 // loop_footer
        %s824 = sadd.s32 1, %s820
      $region82: #{time_mix_forward.14} parent=71 // loop_footer_branch
        %819 = sbr.rel target = $region78
      $region83: #{time_mix_forward.14} parent=71 // loop_exit
        _
      %s2427 = smul.u32 4, %s31
      %p2428 = scmp.lt.s32.totalorder %s29, 1
      %s2429 = scalar_select %p2428, %s29, 1
      %p2430 = scmp.lt.s32.totalorder %s2427, 3
      %s2431 = scalar_select %p2430, %s2427, 3
      %p2432 = scmp.lt.s32.totalorder %s30, 0
      %s2433 = scalar_select %p2432, %s30, 0
      %s2434 = sadd.s32 %s2433, %s2431
      %s2435 = smul.addr %s2429, 4
      %s2436 = sadd.s32 %s2434, %s2435
      %s2437 = smul.addr %s2436, 4
      %s2438 = scalar_lea.vmem %s13, %s2437
      // Predicated region
      $region84: #{time_mix_forward.14} parent=71 // pred_check
        %p2439 = pneg %p406
      $region85: #{time_mix_forward.14} parent=71 // pred_check_branch
        %2441 = sbr.rel (%p2439) target = $region87
      $region86: #{time_mix_forward.14} parent=71 // pred_region
        %s2442 = smul.u32 4, %s31
      $region87: #{time_mix_forward.14} parent=71 // pred_fallthru
        _
    $region72: #{time_mix_forward.14} parent=5 // pred_fallthru
      _
    %p2443 = scmp.le.s32.totalorder 2, %s19
    // Predicated region
    $region88: #{time_mix_forward.14} parent=5 // pred_check
      %p2444 = pneg %p2443
    $region89: #{time_mix_forward.14} parent=5 // pred_check_branch
      %2446 = sbr.rel (%p2444) target = $region91
    $region90: #{time_mix_forward.14} parent=5 // pred_region
      %s2447 = ssub.s32 %s19, 2
      // Predicated region
      $region92: #{time_mix_forward.14} parent=90 // pred_check
        %p2448 = pneg %p412
      $region93: #{time_mix_forward.14} parent=90 // pred_check_branch
        %2450 = sbr.rel (%p2448) target = $region95
      $region94: #{time_mix_forward.14} parent=90 // pred_region
        %s2451 = smul.u32 4, %s34
        %p2452 = scmp.lt.s32.totalorder %s32, 1
        %s2453 = scalar_select %p2452, %s32, 1
        %p2454 = scmp.lt.s32.totalorder %s2451, 3
        %s2455 = scalar_select %p2454, %s2451, 3
        %p2456 = scmp.lt.s32.totalorder %s33, 0
        %s2457 = scalar_select %p2456, %s33, 0
        %s2458 = sadd.s32 %s2457, %s2455
        %s2459 = smul.addr %s2453, 4
        %s2460 = sadd.s32 %s2458, %s2459
        %s2461 = smul.addr %s2460, 4
        %s2462 = scalar_lea.vmem %s13, %s2461
      $region95: #{time_mix_forward.14} parent=90 // pred_fallthru
        _
    $region91: #{time_mix_forward.14} parent=5 // pred_fallthru
      _
  $region6: #{time_mix_forward.14} parent=0 // loop_footer
    %s23 = sadd.s32 1, %s19
  $region7: #{time_mix_forward.14} parent=0 // loop_footer_branch
    %18 = sbr.rel target = $region3
  $region8: #{time_mix_forward.14} parent=0 // loop_exit
    _

</llo_original>
